<compile_context>
chip_gen: v5e
topology: v5e:2x2
jax: 0.10.0
libtpu: 0.0.40
codegen_flags: <defaults>
</compile_context>

<pallas_src>
import functools

import numpy as np
import jax
import jax.numpy as jnp
from jax.experimental import pallas as pl
from jax.experimental.pallas import tpu as pltpu


# Static layer configuration of ConditionalDiscriminator.
_CHANS   = (4, 8, 16, 32, 8, 1)     # in/out channels of the 5 convs
_STRIDES = (2, 2, 2, 2, 1)
_HAS_BN  = (False, True, True, True, False)


def _spatial_sizes(S):
    sizes = [S]
    for s in _STRIDES:
        sizes.append((sizes[-1] + 2 - 3) // s + 1)   # k=3, pad=1
    return sizes                                      # length 6


def _round_up(v, m):
    return -(-v // m) * m


# ---------------------------------------------------------------------------
# Host-side parameter preparation (one-time): zero-padding + stride of the
# column taps and the channel contraction are folded into a block-Toeplitz
# matrix per kernel row; BN scale is folded into the weights.  Output columns
# are zero-padded to a multiple of 128 so every kernel store is lane-dense.
# ---------------------------------------------------------------------------
def _build_toeplitz(w_hwio, scale, stride, A, Ao, k_pad, n_pad, cmajor):
    """T[dy, k(lane of input), b*cout+co] ; k = ci*A+j (cmajor) or j*cin+ci."""
    _, _, cin, cout = w_hwio.shape
    wf = np.asarray(w_hwio) * np.asarray(scale)[None, None, None, :]
    T = np.zeros((3, k_pad, n_pad), np.float32)
    for dy in range(3):
        for b in range(Ao):
            for dx in range(3):
                j = stride * b + dx - 1
                if 0 <= j < A:                        # column zero-pad folded in
                    for ci in range(cin):
                        k = ci * A + j if cmajor else j * cin + ci
                        T[dy, k, b * cout:(b + 1) * cout] += wf[dy, dx, ci, :]
    return T


def make_params(key, S):
    sizes = _spatial_sizes(S)
    keys = jax.random.split(key, 5)
    Ts, Bs, raw = [], [], []
    lp_prev = 4 * S                                   # layer-1 input lane width
    for i in range(5):
        cin, cout, s = _CHANS[i], _CHANS[i + 1], _STRIDES[i]
        A, Ao = sizes[i], sizes[i + 1]
        kw, kg, kb, km = jax.random.split(keys[i], 4)
        w = jax.random.normal(kw, (3, 3, cin, cout), jnp.float32) / np.sqrt(9.0 * cin)
        if _HAS_BN[i]:
            gamma = 1.0 + 0.1 * jax.random.normal(kg, (cout,), jnp.float32)
            beta = 0.05 * jax.random.normal(kb, (cout,), jnp.float32)
            mean = 0.05 * jax.random.normal(km, (cout,), jnp.float32)
            var = jnp.ones((cout,), jnp.float32)
            scale = gamma / jnp.sqrt(var + 1e-5)      # eval-mode BN folding
            bias = beta - mean * scale
        else:                                          # convs are bias=False
            scale = jnp.ones((cout,), jnp.float32)
            bias = jnp.zeros((cout,), jnp.float32)
        n_pad = _round_up(max(Ao * cout, 128), 128)    # lane-dense outputs
        T = _build_toeplitz(np.asarray(w), np.asarray(scale), s, A, Ao,
                            lp_prev, n_pad, cmajor=(i == 0))
        Ts.append(jnp.asarray(T, dtype=jnp.bfloat16))  # bf16 MXU operands
        bvec = np.zeros((1, n_pad), np.float32)
        bvec[0, :Ao * cout] = np.tile(np.asarray(bias), Ao)
        Bs.append(jnp.asarray(bvec))
        raw.append((w, scale, bias))                   # for the XLA reference
        lp_prev = n_pad
    return {"T": Ts, "b": Bs, "raw": raw}


# ---------------------------------------------------------------------------
# The fused Pallas kernel: Nb batch elements per grid step, all 5 layers.
# ---------------------------------------------------------------------------
def _disc_kernel(x_ref, y_ref,
                 t1_ref, t2_ref, t3_ref, t4_ref, t5_ref,
                 b2_ref, b3_ref, b4_ref,
                 o1_ref, o2_ref, o3_ref, o4_ref, o5_ref,
                 buf1, buf2, buf3, buf4, buf5):
    Nb = x_ref.shape[0]
    S = x_ref.shape[2]

    # Zero the working buffers.  Only the per-image zero-pad rows need it, but a full
    # clear is ~30 vreg stores and (unlike a program_id==0 one-shot init) it stays
    # correct when the "parallel" batch axis is sharded across TensorCores.
    for buf in (buf1, buf2, buf3, buf4, buf5):
        buf[...] = jnp.zeros_like(buf)

    # Stage 0: scatter the NCHW x/y blocks into buf1.  Row n*(S+2)+1+h holds image row h
    # of batch item n; lanes are channel-major [x_c0 | x_c1 | y_c0 | y_c1] (the layer-1
    # Toeplitz weights absorb this layout), so no concat/transpose on the XLA side.
    for n in range(Nb):
        r0 = n * (S + 2) + 1
        buf1[r0:r0 + S, 0 * S:1 * S] = x_ref[n, 0, :, :]
        buf1[r0:r0 + S, 1 * S:2 * S] = x_ref[n, 1, :, :]
        buf1[r0:r0 + S, 2 * S:3 * S] = y_ref[n, 0, :, :]
        buf1[r0:r0 + S, 3 * S:4 * S] = y_ref[n, 1, :, :]

    def conv(buf, t_ref, m_img, stride):
        # 3x3 conv (stride 1 or 2) over all Nb images at once.  Kernel-row selection is
        # a strided sublane read of the zero-padded buffer (load path, no MXU); the
        # column taps + channel contraction are one block-Toeplitz matmul per kernel
        # row, accumulated in f32 (no lane concat, 3 MXU pushes total).
        m = Nb * m_img
        acc = None
        for dy in range(3):
            if stride == 1:
                tap = buf[pl.ds(dy, m), :]
            else:
                tap = buf[pl.ds(dy, m, stride=stride), :]
            p = jnp.dot(tap.astype(jnp.bfloat16), t_ref[dy],
                        preferred_element_type=jnp.float32)
            acc = p if acc is None else acc + p
        return acc

    def lrelu(a):
        return jnp.where(a > 0.0, a, 0.2 * a)

    def scatter(act, m_img, a_out, o_ref, nxt_buf):
        # Rows [n*m_img, n*m_img + a_out) of `act` are image n's real output rows;
        # copy them to the lane-dense output block and into the next layer's padded
        # buffer (the junk rows per image are simply dropped).
        for n in range(Nb):
            rows = act[n * m_img:n * m_img + a_out, :]
            o_ref[n] = rows
            if nxt_buf is not None:
                r0 = n * (a_out + 2) + 1
                nxt_buf[r0:r0 + a_out, :] = rows

    A = S
    # layer1: conv(4->8, s2) + LeakyReLU                      (bias=False, no BN)
    a1 = lrelu(conv(buf1, t1_ref, A // 2 + 1, 2))
    scatter(a1, A // 2 + 1, A // 2, o1_ref, buf2)
    A //= 2
    # layer2: conv(8->16, s2) + BN + LeakyReLU    (BN scale folded into T, bias here)
    a2 = lrelu(conv(buf2, t2_ref, A // 2 + 1, 2) + b2_ref[...])
    scatter(a2, A // 2 + 1, A // 2, o2_ref, buf3)
    A //= 2
    # layer3: conv(16->32, s2) + BN + LeakyReLU
    a3 = lrelu(conv(buf3, t3_ref, A // 2 + 1, 2) + b3_ref[...])
    scatter(a3, A // 2 + 1, A // 2, o3_ref, buf4)
    A //= 2
    # layer4: conv(32->8, s2) + BN + LeakyReLU   (output lanes zero-padded to 128)
    a4 = lrelu(conv(buf4, t4_ref, A // 2 + 1, 2) + b4_ref[...])
    scatter(a4, A // 2 + 1, A // 2, o4_ref, buf5)
    A //= 2
    # layer5: conv(8->1, s1) + sigmoid
    a5 = conv(buf5, t5_ref, A + 2, 1)
    a5 = 1.0 / (1.0 + jnp.exp(-a5))
    scatter(a5, A + 2, A, o5_ref, None)


def _choose_nb(N, target):
    """Largest divisor of N that is <= target and (when N >= 2) leaves >= 2 grid steps
    so the "parallel" batch axis can be sharded across v7x's two TensorCores."""
    cap = max(1, min(target, N // 2)) if N >= 2 else 1
    for d in range(cap, 0, -1):
        if N % d == 0:
            return d
    return 1


def conditional_discriminator(x, y, params, nb=8):
    N, _, S, _ = x.shape
    assert S % 16 == 0, "occ_map_size must be divisible by 16"
    sizes = _spatial_sizes(S)
    Nb = _choose_nb(N, nb)
    G = N // Nb

    Ts, Bs = params["T"], params["b"]
    lps = [t.shape[2] for t in Ts]                    # lane-dense output widths

    x = x.astype(jnp.float32)
    y = y.astype(jnp.float32)

    in_arrays = [x, y] + list(Ts) + [Bs[1], Bs[2], Bs[3]]
    in_specs = (
        [pl.BlockSpec((Nb, 2, S, S), lambda g: (g, 0, 0, 0)),
         pl.BlockSpec((Nb, 2, S, S), lambda g: (g, 0, 0, 0))]
        + [pl.BlockSpec(t.shape, lambda g: (0, 0, 0)) for t in Ts]
        + [pl.BlockSpec(b.shape, lambda g: (0, 0)) for b in (Bs[1], Bs[2], Bs[3])]
    )

    out_shapes, out_specs = [], []
    for i in range(5):
        Ao = sizes[i + 1]
        out_shapes.append(jax.ShapeDtypeStruct((N, Ao, lps[i]), jnp.float32))
        out_specs.append(pl.BlockSpec((Nb, Ao, lps[i]), lambda g: (g, 0, 0)))

    # Per-layer padded working buffers: each image gets a zero row above and below
    # (3x3 conv padding) plus a 2-row read margin for the strided tap loads.
    scratch_shapes = []
    lane_in = 4 * S
    for i in range(5):
        A = sizes[i]
        scratch_shapes.append(pltpu.VMEM((Nb * (A + 2) + 2, lane_in), jnp.float32))
        lane_in = lps[i]

    outs = pl.pallas_call(
        _disc_kernel,
        out_shape=tuple(out_shapes),
        grid=(G,),
        in_specs=in_specs,
        out_specs=tuple(out_specs),
        scratch_shapes=scratch_shapes,
        compiler_params=pltpu.CompilerParams(
            dimension_semantics=("parallel",)),       # shard batch chunks across TCs
    )(*in_arrays)

    # The module's contract returns NCHW tensors, so the (N, Ao, Ao*C)->NCHW conversion
    # stays in the wrapper (one fused slice+reshape+transpose per output).
    def to_nchw(o, i):
        Ao, cout = sizes[i + 1], _CHANS[i + 1]
        return jnp.transpose(o[:, :, :Ao * cout].reshape(N, Ao, Ao, cout), (0, 3, 1, 2))

    out1, out2, out3, out4, result = [to_nchw(o, i) for i, o in enumerate(outs)]
    return result, [out1, out2, out3, out4]


# ---------------------------------------------------------------------------
# Pure-JAX (XLA) reference for a numerical sanity check.
# ---------------------------------------------------------------------------
def _reference(x, y, raw_params):
    h = jnp.concatenate([x, y], axis=1).astype(jnp.float32)
    feats = []
    for i, (w, scale, bias) in enumerate(raw_params):
        s = _STRIDES[i]
        w_oihw = jnp.transpose(w, (3, 2, 0, 1))
        h = jax.lax.conv_general_dilated(
            h, w_oihw, window_strides=(s, s), padding=((1, 1), (1, 1)),
            dimension_numbers=("NCHW", "OIHW", "NCHW"))
        h = h * scale[None, :, None, None] + bias[None, :, None, None]
        if i < 4:
            h = jnp.where(h > 0, h, 0.2 * h)
            feats.append(h)
        else:
            h = jax.nn.sigmoid(h)
    return h, feats


if __name__ == "__main__":
    N, S = 8, 32                                # occ_map_size = 32 -> 2x2 result patches
    key = jax.random.PRNGKey(0)
    kx, ky, kp = jax.random.split(key, 3)
    # Conv2d(4, ...) expects 4 input channels: use 2 + 2 (see header note).
    x = jax.random.normal(kx, (N, 2, S, S), jnp.float32)
    y = jax.random.normal(ky, (N, 2, S, S), jnp.float32)
    params = make_params(kp, S)

    fwd = jax.jit(functools.partial(conditional_discriminator, params=params))
    result, feats = fwd(x, y)
    result = jax.block_until_ready(result)

    assert result.shape == (N, 1, S // 16, S // 16), result.shape
    expected = [(N, 8, 16, 16), (N, 16, 8, 8), (N, 32, 4, 4), (N, 8, 2, 2)]
    for f, es in zip(feats, expected):
        assert f.shape == es, (f.shape, es)

    # Numerical sanity check vs XLA reference (loose tol: bf16 MXU operands).
    ref_res, ref_feats = _reference(x, y, params["raw"])
    assert float(jnp.max(jnp.abs(result - ref_res))) < 5e-2
    for f, rf in zip(feats, ref_feats):
        assert float(jnp.max(jnp.abs(f - rf))) < 2e-1

    print("KERNEL_OK")
</pallas_src>

<mosaic_0001>
module attributes {stable_mosaic.version = 11 : i64} {
  func.func @_disc_kernel(%arg0: i32, %arg1: memref<4x2x32x32xf32, #tpu.memory_space<vmem>>, %arg2: memref<4x2x32x32xf32, #tpu.memory_space<vmem>>, %arg3: memref<3x128x128xbf16, #tpu.memory_space<vmem>>, %arg4: memref<3x128x128xbf16, #tpu.memory_space<vmem>>, %arg5: memref<3x128x128xbf16, #tpu.memory_space<vmem>>, %arg6: memref<3x128x128xbf16, #tpu.memory_space<vmem>>, %arg7: memref<3x128x128xbf16, #tpu.memory_space<vmem>>, %arg8: memref<1x128xf32, #tpu.memory_space<vmem>>, %arg9: memref<1x128xf32, #tpu.memory_space<vmem>>, %arg10: memref<1x128xf32, #tpu.memory_space<vmem>>, %arg11: memref<4x16x128xf32, #tpu.memory_space<vmem>>, %arg12: memref<4x8x128xf32, #tpu.memory_space<vmem>>, %arg13: memref<4x4x128xf32, #tpu.memory_space<vmem>>, %arg14: memref<4x2x128xf32, #tpu.memory_space<vmem>>, %arg15: memref<4x2x128xf32, #tpu.memory_space<vmem>>, %arg16: memref<138x128xf32, #tpu.memory_space<vmem>>, %arg17: memref<74x128xf32, #tpu.memory_space<vmem>>, %arg18: memref<42x128xf32, #tpu.memory_space<vmem>>, %arg19: memref<26x128xf32, #tpu.memory_space<vmem>>, %arg20: memref<18x128xf32, #tpu.memory_space<vmem>>) attributes {dimension_semantics = [#tpu.dimension_semantics<parallel>], iteration_bounds = array<i64: 2>, scalar_prefetch = 0 : i64, scratch_operands = 5 : i64, tpu.core_type = #tpu.core_type<tc>, window_params = [{transform_indices = @transform_0, window_bounds = array<i64: 4, 2, 32, 32>}, {transform_indices = @transform_1, window_bounds = array<i64: 4, 2, 32, 32>}, {pipeline_mode = #tpu.pipeline_mode<synchronous>, transform_indices = @transform_2, window_bounds = array<i64: 3, 128, 128>}, {pipeline_mode = #tpu.pipeline_mode<synchronous>, transform_indices = @transform_3, window_bounds = array<i64: 3, 128, 128>}, {pipeline_mode = #tpu.pipeline_mode<synchronous>, transform_indices = @transform_4, window_bounds = array<i64: 3, 128, 128>}, {pipeline_mode = #tpu.pipeline_mode<synchronous>, transform_indices = @transform_5, window_bounds = array<i64: 3, 128, 128>}, {pipeline_mode = #tpu.pipeline_mode<synchronous>, transform_indices = @transform_6, window_bounds = array<i64: 3, 128, 128>}, {pipeline_mode = #tpu.pipeline_mode<synchronous>, transform_indices = @transform_7, window_bounds = array<i64: 1, 128>}, {pipeline_mode = #tpu.pipeline_mode<synchronous>, transform_indices = @transform_8, window_bounds = array<i64: 1, 128>}, {pipeline_mode = #tpu.pipeline_mode<synchronous>, transform_indices = @transform_9, window_bounds = array<i64: 1, 128>}, {transform_indices = @transform_10, window_bounds = array<i64: 4, 16, 128>}, {transform_indices = @transform_11, window_bounds = array<i64: 4, 8, 128>}, {transform_indices = @transform_12, window_bounds = array<i64: 4, 4, 128>}, {transform_indices = @transform_13, window_bounds = array<i64: 4, 2, 128>}, {transform_indices = @transform_14, window_bounds = array<i64: 4, 2, 128>}]} {
    %cst = arith.constant 0.000000e+00 : f32
    %0 = vector.broadcast %cst : f32 to vector<138x128xf32>
    %c0 = arith.constant 0 : index
    %c0_0 = arith.constant 0 : index
    %1 = vector.load %arg16[%c0, %c0_0] : memref<138x128xf32, #tpu.memory_space<vmem>>, vector<138x128xf32>
    tpu.vector_store %arg16[%c0, %c0_0], %0 {strides = array<i32>} : memref<138x128xf32, #tpu.memory_space<vmem>>, vector<138x128xf32>,
    %cst_1 = arith.constant 0.000000e+00 : f32
    %2 = vector.broadcast %cst_1 : f32 to vector<74x128xf32>
    %c0_2 = arith.constant 0 : index
    %c0_3 = arith.constant 0 : index
    %3 = vector.load %arg17[%c0_2, %c0_3] : memref<74x128xf32, #tpu.memory_space<vmem>>, vector<74x128xf32>
    tpu.vector_store %arg17[%c0_2, %c0_3], %2 {strides = array<i32>} : memref<74x128xf32, #tpu.memory_space<vmem>>, vector<74x128xf32>,
    %cst_4 = arith.constant 0.000000e+00 : f32
    %4 = vector.broadcast %cst_4 : f32 to vector<42x128xf32>
    %c0_5 = arith.constant 0 : index
    %c0_6 = arith.constant 0 : index
    %5 = vector.load %arg18[%c0_5, %c0_6] : memref<42x128xf32, #tpu.memory_space<vmem>>, vector<42x128xf32>
    tpu.vector_store %arg18[%c0_5, %c0_6], %4 {strides = array<i32>} : memref<42x128xf32, #tpu.memory_space<vmem>>, vector<42x128xf32>,
    %cst_7 = arith.constant 0.000000e+00 : f32
    %6 = vector.broadcast %cst_7 : f32 to vector<26x128xf32>
    %c0_8 = arith.constant 0 : index
    %c0_9 = arith.constant 0 : index
    %7 = vector.load %arg19[%c0_8, %c0_9] : memref<26x128xf32, #tpu.memory_space<vmem>>, vector<26x128xf32>
    tpu.vector_store %arg19[%c0_8, %c0_9], %6 {strides = array<i32>} : memref<26x128xf32, #tpu.memory_space<vmem>>, vector<26x128xf32>,
    %cst_10 = arith.constant 0.000000e+00 : f32
    %8 = vector.broadcast %cst_10 : f32 to vector<18x128xf32>
    %c0_11 = arith.constant 0 : index
    %c0_12 = arith.constant 0 : index
    %9 = vector.load %arg20[%c0_11, %c0_12] : memref<18x128xf32, #tpu.memory_space<vmem>>, vector<18x128xf32>
    tpu.vector_store %arg20[%c0_11, %c0_12], %8 {strides = array<i32>} : memref<18x128xf32, #tpu.memory_space<vmem>>, vector<18x128xf32>,
    %c0_13 = arith.constant 0 : index
    %c0_14 = arith.constant 0 : index
    %c0_15 = arith.constant 0 : index
    %c0_16 = arith.constant 0 : index
    %10 = vector.load %arg1[%c0_13, %c0_14, %c0_15, %c0_16] : memref<4x2x32x32xf32, #tpu.memory_space<vmem>>, vector<1x1x32x32xf32>
    %11 = vector.shape_cast %10 : vector<1x1x32x32xf32> to vector<32x32xf32>
    %c1 = arith.constant 1 : index
    %c0_17 = arith.constant 0 : index
    %12 = vector.load %arg16[%c1, %c0_17] : memref<138x128xf32, #tpu.memory_space<vmem>>, vector<32x32xf32>
    tpu.vector_store %arg16[%c1, %c0_17], %11 {strides = array<i32>} : memref<138x128xf32, #tpu.memory_space<vmem>>, vector<32x32xf32>,
    %c0_18 = arith.constant 0 : index
    %c1_19 = arith.constant 1 : index
    %c0_20 = arith.constant 0 : index
    %c0_21 = arith.constant 0 : index
    %13 = vector.load %arg1[%c0_18, %c1_19, %c0_20, %c0_21] : memref<4x2x32x32xf32, #tpu.memory_space<vmem>>, vector<1x1x32x32xf32>
    %14 = vector.shape_cast %13 : vector<1x1x32x32xf32> to vector<32x32xf32>
    %c1_22 = arith.constant 1 : index
    %c32 = arith.constant 32 : index
    %15 = vector.load %arg16[%c1_22, %c32] : memref<138x128xf32, #tpu.memory_space<vmem>>, vector<32x32xf32>
    tpu.vector_store %arg16[%c1_22, %c32], %14 {strides = array<i32>} : memref<138x128xf32, #tpu.memory_space<vmem>>, vector<32x32xf32>,
    %c0_23 = arith.constant 0 : index
    %c0_24 = arith.constant 0 : index
    %c0_25 = arith.constant 0 : index
    %c0_26 = arith.constant 0 : index
    %16 = vector.load %arg2[%c0_23, %c0_24, %c0_25, %c0_26] : memref<4x2x32x32xf32, #tpu.memory_space<vmem>>, vector<1x1x32x32xf32>
    %17 = vector.shape_cast %16 : vector<1x1x32x32xf32> to vector<32x32xf32>
    %c1_27 = arith.constant 1 : index
    %c64 = arith.constant 64 : index
    %18 = vector.load %arg16[%c1_27, %c64] : memref<138x128xf32, #tpu.memory_space<vmem>>, vector<32x32xf32>
    tpu.vector_store %arg16[%c1_27, %c64], %17 {strides = array<i32>} : memref<138x128xf32, #tpu.memory_space<vmem>>, vector<32x32xf32>,
    %c0_28 = arith.constant 0 : index
    %c1_29 = arith.constant 1 : index
    %c0_30 = arith.constant 0 : index
    %c0_31 = arith.constant 0 : index
    %19 = vector.load %arg2[%c0_28, %c1_29, %c0_30, %c0_31] : memref<4x2x32x32xf32, #tpu.memory_space<vmem>>, vector<1x1x32x32xf32>
    %20 = vector.shape_cast %19 : vector<1x1x32x32xf32> to vector<32x32xf32>
    %c1_32 = arith.constant 1 : index
    %c96 = arith.constant 96 : index
    %21 = vector.load %arg16[%c1_32, %c96] : memref<138x128xf32, #tpu.memory_space<vmem>>, vector<32x32xf32>
    tpu.vector_store %arg16[%c1_32, %c96], %20 {strides = array<i32>} : memref<138x128xf32, #tpu.memory_space<vmem>>, vector<32x32xf32>,
    %c1_33 = arith.constant 1 : index
    %c0_34 = arith.constant 0 : index
    %c0_35 = arith.constant 0 : index
    %c0_36 = arith.constant 0 : index
    %22 = vector.load %arg1[%c1_33, %c0_34, %c0_35, %c0_36] : memref<4x2x32x32xf32, #tpu.memory_space<vmem>>, vector<1x1x32x32xf32>
    %23 = vector.shape_cast %22 : vector<1x1x32x32xf32> to vector<32x32xf32>
    %c35 = arith.constant 35 : index
    %c0_37 = arith.constant 0 : index
    %24 = vector.load %arg16[%c35, %c0_37] : memref<138x128xf32, #tpu.memory_space<vmem>>, vector<32x32xf32>
    tpu.vector_store %arg16[%c35, %c0_37], %23 {strides = array<i32>} : memref<138x128xf32, #tpu.memory_space<vmem>>, vector<32x32xf32>,
    %c1_38 = arith.constant 1 : index
    %c1_39 = arith.constant 1 : index
    %c0_40 = arith.constant 0 : index
    %c0_41 = arith.constant 0 : index
    %25 = vector.load %arg1[%c1_38, %c1_39, %c0_40, %c0_41] : memref<4x2x32x32xf32, #tpu.memory_space<vmem>>, vector<1x1x32x32xf32>
    %26 = vector.shape_cast %25 : vector<1x1x32x32xf32> to vector<32x32xf32>
    %c35_42 = arith.constant 35 : index
    %c32_43 = arith.constant 32 : index
    %27 = vector.load %arg16[%c35_42, %c32_43] : memref<138x128xf32, #tpu.memory_space<vmem>>, vector<32x32xf32>
    tpu.vector_store %arg16[%c35_42, %c32_43], %26 {strides = array<i32>} : memref<138x128xf32, #tpu.memory_space<vmem>>, vector<32x32xf32>,
    %c1_44 = arith.constant 1 : index
    %c0_45 = arith.constant 0 : index
    %c0_46 = arith.constant 0 : index
    %c0_47 = arith.constant 0 : index
    %28 = vector.load %arg2[%c1_44, %c0_45, %c0_46, %c0_47] : memref<4x2x32x32xf32, #tpu.memory_space<vmem>>, vector<1x1x32x32xf32>
    %29 = vector.shape_cast %28 : vector<1x1x32x32xf32> to vector<32x32xf32>
    %c35_48 = arith.constant 35 : index
    %c64_49 = arith.constant 64 : index
    %30 = vector.load %arg16[%c35_48, %c64_49] : memref<138x128xf32, #tpu.memory_space<vmem>>, vector<32x32xf32>
    tpu.vector_store %arg16[%c35_48, %c64_49], %29 {strides = array<i32>} : memref<138x128xf32, #tpu.memory_space<vmem>>, vector<32x32xf32>,
    %c1_50 = arith.constant 1 : index
    %c1_51 = arith.constant 1 : index
    %c0_52 = arith.constant 0 : index
    %c0_53 = arith.constant 0 : index
    %31 = vector.load %arg2[%c1_50, %c1_51, %c0_52, %c0_53] : memref<4x2x32x32xf32, #tpu.memory_space<vmem>>, vector<1x1x32x32xf32>
    %32 = vector.shape_cast %31 : vector<1x1x32x32xf32> to vector<32x32xf32>
    %c35_54 = arith.constant 35 : index
    %c96_55 = arith.constant 96 : index
    %33 = vector.load %arg16[%c35_54, %c96_55] : memref<138x128xf32, #tpu.memory_space<vmem>>, vector<32x32xf32>
    tpu.vector_store %arg16[%c35_54, %c96_55], %32 {strides = array<i32>} : memref<138x128xf32, #tpu.memory_space<vmem>>, vector<32x32xf32>,
    %c2 = arith.constant 2 : index
    %c0_56 = arith.constant 0 : index
    %c0_57 = arith.constant 0 : index
    %c0_58 = arith.constant 0 : index
    %34 = vector.load %arg1[%c2, %c0_56, %c0_57, %c0_58] : memref<4x2x32x32xf32, #tpu.memory_space<vmem>>, vector<1x1x32x32xf32>
    %35 = vector.shape_cast %34 : vector<1x1x32x32xf32> to vector<32x32xf32>
    %c69 = arith.constant 69 : index
    %c0_59 = arith.constant 0 : index
    %36 = vector.load %arg16[%c69, %c0_59] : memref<138x128xf32, #tpu.memory_space<vmem>>, vector<32x32xf32>
    tpu.vector_store %arg16[%c69, %c0_59], %35 {strides = array<i32>} : memref<138x128xf32, #tpu.memory_space<vmem>>, vector<32x32xf32>,
    %c2_60 = arith.constant 2 : index
    %c1_61 = arith.constant 1 : index
    %c0_62 = arith.constant 0 : index
    %c0_63 = arith.constant 0 : index
    %37 = vector.load %arg1[%c2_60, %c1_61, %c0_62, %c0_63] : memref<4x2x32x32xf32, #tpu.memory_space<vmem>>, vector<1x1x32x32xf32>
    %38 = vector.shape_cast %37 : vector<1x1x32x32xf32> to vector<32x32xf32>
    %c69_64 = arith.constant 69 : index
    %c32_65 = arith.constant 32 : index
    %39 = vector.load %arg16[%c69_64, %c32_65] : memref<138x128xf32, #tpu.memory_space<vmem>>, vector<32x32xf32>
    tpu.vector_store %arg16[%c69_64, %c32_65], %38 {strides = array<i32>} : memref<138x128xf32, #tpu.memory_space<vmem>>, vector<32x32xf32>,
    %c2_66 = arith.constant 2 : index
    %c0_67 = arith.constant 0 : index
    %c0_68 = arith.constant 0 : index
    %c0_69 = arith.constant 0 : index
    %40 = vector.load %arg2[%c2_66, %c0_67, %c0_68, %c0_69] : memref<4x2x32x32xf32, #tpu.memory_space<vmem>>, vector<1x1x32x32xf32>
    %41 = vector.shape_cast %40 : vector<1x1x32x32xf32> to vector<32x32xf32>
    %c69_70 = arith.constant 69 : index
    %c64_71 = arith.constant 64 : index
    %42 = vector.load %arg16[%c69_70, %c64_71] : memref<138x128xf32, #tpu.memory_space<vmem>>, vector<32x32xf32>
    tpu.vector_store %arg16[%c69_70, %c64_71], %41 {strides = array<i32>} : memref<138x128xf32, #tpu.memory_space<vmem>>, vector<32x32xf32>,
    %c2_72 = arith.constant 2 : index
    %c1_73 = arith.constant 1 : index
    %c0_74 = arith.constant 0 : index
    %c0_75 = arith.constant 0 : index
    %43 = vector.load %arg2[%c2_72, %c1_73, %c0_74, %c0_75] : memref<4x2x32x32xf32, #tpu.memory_space<vmem>>, vector<1x1x32x32xf32>
    %44 = vector.shape_cast %43 : vector<1x1x32x32xf32> to vector<32x32xf32>
    %c69_76 = arith.constant 69 : index
    %c96_77 = arith.constant 96 : index
    %45 = vector.load %arg16[%c69_76, %c96_77] : memref<138x128xf32, #tpu.memory_space<vmem>>, vector<32x32xf32>
    tpu.vector_store %arg16[%c69_76, %c96_77], %44 {strides = array<i32>} : memref<138x128xf32, #tpu.memory_space<vmem>>, vector<32x32xf32>,
    %c3 = arith.constant 3 : index
    %c0_78 = arith.constant 0 : index
    %c0_79 = arith.constant 0 : index
    %c0_80 = arith.constant 0 : index
    %46 = vector.load %arg1[%c3, %c0_78, %c0_79, %c0_80] : memref<4x2x32x32xf32, #tpu.memory_space<vmem>>, vector<1x1x32x32xf32>
    %47 = vector.shape_cast %46 : vector<1x1x32x32xf32> to vector<32x32xf32>
    %c103 = arith.constant 103 : index
    %c0_81 = arith.constant 0 : index
    %48 = vector.load %arg16[%c103, %c0_81] : memref<138x128xf32, #tpu.memory_space<vmem>>, vector<32x32xf32>
    tpu.vector_store %arg16[%c103, %c0_81], %47 {strides = array<i32>} : memref<138x128xf32, #tpu.memory_space<vmem>>, vector<32x32xf32>,
    %c3_82 = arith.constant 3 : index
    %c1_83 = arith.constant 1 : index
    %c0_84 = arith.constant 0 : index
    %c0_85 = arith.constant 0 : index
    %49 = vector.load %arg1[%c3_82, %c1_83, %c0_84, %c0_85] : memref<4x2x32x32xf32, #tpu.memory_space<vmem>>, vector<1x1x32x32xf32>
    %50 = vector.shape_cast %49 : vector<1x1x32x32xf32> to vector<32x32xf32>
    %c103_86 = arith.constant 103 : index
    %c32_87 = arith.constant 32 : index
    %51 = vector.load %arg16[%c103_86, %c32_87] : memref<138x128xf32, #tpu.memory_space<vmem>>, vector<32x32xf32>
    tpu.vector_store %arg16[%c103_86, %c32_87], %50 {strides = array<i32>} : memref<138x128xf32, #tpu.memory_space<vmem>>, vector<32x32xf32>,
    %c3_88 = arith.constant 3 : index
    %c0_89 = arith.constant 0 : index
    %c0_90 = arith.constant 0 : index
    %c0_91 = arith.constant 0 : index
    %52 = vector.load %arg2[%c3_88, %c0_89, %c0_90, %c0_91] : memref<4x2x32x32xf32, #tpu.memory_space<vmem>>, vector<1x1x32x32xf32>
    %53 = vector.shape_cast %52 : vector<1x1x32x32xf32> to vector<32x32xf32>
    %c103_92 = arith.constant 103 : index
    %c64_93 = arith.constant 64 : index
    %54 = vector.load %arg16[%c103_92, %c64_93] : memref<138x128xf32, #tpu.memory_space<vmem>>, vector<32x32xf32>
    tpu.vector_store %arg16[%c103_92, %c64_93], %53 {strides = array<i32>} : memref<138x128xf32, #tpu.memory_space<vmem>>, vector<32x32xf32>,
    %c3_94 = arith.constant 3 : index
    %c1_95 = arith.constant 1 : index
    %c0_96 = arith.constant 0 : index
    %c0_97 = arith.constant 0 : index
    %55 = vector.load %arg2[%c3_94, %c1_95, %c0_96, %c0_97] : memref<4x2x32x32xf32, #tpu.memory_space<vmem>>, vector<1x1x32x32xf32>
    %56 = vector.shape_cast %55 : vector<1x1x32x32xf32> to vector<32x32xf32>
    %c103_98 = arith.constant 103 : index
    %c96_99 = arith.constant 96 : index
    %57 = vector.load %arg16[%c103_98, %c96_99] : memref<138x128xf32, #tpu.memory_space<vmem>>, vector<32x32xf32>
    tpu.vector_store %arg16[%c103_98, %c96_99], %56 {strides = array<i32>} : memref<138x128xf32, #tpu.memory_space<vmem>>, vector<32x32xf32>,
    %c0_100 = arith.constant 0 : index
    %c0_101 = arith.constant 0 : index
    %58 = tpu.strided_load %arg16[%c0_100, %c0_101] {strides = array<i32: 2, 1>} : memref<138x128xf32, #tpu.memory_space<vmem>>, vector<68x128xf32>
    %59 = arith.truncf %58 : vector<68x128xf32> to vector<68x128xbf16>
    %c0_102 = arith.constant 0 : index
    %c0_103 = arith.constant 0 : index
    %c0_104 = arith.constant 0 : index
    %60 = vector.load %arg3[%c0_102, %c0_103, %c0_104] : memref<3x128x128xbf16, #tpu.memory_space<vmem>>, vector<1x128x128xbf16>
    %61 = vector.shape_cast %60 : vector<1x128x128xbf16> to vector<128x128xbf16>
    %cst_105 = arith.constant dense<0.000000e+00> : vector<68x128xf32>
    %62 = tpu.matmul %59, %61, %cst_105 {dimension_numbers = #tpu.dot_dimension_numbers<[1], [0], [0], [1], [0, 0, 1, 1], [], []>} : vector<68x128xbf16>, vector<128x128xbf16>, vector<68x128xf32> -> vector<68x128xf32>
    %c1_106 = arith.constant 1 : index
    %c0_107 = arith.constant 0 : index
    %63 = tpu.strided_load %arg16[%c1_106, %c0_107] {strides = array<i32: 2, 1>} : memref<138x128xf32, #tpu.memory_space<vmem>>, vector<68x128xf32>
    %64 = arith.truncf %63 : vector<68x128xf32> to vector<68x128xbf16>
    %c1_108 = arith.constant 1 : index
    %c0_109 = arith.constant 0 : index
    %c0_110 = arith.constant 0 : index
    %65 = vector.load %arg3[%c1_108, %c0_109, %c0_110] : memref<3x128x128xbf16, #tpu.memory_space<vmem>>, vector<1x128x128xbf16>
    %66 = vector.shape_cast %65 : vector<1x128x128xbf16> to vector<128x128xbf16>
    %cst_111 = arith.constant dense<0.000000e+00> : vector<68x128xf32>
    %67 = tpu.matmul %64, %66, %cst_111 {dimension_numbers = #tpu.dot_dimension_numbers<[1], [0], [0], [1], [0, 0, 1, 1], [], []>} : vector<68x128xbf16>, vector<128x128xbf16>, vector<68x128xf32> -> vector<68x128xf32>
    %68 = arith.addf %62, %67 : vector<68x128xf32>
    %c2_112 = arith.constant 2 : index
    %c0_113 = arith.constant 0 : index
    %69 = tpu.strided_load %arg16[%c2_112, %c0_113] {strides = array<i32: 2, 1>} : memref<138x128xf32, #tpu.memory_space<vmem>>, vector<68x128xf32>
    %70 = arith.truncf %69 : vector<68x128xf32> to vector<68x128xbf16>
    %c2_114 = arith.constant 2 : index
    %c0_115 = arith.constant 0 : index
    %c0_116 = arith.constant 0 : index
    %71 = vector.load %arg3[%c2_114, %c0_115, %c0_116] : memref<3x128x128xbf16, #tpu.memory_space<vmem>>, vector<1x128x128xbf16>
    %72 = vector.shape_cast %71 : vector<1x128x128xbf16> to vector<128x128xbf16>
    %cst_117 = arith.constant dense<0.000000e+00> : vector<68x128xf32>
    %73 = tpu.matmul %70, %72, %cst_117 {dimension_numbers = #tpu.dot_dimension_numbers<[1], [0], [0], [1], [0, 0, 1, 1], [], []>} : vector<68x128xbf16>, vector<128x128xbf16>, vector<68x128xf32> -> vector<68x128xf32>
    %74 = arith.addf %68, %73 : vector<68x128xf32>
    %cst_118 = arith.constant 0.000000e+00 : f32
    %75 = vector.broadcast %cst_118 : f32 to vector<68x128xf32>
    %76 = arith.cmpf ogt, %74, %75 : vector<68x128xf32>
    %cst_119 = arith.constant 2.000000e-01 : f32
    %77 = vector.broadcast %cst_119 : f32 to vector<68x128xf32>
    %78 = arith.mulf %77, %74 : vector<68x128xf32>
    %79 = arith.select %76, %74, %78 : vector<68x128xi1>, vector<68x128xf32>
    %80 = vector.extract_strided_slice %79 {offsets = [0, 0], sizes = [16, 128], strides = [1, 1]} : vector<68x128xf32> to vector<16x128xf32>
    %c0_120 = arith.constant 0 : index
    %c0_121 = arith.constant 0 : index
    %c0_122 = arith.constant 0 : index
    %81 = vector.load %arg11[%c0_120, %c0_121, %c0_122] : memref<4x16x128xf32, #tpu.memory_space<vmem>>, vector<1x16x128xf32>
    %82 = vector.shape_cast %81 : vector<1x16x128xf32> to vector<16x128xf32>
    %83 = vector.shape_cast %80 : vector<16x128xf32> to vector<1x16x128xf32>
    tpu.vector_store %arg11[%c0_120, %c0_121, %c0_122], %83 {strides = array<i32>} : memref<4x16x128xf32, #tpu.memory_space<vmem>>, vector<1x16x128xf32>,
    %c1_123 = arith.constant 1 : index
    %c0_124 = arith.constant 0 : index
    %84 = vector.load %arg17[%c1_123, %c0_124] : memref<74x128xf32, #tpu.memory_space<vmem>>, vector<16x128xf32>
    tpu.vector_store %arg17[%c1_123, %c0_124], %80 {strides = array<i32>} : memref<74x128xf32, #tpu.memory_space<vmem>>, vector<16x128xf32>,
    %85 = vector.extract_strided_slice %79 {offsets = [17, 0], sizes = [16, 128], strides = [1, 1]} : vector<68x128xf32> to vector<16x128xf32>
    %c1_125 = arith.constant 1 : index
    %c0_126 = arith.constant 0 : index
    %c0_127 = arith.constant 0 : index
    %86 = vector.load %arg11[%c1_125, %c0_126, %c0_127] : memref<4x16x128xf32, #tpu.memory_space<vmem>>, vector<1x16x128xf32>
    %87 = vector.shape_cast %86 : vector<1x16x128xf32> to vector<16x128xf32>
    %88 = vector.shape_cast %85 : vector<16x128xf32> to vector<1x16x128xf32>
    tpu.vector_store %arg11[%c1_125, %c0_126, %c0_127], %88 {strides = array<i32>} : memref<4x16x128xf32, #tpu.memory_space<vmem>>, vector<1x16x128xf32>,
    %c19 = arith.constant 19 : index
    %c0_128 = arith.constant 0 : index
    %89 = vector.load %arg17[%c19, %c0_128] : memref<74x128xf32, #tpu.memory_space<vmem>>, vector<16x128xf32>
    tpu.vector_store %arg17[%c19, %c0_128], %85 {strides = array<i32>} : memref<74x128xf32, #tpu.memory_space<vmem>>, vector<16x128xf32>,
    %90 = vector.extract_strided_slice %79 {offsets = [34, 0], sizes = [16, 128], strides = [1, 1]} : vector<68x128xf32> to vector<16x128xf32>
    %c2_129 = arith.constant 2 : index
    %c0_130 = arith.constant 0 : index
    %c0_131 = arith.constant 0 : index
    %91 = vector.load %arg11[%c2_129, %c0_130, %c0_131] : memref<4x16x128xf32, #tpu.memory_space<vmem>>, vector<1x16x128xf32>
    %92 = vector.shape_cast %91 : vector<1x16x128xf32> to vector<16x128xf32>
    %93 = vector.shape_cast %90 : vector<16x128xf32> to vector<1x16x128xf32>
    tpu.vector_store %arg11[%c2_129, %c0_130, %c0_131], %93 {strides = array<i32>} : memref<4x16x128xf32, #tpu.memory_space<vmem>>, vector<1x16x128xf32>,
    %c37 = arith.constant 37 : index
    %c0_132 = arith.constant 0 : index
    %94 = vector.load %arg17[%c37, %c0_132] : memref<74x128xf32, #tpu.memory_space<vmem>>, vector<16x128xf32>
    tpu.vector_store %arg17[%c37, %c0_132], %90 {strides = array<i32>} : memref<74x128xf32, #tpu.memory_space<vmem>>, vector<16x128xf32>,
    %95 = vector.extract_strided_slice %79 {offsets = [51, 0], sizes = [16, 128], strides = [1, 1]} : vector<68x128xf32> to vector<16x128xf32>
    %c3_133 = arith.constant 3 : index
    %c0_134 = arith.constant 0 : index
    %c0_135 = arith.constant 0 : index
    %96 = vector.load %arg11[%c3_133, %c0_134, %c0_135] : memref<4x16x128xf32, #tpu.memory_space<vmem>>, vector<1x16x128xf32>
    %97 = vector.shape_cast %96 : vector<1x16x128xf32> to vector<16x128xf32>
    %98 = vector.shape_cast %95 : vector<16x128xf32> to vector<1x16x128xf32>
    tpu.vector_store %arg11[%c3_133, %c0_134, %c0_135], %98 {strides = array<i32>} : memref<4x16x128xf32, #tpu.memory_space<vmem>>, vector<1x16x128xf32>,
    %c55 = arith.constant 55 : index
    %c0_136 = arith.constant 0 : index
    %99 = vector.load %arg17[%c55, %c0_136] : memref<74x128xf32, #tpu.memory_space<vmem>>, vector<16x128xf32>
    tpu.vector_store %arg17[%c55, %c0_136], %95 {strides = array<i32>} : memref<74x128xf32, #tpu.memory_space<vmem>>, vector<16x128xf32>,
    %c0_137 = arith.constant 0 : index
    %c0_138 = arith.constant 0 : index
    %100 = tpu.strided_load %arg17[%c0_137, %c0_138] {strides = array<i32: 2, 1>} : memref<74x128xf32, #tpu.memory_space<vmem>>, vector<36x128xf32>
    %101 = arith.truncf %100 : vector<36x128xf32> to vector<36x128xbf16>
    %c0_139 = arith.constant 0 : index
    %c0_140 = arith.constant 0 : index
    %c0_141 = arith.constant 0 : index
    %102 = vector.load %arg4[%c0_139, %c0_140, %c0_141] : memref<3x128x128xbf16, #tpu.memory_space<vmem>>, vector<1x128x128xbf16>
    %103 = vector.shape_cast %102 : vector<1x128x128xbf16> to vector<128x128xbf16>
    %cst_142 = arith.constant dense<0.000000e+00> : vector<36x128xf32>
    %104 = tpu.matmul %101, %103, %cst_142 {dimension_numbers = #tpu.dot_dimension_numbers<[1], [0], [0], [1], [0, 0, 1, 1], [], []>} : vector<36x128xbf16>, vector<128x128xbf16>, vector<36x128xf32> -> vector<36x128xf32>
    %c1_143 = arith.constant 1 : index
    %c0_144 = arith.constant 0 : index
    %105 = tpu.strided_load %arg17[%c1_143, %c0_144] {strides = array<i32: 2, 1>} : memref<74x128xf32, #tpu.memory_space<vmem>>, vector<36x128xf32>
    %106 = arith.truncf %105 : vector<36x128xf32> to vector<36x128xbf16>
    %c1_145 = arith.constant 1 : index
    %c0_146 = arith.constant 0 : index
    %c0_147 = arith.constant 0 : index
    %107 = vector.load %arg4[%c1_145, %c0_146, %c0_147] : memref<3x128x128xbf16, #tpu.memory_space<vmem>>, vector<1x128x128xbf16>
    %108 = vector.shape_cast %107 : vector<1x128x128xbf16> to vector<128x128xbf16>
    %cst_148 = arith.constant dense<0.000000e+00> : vector<36x128xf32>
    %109 = tpu.matmul %106, %108, %cst_148 {dimension_numbers = #tpu.dot_dimension_numbers<[1], [0], [0], [1], [0, 0, 1, 1], [], []>} : vector<36x128xbf16>, vector<128x128xbf16>, vector<36x128xf32> -> vector<36x128xf32>
    %110 = arith.addf %104, %109 : vector<36x128xf32>
    %c2_149 = arith.constant 2 : index
    %c0_150 = arith.constant 0 : index
    %111 = tpu.strided_load %arg17[%c2_149, %c0_150] {strides = array<i32: 2, 1>} : memref<74x128xf32, #tpu.memory_space<vmem>>, vector<36x128xf32>
    %112 = arith.truncf %111 : vector<36x128xf32> to vector<36x128xbf16>
    %c2_151 = arith.constant 2 : index
    %c0_152 = arith.constant 0 : index
    %c0_153 = arith.constant 0 : index
    %113 = vector.load %arg4[%c2_151, %c0_152, %c0_153] : memref<3x128x128xbf16, #tpu.memory_space<vmem>>, vector<1x128x128xbf16>
    %114 = vector.shape_cast %113 : vector<1x128x128xbf16> to vector<128x128xbf16>
    %cst_154 = arith.constant dense<0.000000e+00> : vector<36x128xf32>
    %115 = tpu.matmul %112, %114, %cst_154 {dimension_numbers = #tpu.dot_dimension_numbers<[1], [0], [0], [1], [0, 0, 1, 1], [], []>} : vector<36x128xbf16>, vector<128x128xbf16>, vector<36x128xf32> -> vector<36x128xf32>
    %116 = arith.addf %110, %115 : vector<36x128xf32>
    %c0_155 = arith.constant 0 : index
    %c0_156 = arith.constant 0 : index
    %117 = vector.load %arg8[%c0_155, %c0_156] : memref<1x128xf32, #tpu.memory_space<vmem>>, vector<1x128xf32>
    %118 = vector.broadcast %117 : vector<1x128xf32> to vector<36x128xf32>
    %119 = arith.addf %116, %118 : vector<36x128xf32>
    %cst_157 = arith.constant 0.000000e+00 : f32
    %120 = vector.broadcast %cst_157 : f32 to vector<36x128xf32>
    %121 = arith.cmpf ogt, %119, %120 : vector<36x128xf32>
    %cst_158 = arith.constant 2.000000e-01 : f32
    %122 = vector.broadcast %cst_158 : f32 to vector<36x128xf32>
    %123 = arith.mulf %122, %119 : vector<36x128xf32>
    %124 = arith.select %121, %119, %123 : vector<36x128xi1>, vector<36x128xf32>
    %125 = vector.extract_strided_slice %124 {offsets = [0, 0], sizes = [8, 128], strides = [1, 1]} : vector<36x128xf32> to vector<8x128xf32>
    %c0_159 = arith.constant 0 : index
    %c0_160 = arith.constant 0 : index
    %c0_161 = arith.constant 0 : index
    %126 = vector.load %arg12[%c0_159, %c0_160, %c0_161] : memref<4x8x128xf32, #tpu.memory_space<vmem>>, vector<1x8x128xf32>
    %127 = vector.shape_cast %126 : vector<1x8x128xf32> to vector<8x128xf32>
    %128 = vector.shape_cast %125 : vector<8x128xf32> to vector<1x8x128xf32>
    tpu.vector_store %arg12[%c0_159, %c0_160, %c0_161], %128 {strides = array<i32>} : memref<4x8x128xf32, #tpu.memory_space<vmem>>, vector<1x8x128xf32>,
    %c1_162 = arith.constant 1 : index
    %c0_163 = arith.constant 0 : index
    %129 = vector.load %arg18[%c1_162, %c0_163] : memref<42x128xf32, #tpu.memory_space<vmem>>, vector<8x128xf32>
    tpu.vector_store %arg18[%c1_162, %c0_163], %125 {strides = array<i32>} : memref<42x128xf32, #tpu.memory_space<vmem>>, vector<8x128xf32>,
    %130 = vector.extract_strided_slice %124 {offsets = [9, 0], sizes = [8, 128], strides = [1, 1]} : vector<36x128xf32> to vector<8x128xf32>
    %c1_164 = arith.constant 1 : index
    %c0_165 = arith.constant 0 : index
    %c0_166 = arith.constant 0 : index
    %131 = vector.load %arg12[%c1_164, %c0_165, %c0_166] : memref<4x8x128xf32, #tpu.memory_space<vmem>>, vector<1x8x128xf32>
    %132 = vector.shape_cast %131 : vector<1x8x128xf32> to vector<8x128xf32>
    %133 = vector.shape_cast %130 : vector<8x128xf32> to vector<1x8x128xf32>
    tpu.vector_store %arg12[%c1_164, %c0_165, %c0_166], %133 {strides = array<i32>} : memref<4x8x128xf32, #tpu.memory_space<vmem>>, vector<1x8x128xf32>,
    %c11 = arith.constant 11 : index
    %c0_167 = arith.constant 0 : index
    %134 = vector.load %arg18[%c11, %c0_167] : memref<42x128xf32, #tpu.memory_space<vmem>>, vector<8x128xf32>
    tpu.vector_store %arg18[%c11, %c0_167], %130 {strides = array<i32>} : memref<42x128xf32, #tpu.memory_space<vmem>>, vector<8x128xf32>,
    %135 = vector.extract_strided_slice %124 {offsets = [18, 0], sizes = [8, 128], strides = [1, 1]} : vector<36x128xf32> to vector<8x128xf32>
    %c2_168 = arith.constant 2 : index
    %c0_169 = arith.constant 0 : index
    %c0_170 = arith.constant 0 : index
    %136 = vector.load %arg12[%c2_168, %c0_169, %c0_170] : memref<4x8x128xf32, #tpu.memory_space<vmem>>, vector<1x8x128xf32>
    %137 = vector.shape_cast %136 : vector<1x8x128xf32> to vector<8x128xf32>
    %138 = vector.shape_cast %135 : vector<8x128xf32> to vector<1x8x128xf32>
    tpu.vector_store %arg12[%c2_168, %c0_169, %c0_170], %138 {strides = array<i32>} : memref<4x8x128xf32, #tpu.memory_space<vmem>>, vector<1x8x128xf32>,
    %c21 = arith.constant 21 : index
    %c0_171 = arith.constant 0 : index
    %139 = vector.load %arg18[%c21, %c0_171] : memref<42x128xf32, #tpu.memory_space<vmem>>, vector<8x128xf32>
    tpu.vector_store %arg18[%c21, %c0_171], %135 {strides = array<i32>} : memref<42x128xf32, #tpu.memory_space<vmem>>, vector<8x128xf32>,
    %140 = vector.extract_strided_slice %124 {offsets = [27, 0], sizes = [8, 128], strides = [1, 1]} : vector<36x128xf32> to vector<8x128xf32>
    %c3_172 = arith.constant 3 : index
    %c0_173 = arith.constant 0 : index
    %c0_174 = arith.constant 0 : index
    %141 = vector.load %arg12[%c3_172, %c0_173, %c0_174] : memref<4x8x128xf32, #tpu.memory_space<vmem>>, vector<1x8x128xf32>
    %142 = vector.shape_cast %141 : vector<1x8x128xf32> to vector<8x128xf32>
    %143 = vector.shape_cast %140 : vector<8x128xf32> to vector<1x8x128xf32>
    tpu.vector_store %arg12[%c3_172, %c0_173, %c0_174], %143 {strides = array<i32>} : memref<4x8x128xf32, #tpu.memory_space<vmem>>, vector<1x8x128xf32>,
    %c31 = arith.constant 31 : index
    %c0_175 = arith.constant 0 : index
    %144 = vector.load %arg18[%c31, %c0_175] : memref<42x128xf32, #tpu.memory_space<vmem>>, vector<8x128xf32>
    tpu.vector_store %arg18[%c31, %c0_175], %140 {strides = array<i32>} : memref<42x128xf32, #tpu.memory_space<vmem>>, vector<8x128xf32>,
    %c0_176 = arith.constant 0 : index
    %c0_177 = arith.constant 0 : index
    %145 = tpu.strided_load %arg18[%c0_176, %c0_177] {strides = array<i32: 2, 1>} : memref<42x128xf32, #tpu.memory_space<vmem>>, vector<20x128xf32>
    %146 = arith.truncf %145 : vector<20x128xf32> to vector<20x128xbf16>
    %c0_178 = arith.constant 0 : index
    %c0_179 = arith.constant 0 : index
    %c0_180 = arith.constant 0 : index
    %147 = vector.load %arg5[%c0_178, %c0_179, %c0_180] : memref<3x128x128xbf16, #tpu.memory_space<vmem>>, vector<1x128x128xbf16>
    %148 = vector.shape_cast %147 : vector<1x128x128xbf16> to vector<128x128xbf16>
    %cst_181 = arith.constant dense<0.000000e+00> : vector<20x128xf32>
    %149 = tpu.matmul %146, %148, %cst_181 {dimension_numbers = #tpu.dot_dimension_numbers<[1], [0], [0], [1], [0, 0, 1, 1], [], []>} : vector<20x128xbf16>, vector<128x128xbf16>, vector<20x128xf32> -> vector<20x128xf32>
    %c1_182 = arith.constant 1 : index
    %c0_183 = arith.constant 0 : index
    %150 = tpu.strided_load %arg18[%c1_182, %c0_183] {strides = array<i32: 2, 1>} : memref<42x128xf32, #tpu.memory_space<vmem>>, vector<20x128xf32>
    %151 = arith.truncf %150 : vector<20x128xf32> to vector<20x128xbf16>
    %c1_184 = arith.constant 1 : index
    %c0_185 = arith.constant 0 : index
    %c0_186 = arith.constant 0 : index
    %152 = vector.load %arg5[%c1_184, %c0_185, %c0_186] : memref<3x128x128xbf16, #tpu.memory_space<vmem>>, vector<1x128x128xbf16>
    %153 = vector.shape_cast %152 : vector<1x128x128xbf16> to vector<128x128xbf16>
    %cst_187 = arith.constant dense<0.000000e+00> : vector<20x128xf32>
    %154 = tpu.matmul %151, %153, %cst_187 {dimension_numbers = #tpu.dot_dimension_numbers<[1], [0], [0], [1], [0, 0, 1, 1], [], []>} : vector<20x128xbf16>, vector<128x128xbf16>, vector<20x128xf32> -> vector<20x128xf32>
    %155 = arith.addf %149, %154 : vector<20x128xf32>
    %c2_188 = arith.constant 2 : index
    %c0_189 = arith.constant 0 : index
    %156 = tpu.strided_load %arg18[%c2_188, %c0_189] {strides = array<i32: 2, 1>} : memref<42x128xf32, #tpu.memory_space<vmem>>, vector<20x128xf32>
    %157 = arith.truncf %156 : vector<20x128xf32> to vector<20x128xbf16>
    %c2_190 = arith.constant 2 : index
    %c0_191 = arith.constant 0 : index
    %c0_192 = arith.constant 0 : index
    %158 = vector.load %arg5[%c2_190, %c0_191, %c0_192] : memref<3x128x128xbf16, #tpu.memory_space<vmem>>, vector<1x128x128xbf16>
    %159 = vector.shape_cast %158 : vector<1x128x128xbf16> to vector<128x128xbf16>
    %cst_193 = arith.constant dense<0.000000e+00> : vector<20x128xf32>
    %160 = tpu.matmul %157, %159, %cst_193 {dimension_numbers = #tpu.dot_dimension_numbers<[1], [0], [0], [1], [0, 0, 1, 1], [], []>} : vector<20x128xbf16>, vector<128x128xbf16>, vector<20x128xf32> -> vector<20x128xf32>
    %161 = arith.addf %155, %160 : vector<20x128xf32>
    %c0_194 = arith.constant 0 : index
    %c0_195 = arith.constant 0 : index
    %162 = vector.load %arg9[%c0_194, %c0_195] : memref<1x128xf32, #tpu.memory_space<vmem>>, vector<1x128xf32>
    %163 = vector.broadcast %162 : vector<1x128xf32> to vector<20x128xf32>
    %164 = arith.addf %161, %163 : vector<20x128xf32>
    %cst_196 = arith.constant 0.000000e+00 : f32
    %165 = vector.broadcast %cst_196 : f32 to vector<20x128xf32>
    %166 = arith.cmpf ogt, %164, %165 : vector<20x128xf32>
    %cst_197 = arith.constant 2.000000e-01 : f32
    %167 = vector.broadcast %cst_197 : f32 to vector<20x128xf32>
    %168 = arith.mulf %167, %164 : vector<20x128xf32>
    %169 = arith.select %166, %164, %168 : vector<20x128xi1>, vector<20x128xf32>
    %170 = vector.extract_strided_slice %169 {offsets = [0, 0], sizes = [4, 128], strides = [1, 1]} : vector<20x128xf32> to vector<4x128xf32>
    %c0_198 = arith.constant 0 : index
    %c0_199 = arith.constant 0 : index
    %c0_200 = arith.constant 0 : index
    %171 = vector.load %arg13[%c0_198, %c0_199, %c0_200] : memref<4x4x128xf32, #tpu.memory_space<vmem>>, vector<1x4x128xf32>
    %172 = vector.shape_cast %171 : vector<1x4x128xf32> to vector<4x128xf32>
    %173 = vector.shape_cast %170 : vector<4x128xf32> to vector<1x4x128xf32>
    tpu.vector_store %arg13[%c0_198, %c0_199, %c0_200], %173 {strides = array<i32>} : memref<4x4x128xf32, #tpu.memory_space<vmem>>, vector<1x4x128xf32>,
    %c1_201 = arith.constant 1 : index
    %c0_202 = arith.constant 0 : index
    %174 = vector.load %arg19[%c1_201, %c0_202] : memref<26x128xf32, #tpu.memory_space<vmem>>, vector<4x128xf32>
    tpu.vector_store %arg19[%c1_201, %c0_202], %170 {strides = array<i32>} : memref<26x128xf32, #tpu.memory_space<vmem>>, vector<4x128xf32>,
    %175 = vector.extract_strided_slice %169 {offsets = [5, 0], sizes = [4, 128], strides = [1, 1]} : vector<20x128xf32> to vector<4x128xf32>
    %c1_203 = arith.constant 1 : index
    %c0_204 = arith.constant 0 : index
    %c0_205 = arith.constant 0 : index
    %176 = vector.load %arg13[%c1_203, %c0_204, %c0_205] : memref<4x4x128xf32, #tpu.memory_space<vmem>>, vector<1x4x128xf32>
    %177 = vector.shape_cast %176 : vector<1x4x128xf32> to vector<4x128xf32>
    %178 = vector.shape_cast %175 : vector<4x128xf32> to vector<1x4x128xf32>
    tpu.vector_store %arg13[%c1_203, %c0_204, %c0_205], %178 {strides = array<i32>} : memref<4x4x128xf32, #tpu.memory_space<vmem>>, vector<1x4x128xf32>,
    %c7 = arith.constant 7 : index
    %c0_206 = arith.constant 0 : index
    %179 = vector.load %arg19[%c7, %c0_206] : memref<26x128xf32, #tpu.memory_space<vmem>>, vector<4x128xf32>
    tpu.vector_store %arg19[%c7, %c0_206], %175 {strides = array<i32>} : memref<26x128xf32, #tpu.memory_space<vmem>>, vector<4x128xf32>,
    %180 = vector.extract_strided_slice %169 {offsets = [10, 0], sizes = [4, 128], strides = [1, 1]} : vector<20x128xf32> to vector<4x128xf32>
    %c2_207 = arith.constant 2 : index
    %c0_208 = arith.constant 0 : index
    %c0_209 = arith.constant 0 : index
    %181 = vector.load %arg13[%c2_207, %c0_208, %c0_209] : memref<4x4x128xf32, #tpu.memory_space<vmem>>, vector<1x4x128xf32>
    %182 = vector.shape_cast %181 : vector<1x4x128xf32> to vector<4x128xf32>
    %183 = vector.shape_cast %180 : vector<4x128xf32> to vector<1x4x128xf32>
    tpu.vector_store %arg13[%c2_207, %c0_208, %c0_209], %183 {strides = array<i32>} : memref<4x4x128xf32, #tpu.memory_space<vmem>>, vector<1x4x128xf32>,
    %c13 = arith.constant 13 : index
    %c0_210 = arith.constant 0 : index
    %184 = vector.load %arg19[%c13, %c0_210] : memref<26x128xf32, #tpu.memory_space<vmem>>, vector<4x128xf32>
    tpu.vector_store %arg19[%c13, %c0_210], %180 {strides = array<i32>} : memref<26x128xf32, #tpu.memory_space<vmem>>, vector<4x128xf32>,
    %185 = vector.extract_strided_slice %169 {offsets = [15, 0], sizes = [4, 128], strides = [1, 1]} : vector<20x128xf32> to vector<4x128xf32>
    %c3_211 = arith.constant 3 : index
    %c0_212 = arith.constant 0 : index
    %c0_213 = arith.constant 0 : index
    %186 = vector.load %arg13[%c3_211, %c0_212, %c0_213] : memref<4x4x128xf32, #tpu.memory_space<vmem>>, vector<1x4x128xf32>
    %187 = vector.shape_cast %186 : vector<1x4x128xf32> to vector<4x128xf32>
    %188 = vector.shape_cast %185 : vector<4x128xf32> to vector<1x4x128xf32>
    tpu.vector_store %arg13[%c3_211, %c0_212, %c0_213], %188 {strides = array<i32>} : memref<4x4x128xf32, #tpu.memory_space<vmem>>, vector<1x4x128xf32>,
    %c19_214 = arith.constant 19 : index
    %c0_215 = arith.constant 0 : index
    %189 = vector.load %arg19[%c19_214, %c0_215] : memref<26x128xf32, #tpu.memory_space<vmem>>, vector<4x128xf32>
    tpu.vector_store %arg19[%c19_214, %c0_215], %185 {strides = array<i32>} : memref<26x128xf32, #tpu.memory_space<vmem>>, vector<4x128xf32>,
    %c0_216 = arith.constant 0 : index
    %c0_217 = arith.constant 0 : index
    %190 = tpu.strided_load %arg19[%c0_216, %c0_217] {strides = array<i32: 2, 1>} : memref<26x128xf32, #tpu.memory_space<vmem>>, vector<12x128xf32>
    %191 = arith.truncf %190 : vector<12x128xf32> to vector<12x128xbf16>
    %c0_218 = arith.constant 0 : index
    %c0_219 = arith.constant 0 : index
    %c0_220 = arith.constant 0 : index
    %192 = vector.load %arg6[%c0_218, %c0_219, %c0_220] : memref<3x128x128xbf16, #tpu.memory_space<vmem>>, vector<1x128x128xbf16>
    %193 = vector.shape_cast %192 : vector<1x128x128xbf16> to vector<128x128xbf16>
    %cst_221 = arith.constant dense<0.000000e+00> : vector<12x128xf32>
    %194 = tpu.matmul %191, %193, %cst_221 {dimension_numbers = #tpu.dot_dimension_numbers<[1], [0], [0], [1], [0, 0, 1, 1], [], []>} : vector<12x128xbf16>, vector<128x128xbf16>, vector<12x128xf32> -> vector<12x128xf32>
    %c1_222 = arith.constant 1 : index
    %c0_223 = arith.constant 0 : index
    %195 = tpu.strided_load %arg19[%c1_222, %c0_223] {strides = array<i32: 2, 1>} : memref<26x128xf32, #tpu.memory_space<vmem>>, vector<12x128xf32>
    %196 = arith.truncf %195 : vector<12x128xf32> to vector<12x128xbf16>
    %c1_224 = arith.constant 1 : index
    %c0_225 = arith.constant 0 : index
    %c0_226 = arith.constant 0 : index
    %197 = vector.load %arg6[%c1_224, %c0_225, %c0_226] : memref<3x128x128xbf16, #tpu.memory_space<vmem>>, vector<1x128x128xbf16>
    %198 = vector.shape_cast %197 : vector<1x128x128xbf16> to vector<128x128xbf16>
    %cst_227 = arith.constant dense<0.000000e+00> : vector<12x128xf32>
    %199 = tpu.matmul %196, %198, %cst_227 {dimension_numbers = #tpu.dot_dimension_numbers<[1], [0], [0], [1], [0, 0, 1, 1], [], []>} : vector<12x128xbf16>, vector<128x128xbf16>, vector<12x128xf32> -> vector<12x128xf32>
    %200 = arith.addf %194, %199 : vector<12x128xf32>
    %c2_228 = arith.constant 2 : index
    %c0_229 = arith.constant 0 : index
    %201 = tpu.strided_load %arg19[%c2_228, %c0_229] {strides = array<i32: 2, 1>} : memref<26x128xf32, #tpu.memory_space<vmem>>, vector<12x128xf32>
    %202 = arith.truncf %201 : vector<12x128xf32> to vector<12x128xbf16>
    %c2_230 = arith.constant 2 : index
    %c0_231 = arith.constant 0 : index
    %c0_232 = arith.constant 0 : index
    %203 = vector.load %arg6[%c2_230, %c0_231, %c0_232] : memref<3x128x128xbf16, #tpu.memory_space<vmem>>, vector<1x128x128xbf16>
    %204 = vector.shape_cast %203 : vector<1x128x128xbf16> to vector<128x128xbf16>
    %cst_233 = arith.constant dense<0.000000e+00> : vector<12x128xf32>
    %205 = tpu.matmul %202, %204, %cst_233 {dimension_numbers = #tpu.dot_dimension_numbers<[1], [0], [0], [1], [0, 0, 1, 1], [], []>} : vector<12x128xbf16>, vector<128x128xbf16>, vector<12x128xf32> -> vector<12x128xf32>
    %206 = arith.addf %200, %205 : vector<12x128xf32>
    %c0_234 = arith.constant 0 : index
    %c0_235 = arith.constant 0 : index
    %207 = vector.load %arg10[%c0_234, %c0_235] : memref<1x128xf32, #tpu.memory_space<vmem>>, vector<1x128xf32>
    %208 = vector.broadcast %207 : vector<1x128xf32> to vector<12x128xf32>
    %209 = arith.addf %206, %208 : vector<12x128xf32>
    %cst_236 = arith.constant 0.000000e+00 : f32
    %210 = vector.broadcast %cst_236 : f32 to vector<12x128xf32>
    %211 = arith.cmpf ogt, %209, %210 : vector<12x128xf32>
    %cst_237 = arith.constant 2.000000e-01 : f32
    %212 = vector.broadcast %cst_237 : f32 to vector<12x128xf32>
    %213 = arith.mulf %212, %209 : vector<12x128xf32>
    %214 = arith.select %211, %209, %213 : vector<12x128xi1>, vector<12x128xf32>
    %215 = vector.extract_strided_slice %214 {offsets = [0, 0], sizes = [2, 128], strides = [1, 1]} : vector<12x128xf32> to vector<2x128xf32>
    %c0_238 = arith.constant 0 : index
    %c0_239 = arith.constant 0 : index
    %c0_240 = arith.constant 0 : index
    %216 = vector.load %arg14[%c0_238, %c0_239, %c0_240] : memref<4x2x128xf32, #tpu.memory_space<vmem>>, vector<1x2x128xf32>
    %217 = vector.shape_cast %216 : vector<1x2x128xf32> to vector<2x128xf32>
    %218 = vector.shape_cast %215 : vector<2x128xf32> to vector<1x2x128xf32>
    tpu.vector_store %arg14[%c0_238, %c0_239, %c0_240], %218 {strides = array<i32>} : memref<4x2x128xf32, #tpu.memory_space<vmem>>, vector<1x2x128xf32>,
    %c1_241 = arith.constant 1 : index
    %c0_242 = arith.constant 0 : index
    %219 = vector.load %arg20[%c1_241, %c0_242] : memref<18x128xf32, #tpu.memory_space<vmem>>, vector<2x128xf32>
    tpu.vector_store %arg20[%c1_241, %c0_242], %215 {strides = array<i32>} : memref<18x128xf32, #tpu.memory_space<vmem>>, vector<2x128xf32>,
    %220 = vector.extract_strided_slice %214 {offsets = [3, 0], sizes = [2, 128], strides = [1, 1]} : vector<12x128xf32> to vector<2x128xf32>
    %c1_243 = arith.constant 1 : index
    %c0_244 = arith.constant 0 : index
    %c0_245 = arith.constant 0 : index
    %221 = vector.load %arg14[%c1_243, %c0_244, %c0_245] : memref<4x2x128xf32, #tpu.memory_space<vmem>>, vector<1x2x128xf32>
    %222 = vector.shape_cast %221 : vector<1x2x128xf32> to vector<2x128xf32>
    %223 = vector.shape_cast %220 : vector<2x128xf32> to vector<1x2x128xf32>
    tpu.vector_store %arg14[%c1_243, %c0_244, %c0_245], %223 {strides = array<i32>} : memref<4x2x128xf32, #tpu.memory_space<vmem>>, vector<1x2x128xf32>,
    %c5 = arith.constant 5 : index
    %c0_246 = arith.constant 0 : index
    %224 = vector.load %arg20[%c5, %c0_246] : memref<18x128xf32, #tpu.memory_space<vmem>>, vector<2x128xf32>
    tpu.vector_store %arg20[%c5, %c0_246], %220 {strides = array<i32>} : memref<18x128xf32, #tpu.memory_space<vmem>>, vector<2x128xf32>,
    %225 = vector.extract_strided_slice %214 {offsets = [6, 0], sizes = [2, 128], strides = [1, 1]} : vector<12x128xf32> to vector<2x128xf32>
    %c2_247 = arith.constant 2 : index
    %c0_248 = arith.constant 0 : index
    %c0_249 = arith.constant 0 : index
    %226 = vector.load %arg14[%c2_247, %c0_248, %c0_249] : memref<4x2x128xf32, #tpu.memory_space<vmem>>, vector<1x2x128xf32>
    %227 = vector.shape_cast %226 : vector<1x2x128xf32> to vector<2x128xf32>
    %228 = vector.shape_cast %225 : vector<2x128xf32> to vector<1x2x128xf32>
    tpu.vector_store %arg14[%c2_247, %c0_248, %c0_249], %228 {strides = array<i32>} : memref<4x2x128xf32, #tpu.memory_space<vmem>>, vector<1x2x128xf32>,
    %c9 = arith.constant 9 : index
    %c0_250 = arith.constant 0 : index
    %229 = vector.load %arg20[%c9, %c0_250] : memref<18x128xf32, #tpu.memory_space<vmem>>, vector<2x128xf32>
    tpu.vector_store %arg20[%c9, %c0_250], %225 {strides = array<i32>} : memref<18x128xf32, #tpu.memory_space<vmem>>, vector<2x128xf32>,
    %230 = vector.extract_strided_slice %214 {offsets = [9, 0], sizes = [2, 128], strides = [1, 1]} : vector<12x128xf32> to vector<2x128xf32>
    %c3_251 = arith.constant 3 : index
    %c0_252 = arith.constant 0 : index
    %c0_253 = arith.constant 0 : index
    %231 = vector.load %arg14[%c3_251, %c0_252, %c0_253] : memref<4x2x128xf32, #tpu.memory_space<vmem>>, vector<1x2x128xf32>
    %232 = vector.shape_cast %231 : vector<1x2x128xf32> to vector<2x128xf32>
    %233 = vector.shape_cast %230 : vector<2x128xf32> to vector<1x2x128xf32>
    tpu.vector_store %arg14[%c3_251, %c0_252, %c0_253], %233 {strides = array<i32>} : memref<4x2x128xf32, #tpu.memory_space<vmem>>, vector<1x2x128xf32>,
    %c13_254 = arith.constant 13 : index
    %c0_255 = arith.constant 0 : index
    %234 = vector.load %arg20[%c13_254, %c0_255] : memref<18x128xf32, #tpu.memory_space<vmem>>, vector<2x128xf32>
    tpu.vector_store %arg20[%c13_254, %c0_255], %230 {strides = array<i32>} : memref<18x128xf32, #tpu.memory_space<vmem>>, vector<2x128xf32>,
    %c0_256 = arith.constant 0 : index
    %c0_257 = arith.constant 0 : index
    %235 = vector.load %arg20[%c0_256, %c0_257] : memref<18x128xf32, #tpu.memory_space<vmem>>, vector<16x128xf32>
    %236 = arith.truncf %235 : vector<16x128xf32> to vector<16x128xbf16>
    %c0_258 = arith.constant 0 : index
    %c0_259 = arith.constant 0 : index
    %c0_260 = arith.constant 0 : index
    %237 = vector.load %arg7[%c0_258, %c0_259, %c0_260] : memref<3x128x128xbf16, #tpu.memory_space<vmem>>, vector<1x128x128xbf16>
    %238 = vector.shape_cast %237 : vector<1x128x128xbf16> to vector<128x128xbf16>
    %cst_261 = arith.constant dense<0.000000e+00> : vector<16x128xf32>
    %239 = tpu.matmul %236, %238, %cst_261 {dimension_numbers = #tpu.dot_dimension_numbers<[1], [0], [0], [1], [0, 0, 1, 1], [], []>} : vector<16x128xbf16>, vector<128x128xbf16>, vector<16x128xf32> -> vector<16x128xf32>
    %c1_262 = arith.constant 1 : index
    %c0_263 = arith.constant 0 : index
    %240 = vector.load %arg20[%c1_262, %c0_263] : memref<18x128xf32, #tpu.memory_space<vmem>>, vector<16x128xf32>
    %241 = arith.truncf %240 : vector<16x128xf32> to vector<16x128xbf16>
    %c1_264 = arith.constant 1 : index
    %c0_265 = arith.constant 0 : index
    %c0_266 = arith.constant 0 : index
    %242 = vector.load %arg7[%c1_264, %c0_265, %c0_266] : memref<3x128x128xbf16, #tpu.memory_space<vmem>>, vector<1x128x128xbf16>
    %243 = vector.shape_cast %242 : vector<1x128x128xbf16> to vector<128x128xbf16>
    %cst_267 = arith.constant dense<0.000000e+00> : vector<16x128xf32>
    %244 = tpu.matmul %241, %243, %cst_267 {dimension_numbers = #tpu.dot_dimension_numbers<[1], [0], [0], [1], [0, 0, 1, 1], [], []>} : vector<16x128xbf16>, vector<128x128xbf16>, vector<16x128xf32> -> vector<16x128xf32>
    %245 = arith.addf %239, %244 : vector<16x128xf32>
    %c2_268 = arith.constant 2 : index
    %c0_269 = arith.constant 0 : index
    %246 = vector.load %arg20[%c2_268, %c0_269] : memref<18x128xf32, #tpu.memory_space<vmem>>, vector<16x128xf32>
    %247 = arith.truncf %246 : vector<16x128xf32> to vector<16x128xbf16>
    %c2_270 = arith.constant 2 : index
    %c0_271 = arith.constant 0 : index
    %c0_272 = arith.constant 0 : index
    %248 = vector.load %arg7[%c2_270, %c0_271, %c0_272] : memref<3x128x128xbf16, #tpu.memory_space<vmem>>, vector<1x128x128xbf16>
    %249 = vector.shape_cast %248 : vector<1x128x128xbf16> to vector<128x128xbf16>
    %cst_273 = arith.constant dense<0.000000e+00> : vector<16x128xf32>
    %250 = tpu.matmul %247, %249, %cst_273 {dimension_numbers = #tpu.dot_dimension_numbers<[1], [0], [0], [1], [0, 0, 1, 1], [], []>} : vector<16x128xbf16>, vector<128x128xbf16>, vector<16x128xf32> -> vector<16x128xf32>
    %251 = arith.addf %245, %250 : vector<16x128xf32>
    %cst_274 = arith.constant 0.000000e+00 : f32
    %252 = vector.broadcast %cst_274 : f32 to vector<16x128xf32>
    %253 = arith.subf %252, %251 : vector<16x128xf32>
    %254 = math.exp %253 : vector<16x128xf32>
    %cst_275 = arith.constant 1.000000e+00 : f32
    %255 = vector.broadcast %cst_275 : f32 to vector<16x128xf32>
    %256 = arith.addf %255, %254 : vector<16x128xf32>
    %cst_276 = arith.constant 1.000000e+00 : f32
    %257 = vector.broadcast %cst_276 : f32 to vector<16x128xf32>
    %258 = arith.divf %257, %256 : vector<16x128xf32>
    %259 = vector.extract_strided_slice %258 {offsets = [0, 0], sizes = [2, 128], strides = [1, 1]} : vector<16x128xf32> to vector<2x128xf32>
    %c0_277 = arith.constant 0 : index
    %c0_278 = arith.constant 0 : index
    %c0_279 = arith.constant 0 : index
    %260 = vector.load %arg15[%c0_277, %c0_278, %c0_279] : memref<4x2x128xf32, #tpu.memory_space<vmem>>, vector<1x2x128xf32>
    %261 = vector.shape_cast %260 : vector<1x2x128xf32> to vector<2x128xf32>
    %262 = vector.shape_cast %259 : vector<2x128xf32> to vector<1x2x128xf32>
    tpu.vector_store %arg15[%c0_277, %c0_278, %c0_279], %262 {strides = array<i32>} : memref<4x2x128xf32, #tpu.memory_space<vmem>>, vector<1x2x128xf32>,
    %263 = vector.extract_strided_slice %258 {offsets = [4, 0], sizes = [2, 128], strides = [1, 1]} : vector<16x128xf32> to vector<2x128xf32>
    %c1_280 = arith.constant 1 : index
    %c0_281 = arith.constant 0 : index
    %c0_282 = arith.constant 0 : index
    %264 = vector.load %arg15[%c1_280, %c0_281, %c0_282] : memref<4x2x128xf32, #tpu.memory_space<vmem>>, vector<1x2x128xf32>
    %265 = vector.shape_cast %264 : vector<1x2x128xf32> to vector<2x128xf32>
    %266 = vector.shape_cast %263 : vector<2x128xf32> to vector<1x2x128xf32>
    tpu.vector_store %arg15[%c1_280, %c0_281, %c0_282], %266 {strides = array<i32>} : memref<4x2x128xf32, #tpu.memory_space<vmem>>, vector<1x2x128xf32>,
    %267 = vector.extract_strided_slice %258 {offsets = [8, 0], sizes = [2, 128], strides = [1, 1]} : vector<16x128xf32> to vector<2x128xf32>
    %c2_283 = arith.constant 2 : index
    %c0_284 = arith.constant 0 : index
    %c0_285 = arith.constant 0 : index
    %268 = vector.load %arg15[%c2_283, %c0_284, %c0_285] : memref<4x2x128xf32, #tpu.memory_space<vmem>>, vector<1x2x128xf32>
    %269 = vector.shape_cast %268 : vector<1x2x128xf32> to vector<2x128xf32>
    %270 = vector.shape_cast %267 : vector<2x128xf32> to vector<1x2x128xf32>
    tpu.vector_store %arg15[%c2_283, %c0_284, %c0_285], %270 {strides = array<i32>} : memref<4x2x128xf32, #tpu.memory_space<vmem>>, vector<1x2x128xf32>,
    %271 = vector.extract_strided_slice %258 {offsets = [12, 0], sizes = [2, 128], strides = [1, 1]} : vector<16x128xf32> to vector<2x128xf32>
    %c3_286 = arith.constant 3 : index
    %c0_287 = arith.constant 0 : index
    %c0_288 = arith.constant 0 : index
    %272 = vector.load %arg15[%c3_286, %c0_287, %c0_288] : memref<4x2x128xf32, #tpu.memory_space<vmem>>, vector<1x2x128xf32>
    %273 = vector.shape_cast %272 : vector<1x2x128xf32> to vector<2x128xf32>
    %274 = vector.shape_cast %271 : vector<2x128xf32> to vector<1x2x128xf32>
    tpu.vector_store %arg15[%c3_286, %c0_287, %c0_288], %274 {strides = array<i32>} : memref<4x2x128xf32, #tpu.memory_space<vmem>>, vector<1x2x128xf32>,
    return
  }
  func.func @transform_0(%arg0: i32) -> (i32, i32, i32, i32) {
    %c0_i32 = arith.constant 0 : i32
    %c0_i32_0 = arith.constant 0 : i32
    %c0_i32_1 = arith.constant 0 : i32
    %c0_i32_2 = arith.constant 0 : i32
    return %arg0, %c0_i32, %c0_i32_0, %c0_i32_1 : i32, i32, i32, i32
  }
  func.func @transform_1(%arg0: i32) -> (i32, i32, i32, i32) {
    %c0_i32 = arith.constant 0 : i32
    %c0_i32_0 = arith.constant 0 : i32
    %c0_i32_1 = arith.constant 0 : i32
    %c0_i32_2 = arith.constant 0 : i32
    return %arg0, %c0_i32, %c0_i32_0, %c0_i32_1 : i32, i32, i32, i32
  }
  func.func @transform_2(%arg0: i32) -> (i32, i32, i32) {
    %c0_i32 = arith.constant 0 : i32
    %c0_i32_0 = arith.constant 0 : i32
    %c0_i32_1 = arith.constant 0 : i32
    %c0_i32_2 = arith.constant 0 : i32
    return %c0_i32, %c0_i32_0, %c0_i32_1 : i32, i32, i32
  }
  func.func @transform_3(%arg0: i32) -> (i32, i32, i32) {
    %c0_i32 = arith.constant 0 : i32
    %c0_i32_0 = arith.constant 0 : i32
    %c0_i32_1 = arith.constant 0 : i32
    %c0_i32_2 = arith.constant 0 : i32
    return %c0_i32, %c0_i32_0, %c0_i32_1 : i32, i32, i32
  }
  func.func @transform_4(%arg0: i32) -> (i32, i32, i32) {
    %c0_i32 = arith.constant 0 : i32
    %c0_i32_0 = arith.constant 0 : i32
    %c0_i32_1 = arith.constant 0 : i32
    %c0_i32_2 = arith.constant 0 : i32
    return %c0_i32, %c0_i32_0, %c0_i32_1 : i32, i32, i32
  }
  func.func @transform_5(%arg0: i32) -> (i32, i32, i32) {
    %c0_i32 = arith.constant 0 : i32
    %c0_i32_0 = arith.constant 0 : i32
    %c0_i32_1 = arith.constant 0 : i32
    %c0_i32_2 = arith.constant 0 : i32
    return %c0_i32, %c0_i32_0, %c0_i32_1 : i32, i32, i32
  }
  func.func @transform_6(%arg0: i32) -> (i32, i32, i32) {
    %c0_i32 = arith.constant 0 : i32
    %c0_i32_0 = arith.constant 0 : i32
    %c0_i32_1 = arith.constant 0 : i32
    %c0_i32_2 = arith.constant 0 : i32
    return %c0_i32, %c0_i32_0, %c0_i32_1 : i32, i32, i32
  }
  func.func @transform_7(%arg0: i32) -> (i32, i32) {
    %c0_i32 = arith.constant 0 : i32
    %c0_i32_0 = arith.constant 0 : i32
    %c0_i32_1 = arith.constant 0 : i32
    return %c0_i32, %c0_i32_0 : i32, i32
  }
  func.func @transform_8(%arg0: i32) -> (i32, i32) {
    %c0_i32 = arith.constant 0 : i32
    %c0_i32_0 = arith.constant 0 : i32
    %c0_i32_1 = arith.constant 0 : i32
    return %c0_i32, %c0_i32_0 : i32, i32
  }
  func.func @transform_9(%arg0: i32) -> (i32, i32) {
    %c0_i32 = arith.constant 0 : i32
    %c0_i32_0 = arith.constant 0 : i32
    %c0_i32_1 = arith.constant 0 : i32
    return %c0_i32, %c0_i32_0 : i32, i32
  }
  func.func @transform_10(%arg0: i32) -> (i32, i32, i32) {
    %c0_i32 = arith.constant 0 : i32
    %c0_i32_0 = arith.constant 0 : i32
    %c0_i32_1 = arith.constant 0 : i32
    return %arg0, %c0_i32, %c0_i32_0 : i32, i32, i32
  }
  func.func @transform_11(%arg0: i32) -> (i32, i32, i32) {
    %c0_i32 = arith.constant 0 : i32
    %c0_i32_0 = arith.constant 0 : i32
    %c0_i32_1 = arith.constant 0 : i32
    return %arg0, %c0_i32, %c0_i32_0 : i32, i32, i32
  }
  func.func @transform_12(%arg0: i32) -> (i32, i32, i32) {
    %c0_i32 = arith.constant 0 : i32
    %c0_i32_0 = arith.constant 0 : i32
    %c0_i32_1 = arith.constant 0 : i32
    return %arg0, %c0_i32, %c0_i32_0 : i32, i32, i32
  }
  func.func @transform_13(%arg0: i32) -> (i32, i32, i32) {
    %c0_i32 = arith.constant 0 : i32
    %c0_i32_0 = arith.constant 0 : i32
    %c0_i32_1 = arith.constant 0 : i32
    return %arg0, %c0_i32, %c0_i32_0 : i32, i32, i32
  }
  func.func @transform_14(%arg0: i32) -> (i32, i32, i32) {
    %c0_i32 = arith.constant 0 : i32
    %c0_i32_0 = arith.constant 0 : i32
    %c0_i32_1 = arith.constant 0 : i32
    return %arg0, %c0_i32, %c0_i32_0 : i32, i32, i32
  }
}

</mosaic_0001>

<llo_original>
// kernel: conditional_discriminator.1
$region0: #{conditional_discriminator.1}
  #allocation0 [shape = 'u32[]', space=smem, size = 0x4, offset = 0x4, fixed_abs, tag = 'smem constant byte address 0x4 - core index']
  #allocation1 [shape = 'u32[72,128]{1,0:T(1,128)}', space=vmem, size = 0x9000, scoped, tag = 'internal scratch']
  #allocation2 [shape = 'f32[138,128]{1,0:T(8,128)}', space=vmem, size = 0x12000, scoped, tag = 'scratch operand']
  #allocation3 [shape = 'f32[74,128]{1,0:T(8,128)}', space=vmem, size = 0xa000, scoped, tag = 'scratch operand']
  #allocation4 [shape = 'f32[42,128]{1,0:T(8,128)}', space=vmem, size = 0x6000, scoped, tag = 'scratch operand']
  #allocation5 [shape = 'f32[26,128]{1,0:T(8,128)}', space=vmem, size = 0x4000, scoped, tag = 'scratch operand']
  #allocation6 [shape = 'f32[18,128]{1,0:T(8,128)}', space=vmem, size = 0x3000, scoped, tag = 'scratch operand']
  %s0 = inlined_call_operand.hbm [shape: f32[8,2,32,32], index: 0, kind: input, shape index: {}]
  %s1 = inlined_call_operand.hbm [shape: f32[8,2,32,32], index: 1, kind: input, shape index: {}]
  %s2 = inlined_call_operand.hbm [shape: bf16[3,128,128], index: 2, kind: input, shape index: {}]
  %s3 = inlined_call_operand.hbm [shape: bf16[3,128,128], index: 3, kind: input, shape index: {}]
  %s4 = inlined_call_operand.hbm [shape: bf16[3,128,128], index: 4, kind: input, shape index: {}]
  %s5 = inlined_call_operand.hbm [shape: bf16[3,128,128], index: 5, kind: input, shape index: {}]
  %s6 = inlined_call_operand.hbm [shape: bf16[3,128,128], index: 6, kind: input, shape index: {}]
  %s7 = inlined_call_operand.vmem [shape: f32[1,128], index: 7, kind: input, shape index: {}]
  %s8 = inlined_call_operand.vmem [shape: f32[1,128], index: 8, kind: input, shape index: {}]
  %s9 = inlined_call_operand.hbm [shape: f32[1,128], index: 9, kind: input, shape index: {}]
  %s10 = inlined_call_operand.vmem [shape: f32[8,16,128], index: 10, kind: output, shape index: {0}]
  %s11 = inlined_call_operand.vmem [shape: f32[8,8,128], index: 11, kind: output, shape index: {1}]
  %s12 = inlined_call_operand.vmem [shape: f32[8,4,128], index: 12, kind: output, shape index: {2}]
  %s13 = inlined_call_operand.vmem [shape: f32[8,2,128], index: 13, kind: output, shape index: {3}]
  %s14 = inlined_call_operand.vmem [shape: f32[8,2,128], index: 14, kind: output, shape index: {4}]
  %15 = xla_tuple %s10, %s11, %s12, %s13, %s14
  %s16 = sld [smem:[#allocation0]]
  $region137: #{conditional_discriminator.1} parent=0
    _
  %s18 = ssub.s32 1, %s16
  %s19 = scalar_select 0, %s18, %s16
  $region1: #{conditional_discriminator.1} parent=0
    #allocation7 [shape = 'u8[262144]{0}', space=vmem, size = 0x40000, scoped, tag = 'input window, operand 0']
    #allocation8 [shape = 's32[2]{0}', space=sflag, size = 0x8, scoped, tag = 'scoped memory for conditional_discriminator.1']
    #allocation9 [shape = 'u8[262144]{0}', space=vmem, size = 0x40000, scoped, tag = 'input window, operand 1']
    #allocation10 [shape = 's32[2]{0}', space=sflag, size = 0x8, scoped, tag = 'scoped memory for conditional_discriminator.1']
    #allocation11 [shape = 'u8[98304]{0}', space=vmem, size = 0x18000, scoped, tag = 'input window, operand 2, single buffered']
    #allocation12 [shape = 'u8[98304]{0}', space=vmem, size = 0x18000, scoped, tag = 'input window, operand 3, single buffered']
    #allocation13 [shape = 's32[1]{0}', space=sflag, size = 0x4, scoped, tag = 'scoped memory for conditional_discriminator.1']
    #allocation14 [shape = 'u8[98304]{0}', space=vmem, size = 0x18000, scoped, tag = 'input window, operand 4, single buffered']
    #allocation15 [shape = 'u8[98304]{0}', space=vmem, size = 0x18000, scoped, tag = 'input window, operand 5, single buffered']
    #allocation16 [shape = 's32[1]{0}', space=sflag, size = 0x4, scoped, tag = 'scoped memory for conditional_discriminator.1']
    #allocation17 [shape = 'u8[98304]{0}', space=vmem, size = 0x18000, scoped, tag = 'input window, operand 6, single buffered']
    #allocation18 [shape = 'u8[512]{0}', space=vmem, size = 0x400, scoped, tag = 'input window, operand 9, single buffered']
    #allocation19 [shape = 's32[1]{0}', space=sflag, size = 0x4, scoped, tag = 'scoped memory for conditional_discriminator.1']
    %20 = vsyncpa [#allocation8], 0
    %s21 = scalar_lea.sflag [#allocation8], 1
    %22 = vsyncpa %s21, 0
    %23 = vsyncpa [#allocation10], 0
    %s24 = scalar_lea.sflag [#allocation10], 1
    %25 = vsyncpa %s24, 0
    %26 = vsyncpa [#allocation13], 0
    %27 = vsyncpa [#allocation16], 0
    %28 = vsyncpa [#allocation19], 0
    loop: start=0, step=1, limit=4
    $region2: #{conditional_discriminator.1} parent=1 // loop_pre_header
      _
    $region3: #{conditional_discriminator.1} parent=1 // loop_header
      %s30 = sphi 0, %s34
      %p31 = scmp.ge.s32.totalorder %s30, 4
      %s40 = sphi 0, %s42
      %s43 = sphi 0, %s40
      %s44 = sphi 0, %s43
      %s60 = sphi 0, %s44
      %s66 = sphi 0, %s68
      %s69 = sphi 0, %s66
      %s70 = sphi 0, %s69
      %s86 = sphi 0, %s70
      %s90 = sphi 0, %s90
      %s92 = sphi 0, %s90
      %s93 = sphi 0, %s92
      %s107 = sphi 0, %s93
      %s111 = sphi 0, %s111
      %s113 = sphi 0, %s111
      %s114 = sphi 0, %s113
      %s128 = sphi 0, %s114
      %s132 = sphi 0, %s132
      %s134 = sphi 0, %s132
      %s135 = sphi 0, %s134
      %s149 = sphi 0, %s135
      %s153 = sphi 0, %s153
      %s155 = sphi 0, %s153
      %s156 = sphi 0, %s155
      %s170 = sphi 0, %s156
      %s174 = sphi 0, %s174
      %s176 = sphi 0, %s174
      %s177 = sphi 0, %s176
      %s191 = sphi 0, %s177
      %s195 = sphi 0, %s195
      %s197 = sphi 0, %s195
      %s198 = sphi 0, %s197
      %s212 = sphi 0, %s198
      %s216 = sphi 0, %s216
      %s218 = sphi 0, %s216
      %s219 = sphi 0, %s218
      %s233 = sphi 0, %s219
      %s237 = sphi 0, %s237
      %s239 = sphi 0, %s237
      %s240 = sphi 0, %s239
      %s254 = sphi 0, %s240
      %s260 = sphi 0, %s262
      %s263 = sphi 0, %s260
      %s264 = sphi 0, %s263
      %s280 = sphi 0, %s264
      %s286 = sphi 0, %s288
      %s289 = sphi 0, %s286
      %s290 = sphi 0, %s289
      %s306 = sphi 0, %s290
      %s312 = sphi 0, %s314
      %s315 = sphi 0, %s312
      %s316 = sphi 0, %s315
      %s332 = sphi 0, %s316
      %s338 = sphi 0, %s340
      %s341 = sphi 0, %s338
      %s342 = sphi 0, %s341
      %s358 = sphi 0, %s342
      %s364 = sphi 0, %s366
      %s367 = sphi 0, %s364
      %s368 = sphi 0, %s367
      %s384 = sphi 0, %s368
    $region4: #{conditional_discriminator.1} parent=1 // loop_header_branch
      %33 = sbr.rel (%p31) target = $region8
    $region5: #{conditional_discriminator.1} parent=1 // loop_body
      %s35 = ssub.s32 %s30, 1
      %s36 = ssub.s32 %s30, 2
      %s37 = sadd.s32 %s30, 1
      %s38 = ssub.s32 %s30, %s37
      %p39 = scmp.eq.s32.totalorder %s38, 0
      %s41 = sadd.s32 %s40, 1
      %s42 = scalar_select %p39, %s40, %s41
      %p45 = pneg %p39
      %p46 = scmp.eq.s32.totalorder %s30, 1
      %p47 = por %p45, %p46
      %p48 = scmp.ne.s32.totalorder %s40, %s43
      %p49 = scmp.eq.s32.totalorder %s30, 0
      %p50 = por %p48, %p49
      %p51 = scmp.ne.s32.totalorder %s40, %s43
      %p52 = scmp.eq.s32.totalorder %s35, 1
      %p53 = por %p51, %p52
      %p54 = scmp.ne.s32.totalorder %s43, %s44
      %p55 = scmp.eq.s32.totalorder %s35, 0
      %p56 = por %p54, %p55
      %p57 = scmp.ne.s32.totalorder %s43, %s44
      %p58 = scmp.eq.s32.totalorder %s36, 1
      %p59 = por %p57, %p58
      %p61 = scmp.ne.s32.totalorder %s44, %s60
      %p62 = scmp.eq.s32.totalorder %s36, 0
      %p63 = por %p61, %p62
      %s64 = ssub.s32 %s30, %s37
      %p65 = scmp.eq.s32.totalorder %s64, 0
      %s67 = sadd.s32 %s66, 1
      %s68 = scalar_select %p65, %s66, %s67
      %p71 = pneg %p65
      %p72 = scmp.eq.s32.totalorder %s30, 1
      %p73 = por %p71, %p72
      %p74 = scmp.ne.s32.totalorder %s66, %s69
      %p75 = scmp.eq.s32.totalorder %s30, 0
      %p76 = por %p74, %p75
      %p77 = scmp.ne.s32.totalorder %s66, %s69
      %p78 = scmp.eq.s32.totalorder %s35, 1
      %p79 = por %p77, %p78
      %p80 = scmp.ne.s32.totalorder %s69, %s70
      %p81 = scmp.eq.s32.totalorder %s35, 0
      %p82 = por %p80, %p81
      %p83 = scmp.ne.s32.totalorder %s69, %s70
      %p84 = scmp.eq.s32.totalorder %s36, 1
      %p85 = por %p83, %p84
      %p87 = scmp.ne.s32.totalorder %s70, %s86
      %p88 = scmp.eq.s32.totalorder %s36, 0
      %p89 = por %p87, %p88
      %s91 = sadd.s32 %s90, 1
      %p94 = scmp.eq.s32.totalorder %s30, 1
      %p95 = scmp.ne.s32.totalorder %s90, %s92
      %p96 = scmp.eq.s32.totalorder %s30, 0
      %p97 = por %p95, %p96
      %p98 = scmp.ne.s32.totalorder %s90, %s92
      %p99 = scmp.eq.s32.totalorder %s35, 1
      %p100 = por %p98, %p99
      %p101 = scmp.ne.s32.totalorder %s92, %s93
      %p102 = scmp.eq.s32.totalorder %s35, 0
      %p103 = por %p101, %p102
      %p104 = scmp.ne.s32.totalorder %s92, %s93
      %p105 = scmp.eq.s32.totalorder %s36, 1
      %p106 = por %p104, %p105
      %p108 = scmp.ne.s32.totalorder %s93, %s107
      %p109 = scmp.eq.s32.totalorder %s36, 0
      %p110 = por %p108, %p109
      %s112 = sadd.s32 %s111, 1
      %p115 = scmp.eq.s32.totalorder %s30, 1
      %p116 = scmp.ne.s32.totalorder %s111, %s113
      %p117 = scmp.eq.s32.totalorder %s30, 0
      %p118 = por %p116, %p117
      %p119 = scmp.ne.s32.totalorder %s111, %s113
      %p120 = scmp.eq.s32.totalorder %s35, 1
      %p121 = por %p119, %p120
      %p122 = scmp.ne.s32.totalorder %s113, %s114
      %p123 = scmp.eq.s32.totalorder %s35, 0
      %p124 = por %p122, %p123
      %p125 = scmp.ne.s32.totalorder %s113, %s114
      %p126 = scmp.eq.s32.totalorder %s36, 1
      %p127 = por %p125, %p126
      %p129 = scmp.ne.s32.totalorder %s114, %s128
      %p130 = scmp.eq.s32.totalorder %s36, 0
      %p131 = por %p129, %p130
      %s133 = sadd.s32 %s132, 1
      %p136 = scmp.eq.s32.totalorder %s30, 1
      %p137 = scmp.ne.s32.totalorder %s132, %s134
      %p138 = scmp.eq.s32.totalorder %s30, 0
      %p139 = por %p137, %p138
      %p140 = scmp.ne.s32.totalorder %s132, %s134
      %p141 = scmp.eq.s32.totalorder %s35, 1
      %p142 = por %p140, %p141
      %p143 = scmp.ne.s32.totalorder %s134, %s135
      %p144 = scmp.eq.s32.totalorder %s35, 0
      %p145 = por %p143, %p144
      %p146 = scmp.ne.s32.totalorder %s134, %s135
      %p147 = scmp.eq.s32.totalorder %s36, 1
      %p148 = por %p146, %p147
      %p150 = scmp.ne.s32.totalorder %s135, %s149
      %p151 = scmp.eq.s32.totalorder %s36, 0
      %p152 = por %p150, %p151
      %s154 = sadd.s32 %s153, 1
      %p157 = scmp.eq.s32.totalorder %s30, 1
      %p158 = scmp.ne.s32.totalorder %s153, %s155
      %p159 = scmp.eq.s32.totalorder %s30, 0
      %p160 = por %p158, %p159
      %p161 = scmp.ne.s32.totalorder %s153, %s155
      %p162 = scmp.eq.s32.totalorder %s35, 1
      %p163 = por %p161, %p162
      %p164 = scmp.ne.s32.totalorder %s155, %s156
      %p165 = scmp.eq.s32.totalorder %s35, 0
      %p166 = por %p164, %p165
      %p167 = scmp.ne.s32.totalorder %s155, %s156
      %p168 = scmp.eq.s32.totalorder %s36, 1
      %p169 = por %p167, %p168
      %p171 = scmp.ne.s32.totalorder %s156, %s170
      %p172 = scmp.eq.s32.totalorder %s36, 0
      %p173 = por %p171, %p172
      %s175 = sadd.s32 %s174, 1
      %p178 = scmp.eq.s32.totalorder %s30, 1
      %p179 = scmp.ne.s32.totalorder %s174, %s176
      %p180 = scmp.eq.s32.totalorder %s30, 0
      %p181 = por %p179, %p180
      %p182 = scmp.ne.s32.totalorder %s174, %s176
      %p183 = scmp.eq.s32.totalorder %s35, 1
      %p184 = por %p182, %p183
      %p185 = scmp.ne.s32.totalorder %s176, %s177
      %p186 = scmp.eq.s32.totalorder %s35, 0
      %p187 = por %p185, %p186
      %p188 = scmp.ne.s32.totalorder %s176, %s177
      %p189 = scmp.eq.s32.totalorder %s36, 1
      %p190 = por %p188, %p189
      %p192 = scmp.ne.s32.totalorder %s177, %s191
      %p193 = scmp.eq.s32.totalorder %s36, 0
      %p194 = por %p192, %p193
      %s196 = sadd.s32 %s195, 1
      %p199 = scmp.eq.s32.totalorder %s30, 1
      %p200 = scmp.ne.s32.totalorder %s195, %s197
      %p201 = scmp.eq.s32.totalorder %s30, 0
      %p202 = por %p200, %p201
      %p203 = scmp.ne.s32.totalorder %s195, %s197
      %p204 = scmp.eq.s32.totalorder %s35, 1
      %p205 = por %p203, %p204
      %p206 = scmp.ne.s32.totalorder %s197, %s198
      %p207 = scmp.eq.s32.totalorder %s35, 0
      %p208 = por %p206, %p207
      %p209 = scmp.ne.s32.totalorder %s197, %s198
      %p210 = scmp.eq.s32.totalorder %s36, 1
      %p211 = por %p209, %p210
      %p213 = scmp.ne.s32.totalorder %s198, %s212
      %p214 = scmp.eq.s32.totalorder %s36, 0
      %p215 = por %p213, %p214
      %s217 = sadd.s32 %s216, 1
      %p220 = scmp.eq.s32.totalorder %s30, 1
      %p221 = scmp.ne.s32.totalorder %s216, %s218
      %p222 = scmp.eq.s32.totalorder %s30, 0
      %p223 = por %p221, %p222
      %p224 = scmp.ne.s32.totalorder %s216, %s218
      %p225 = scmp.eq.s32.totalorder %s35, 1
      %p226 = por %p224, %p225
      %p227 = scmp.ne.s32.totalorder %s218, %s219
      %p228 = scmp.eq.s32.totalorder %s35, 0
      %p229 = por %p227, %p228
      %p230 = scmp.ne.s32.totalorder %s218, %s219
      %p231 = scmp.eq.s32.totalorder %s36, 1
      %p232 = por %p230, %p231
      %p234 = scmp.ne.s32.totalorder %s219, %s233
      %p235 = scmp.eq.s32.totalorder %s36, 0
      %p236 = por %p234, %p235
      %s238 = sadd.s32 %s237, 1
      %p241 = scmp.eq.s32.totalorder %s30, 1
      %p242 = scmp.ne.s32.totalorder %s237, %s239
      %p243 = scmp.eq.s32.totalorder %s30, 0
      %p244 = por %p242, %p243
      %p245 = scmp.ne.s32.totalorder %s237, %s239
      %p246 = scmp.eq.s32.totalorder %s35, 1
      %p247 = por %p245, %p246
      %p248 = scmp.ne.s32.totalorder %s239, %s240
      %p249 = scmp.eq.s32.totalorder %s35, 0
      %p250 = por %p248, %p249
      %p251 = scmp.ne.s32.totalorder %s239, %s240
      %p252 = scmp.eq.s32.totalorder %s36, 1
      %p253 = por %p251, %p252
      %p255 = scmp.ne.s32.totalorder %s240, %s254
      %p256 = scmp.eq.s32.totalorder %s36, 0
      %p257 = por %p255, %p256
      %s258 = ssub.s32 %s30, %s37
      %p259 = scmp.eq.s32.totalorder %s258, 0
      %s261 = sadd.s32 %s260, 1
      %s262 = scalar_select %p259, %s260, %s261
      %p265 = pneg %p259
      %p266 = scmp.eq.s32.totalorder %s30, 1
      %p267 = por %p265, %p266
      %p268 = scmp.ne.s32.totalorder %s260, %s263
      %p269 = scmp.eq.s32.totalorder %s30, 0
      %p270 = por %p268, %p269
      %p271 = scmp.ne.s32.totalorder %s260, %s263
      %p272 = scmp.eq.s32.totalorder %s35, 1
      %p273 = por %p271, %p272
      %p274 = scmp.ne.s32.totalorder %s263, %s264
      %p275 = scmp.eq.s32.totalorder %s35, 0
      %p276 = por %p274, %p275
      %p277 = scmp.ne.s32.totalorder %s263, %s264
      %p278 = scmp.eq.s32.totalorder %s36, 1
      %p279 = por %p277, %p278
      %p281 = scmp.ne.s32.totalorder %s264, %s280
      %p282 = scmp.eq.s32.totalorder %s36, 0
      %p283 = por %p281, %p282
      %s284 = ssub.s32 %s30, %s37
      %p285 = scmp.eq.s32.totalorder %s284, 0
      %s287 = sadd.s32 %s286, 1
      %s288 = scalar_select %p285, %s286, %s287
      %p291 = pneg %p285
      %p292 = scmp.eq.s32.totalorder %s30, 1
      %p293 = por %p291, %p292
      %p294 = scmp.ne.s32.totalorder %s286, %s289
      %p295 = scmp.eq.s32.totalorder %s30, 0
      %p296 = por %p294, %p295
      %p297 = scmp.ne.s32.totalorder %s286, %s289
      %p298 = scmp.eq.s32.totalorder %s35, 1
      %p299 = por %p297, %p298
      %p300 = scmp.ne.s32.totalorder %s289, %s290
      %p301 = scmp.eq.s32.totalorder %s35, 0
      %p302 = por %p300, %p301
      %p303 = scmp.ne.s32.totalorder %s289, %s290
      %p304 = scmp.eq.s32.totalorder %s36, 1
      %p305 = por %p303, %p304
      %p307 = scmp.ne.s32.totalorder %s290, %s306
      %p308 = scmp.eq.s32.totalorder %s36, 0
      %p309 = por %p307, %p308
      %s310 = ssub.s32 %s30, %s37
      %p311 = scmp.eq.s32.totalorder %s310, 0
      %s313 = sadd.s32 %s312, 1
      %s314 = scalar_select %p311, %s312, %s313
      %p317 = pneg %p311
      %p318 = scmp.eq.s32.totalorder %s30, 1
      %p319 = por %p317, %p318
      %p320 = scmp.ne.s32.totalorder %s312, %s315
      %p321 = scmp.eq.s32.totalorder %s30, 0
      %p322 = por %p320, %p321
      %p323 = scmp.ne.s32.totalorder %s312, %s315
      %p324 = scmp.eq.s32.totalorder %s35, 1
      %p325 = por %p323, %p324
      %p326 = scmp.ne.s32.totalorder %s315, %s316
      %p327 = scmp.eq.s32.totalorder %s35, 0
      %p328 = por %p326, %p327
      %p329 = scmp.ne.s32.totalorder %s315, %s316
      %p330 = scmp.eq.s32.totalorder %s36, 1
      %p331 = por %p329, %p330
      %p333 = scmp.ne.s32.totalorder %s316, %s332
      %p334 = scmp.eq.s32.totalorder %s36, 0
      %p335 = por %p333, %p334
      %s336 = ssub.s32 %s30, %s37
      %p337 = scmp.eq.s32.totalorder %s336, 0
      %s339 = sadd.s32 %s338, 1
      %s340 = scalar_select %p337, %s338, %s339
      %p343 = pneg %p337
      %p344 = scmp.eq.s32.totalorder %s30, 1
      %p345 = por %p343, %p344
      %p346 = scmp.ne.s32.totalorder %s338, %s341
      %p347 = scmp.eq.s32.totalorder %s30, 0
      %p348 = por %p346, %p347
      %p349 = scmp.ne.s32.totalorder %s338, %s341
      %p350 = scmp.eq.s32.totalorder %s35, 1
      %p351 = por %p349, %p350
      %p352 = scmp.ne.s32.totalorder %s341, %s342
      %p353 = scmp.eq.s32.totalorder %s35, 0
      %p354 = por %p352, %p353
      %p355 = scmp.ne.s32.totalorder %s341, %s342
      %p356 = scmp.eq.s32.totalorder %s36, 1
      %p357 = por %p355, %p356
      %p359 = scmp.ne.s32.totalorder %s342, %s358
      %p360 = scmp.eq.s32.totalorder %s36, 0
      %p361 = por %p359, %p360
      %s362 = ssub.s32 %s30, %s37
      %p363 = scmp.eq.s32.totalorder %s362, 0
      %s365 = sadd.s32 %s364, 1
      %s366 = scalar_select %p363, %s364, %s365
      %p369 = pneg %p363
      %p370 = scmp.eq.s32.totalorder %s30, 1
      %p371 = por %p369, %p370
      %p372 = scmp.ne.s32.totalorder %s364, %s367
      %p373 = scmp.eq.s32.totalorder %s30, 0
      %p374 = por %p372, %p373
      %p375 = scmp.ne.s32.totalorder %s364, %s367
      %p376 = scmp.eq.s32.totalorder %s35, 1
      %p377 = por %p375, %p376
      %p378 = scmp.ne.s32.totalorder %s367, %s368
      %p379 = scmp.eq.s32.totalorder %s35, 0
      %p380 = por %p378, %p379
      %p381 = scmp.ne.s32.totalorder %s367, %s368
      %p382 = scmp.eq.s32.totalorder %s36, 1
      %p383 = por %p381, %p382
      %p385 = scmp.ne.s32.totalorder %s368, %s384
      %p386 = scmp.eq.s32.totalorder %s36, 0
      %p387 = por %p385, %p386
      %p388 = scmp.le.s32.totalorder 1, %s30
      %p389 = scmp.lt.s32.totalorder %s30, 3
      %p390 = pnand %p388, %p389
      %p391 = pneg %p390
      // Predicated region
      $region9: #{conditional_discriminator.1} parent=5 // pred_check
        _
      $region10: #{conditional_discriminator.1} parent=5 // pred_check_branch
        %393 = sbr.rel (%p390) target = $region12
      $region11: #{conditional_discriminator.1} parent=5 // pred_region
        %s394 = ssub.s32 %s30, 1
        // Predicated region
        $region13: #{conditional_discriminator.1} parent=11 // pred_check
          %p395 = pneg %p103
        $region14: #{conditional_discriminator.1} parent=11 // pred_check_branch
          %397 = sbr.rel (%p395) target = $region16
        $region15: #{conditional_discriminator.1} parent=11 // pred_region
          %399 = vsyncadd [#allocation10], 0
          %s400 = sshll.u32 %s2, 4
          %s401 = int_to_ptr.hbm [resolvable:$true] %s400
          %s402 = sshll.u32 [#allocation11], 4
          %s403 = int_to_ptr.vmem [resolvable:$true] %s402
          %408 = dma.hbm_to_vmem [thread:$0]  %s401, 3072, %s403, [#allocation10], 64, 64, 4
        $region16: #{conditional_discriminator.1} parent=11 // pred_fallthru
          _
        // Predicated region
        $region17: #{conditional_discriminator.1} parent=11 // pred_check
          %p409 = pneg %p124
        $region18: #{conditional_discriminator.1} parent=11 // pred_check_branch
          %411 = sbr.rel (%p409) target = $region20
        $region19: #{conditional_discriminator.1} parent=11 // pred_region
          %413 = vsyncadd [#allocation13], 0
          %s414 = sshll.u32 %s3, 4
          %s415 = int_to_ptr.hbm [resolvable:$true] %s414
          %s416 = sshll.u32 [#allocation12], 4
          %s417 = int_to_ptr.vmem [resolvable:$true] %s416
          %422 = dma.hbm_to_vmem [thread:$0]  %s415, 3072, %s417, [#allocation13], 64, 64, 4
        $region20: #{conditional_discriminator.1} parent=11 // pred_fallthru
          _
        // Predicated region
        $region21: #{conditional_discriminator.1} parent=11 // pred_check
          %p423 = pneg %p145
        $region22: #{conditional_discriminator.1} parent=11 // pred_check_branch
          %425 = sbr.rel (%p423) target = $region24
        $region23: #{conditional_discriminator.1} parent=11 // pred_region
          %427 = vsyncadd [#allocation13], 0
          %s428 = sshll.u32 %s4, 4
          %s429 = int_to_ptr.hbm [resolvable:$true] %s428
          %s430 = sshll.u32 [#allocation14], 4
          %s431 = int_to_ptr.vmem [resolvable:$true] %s430
          %436 = dma.hbm_to_vmem [thread:$0]  %s429, 3072, %s431, [#allocation13], 64, 64, 4
        $region24: #{conditional_discriminator.1} parent=11 // pred_fallthru
          _
        // Predicated region
        $region25: #{conditional_discriminator.1} parent=11 // pred_check
          %p437 = pneg %p166
        $region26: #{conditional_discriminator.1} parent=11 // pred_check_branch
          %439 = sbr.rel (%p437) target = $region28
        $region27: #{conditional_discriminator.1} parent=11 // pred_region
          %441 = vsyncadd [#allocation16], 0
          %s442 = sshll.u32 %s5, 4
          %s443 = int_to_ptr.hbm [resolvable:$true] %s442
          %s444 = sshll.u32 [#allocation15], 4
          %s445 = int_to_ptr.vmem [resolvable:$true] %s444
          %450 = dma.hbm_to_vmem [thread:$0]  %s443, 3072, %s445, [#allocation16], 64, 64, 4
        $region28: #{conditional_discriminator.1} parent=11 // pred_fallthru
          _
        // Predicated region
        $region29: #{conditional_discriminator.1} parent=11 // pred_check
          %p451 = pneg %p187
        $region30: #{conditional_discriminator.1} parent=11 // pred_check_branch
          %453 = sbr.rel (%p451) target = $region32
        $region31: #{conditional_discriminator.1} parent=11 // pred_region
          %455 = vsyncadd [#allocation16], 0
          %s456 = sshll.u32 %s6, 4
          %s457 = int_to_ptr.hbm [resolvable:$true] %s456
          %s458 = sshll.u32 [#allocation17], 4
          %s459 = int_to_ptr.vmem [resolvable:$true] %s458
          %464 = dma.hbm_to_vmem [thread:$0]  %s457, 3072, %s459, [#allocation16], 64, 64, 4
        $region32: #{conditional_discriminator.1} parent=11 // pred_fallthru
          _
        // Predicated region
        $region33: #{conditional_discriminator.1} parent=11 // pred_check
          %p465 = pneg %p208
        $region34: #{conditional_discriminator.1} parent=11 // pred_check_branch
          %467 = sbr.rel (%p465) target = $region36
        $region35: #{conditional_discriminator.1} parent=11 // pred_region
          _
        $region36: #{conditional_discriminator.1} parent=11 // pred_fallthru
          _
        // Predicated region
        $region37: #{conditional_discriminator.1} parent=11 // pred_check
          %p468 = pneg %p229
        $region38: #{conditional_discriminator.1} parent=11 // pred_check_branch
          %470 = sbr.rel (%p468) target = $region40
        $region39: #{conditional_discriminator.1} parent=11 // pred_region
          _
        $region40: #{conditional_discriminator.1} parent=11 // pred_fallthru
          _
        // Predicated region
        $region41: #{conditional_discriminator.1} parent=11 // pred_check
          %p471 = pneg %p250
        $region42: #{conditional_discriminator.1} parent=11 // pred_check_branch
          %473 = sbr.rel (%p471) target = $region44
        $region43: #{conditional_discriminator.1} parent=11 // pred_region
          %475 = vsyncadd [#allocation19], 0
          %s477 = sshll.u32 %s9, 4
          %s478 = int_to_ptr.hbm [resolvable:$true] %s477
          %s479 = sshll.u32 [#allocation18], 4
          %s480 = int_to_ptr.vmem [resolvable:$true] %s479
          %482 = dma.hbm_to_vmem [thread:$0]  %s478, 16, %s480, [#allocation19]
        $region44: #{conditional_discriminator.1} parent=11 // pred_fallthru
          _
      $region12: #{conditional_discriminator.1} parent=5 // pred_fallthru
        _
      %p483 = scmp.lt.s32.totalorder %s30, 2
      // Predicated region
      $region45: #{conditional_discriminator.1} parent=5 // pred_check
        %p484 = pneg %p483
      $region46: #{conditional_discriminator.1} parent=5 // pred_check_branch
        %486 = sbr.rel (%p484) target = $region48
      $region47: #{conditional_discriminator.1} parent=5 // pred_region
        // Predicated region
        $region49: #{conditional_discriminator.1} parent=47 // pred_check
          %p487 = pneg %p50
        $region50: #{conditional_discriminator.1} parent=47 // pred_check_branch
          %489 = sbr.rel (%p487) target = $region52
        $region51: #{conditional_discriminator.1} parent=47 // pred_region
          %s490 = sand.u32 %s40, 1
          %s491 = scalar_lea.sflag [#allocation8], %s490
          %s492 = sand.u32 %s40, 1
          %s493 = smul.addr %s492, 256
          %s494 = scalar_lea.vmem [#allocation7], %s493
          %s495 = smul.u32 4, %s30
          %497 = vsyncadd %s491, 0
          %s498 = smul.addr %s495, 8
          %s499 = smul.addr %s498, 8
          %s500 = scalar_lea.hbm %s0, %s499
          %s501 = sshll.u32 %s500, 4
          %s502 = int_to_ptr.hbm [resolvable:$true] %s501
          %s503 = sshll.u32 %s494, 4
          %s504 = int_to_ptr.vmem [resolvable:$true] %s503
          %509 = dma.hbm_to_vmem [thread:$0]  %s502, 4096, %s504, %s491, 128, 128, 8
        $region52: #{conditional_discriminator.1} parent=47 // pred_fallthru
          _
        // Predicated region
        $region53: #{conditional_discriminator.1} parent=47 // pred_check
          %p510 = pneg %p76
        $region54: #{conditional_discriminator.1} parent=47 // pred_check_branch
          %512 = sbr.rel (%p510) target = $region56
        $region55: #{conditional_discriminator.1} parent=47 // pred_region
          %s513 = sand.u32 %s30, 1
          %s514 = scalar_lea.sflag [#allocation10], %s513
          %s515 = sand.u32 %s66, 1
          %s516 = smul.addr %s515, 256
          %s517 = scalar_lea.vmem [#allocation9], %s516
          %s518 = smul.u32 4, %s30
          %520 = vsyncadd %s514, 0
          %s521 = smul.addr %s518, 8
          %s522 = smul.addr %s521, 8
          %s523 = scalar_lea.hbm %s1, %s522
          %s524 = sshll.u32 %s523, 4
          %s525 = int_to_ptr.hbm [resolvable:$true] %s524
          %s526 = sshll.u32 %s517, 4
          %s527 = int_to_ptr.vmem [resolvable:$true] %s526
          %532 = dma.hbm_to_vmem [thread:$0]  %s525, 4096, %s527, %s514, 128, 128, 8
        $region56: #{conditional_discriminator.1} parent=47 // pred_fallthru
          _
      $region48: #{conditional_discriminator.1} parent=5 // pred_fallthru
        _
      %p533 = scmp.le.s32.totalorder 1, %s30
      %p534 = scmp.lt.s32.totalorder %s30, 3
      %p535 = pnand %p533, %p534
      %p536 = pneg %p535
      // Predicated region
      $region57: #{conditional_discriminator.1} parent=5 // pred_check
        _
      $region58: #{conditional_discriminator.1} parent=5 // pred_check_branch
        %538 = sbr.rel (%p535) target = $region60
      $region59: #{conditional_discriminator.1} parent=5 // pred_region
        %s539 = ssub.s32 %s30, 1
        %s540 = sand.u32 %s43, 1
        %s541 = scalar_lea.sflag [#allocation8], %s540
        %s542 = sand.u32 %s43, 1
        %s543 = smul.addr %s542, 256
        %s544 = scalar_lea.vmem [#allocation7], %s543
        // Predicated region
        $region61: #{conditional_discriminator.1} parent=59 // pred_check
          %p545 = pneg %p56
        $region62: #{conditional_discriminator.1} parent=59 // pred_check_branch
          %547 = sbr.rel (%p545) target = $region64
        $region63: #{conditional_discriminator.1} parent=59 // pred_region
          %549 = dma.done %s541, 4096
        $region64: #{conditional_discriminator.1} parent=59 // pred_fallthru
          _
        %s550 = sand.u32 %s35, 1
        %s551 = scalar_lea.sflag [#allocation10], %s550
        %s552 = sand.u32 %s69, 1
        %s553 = smul.addr %s552, 256
        %s554 = scalar_lea.vmem [#allocation9], %s553
        // Predicated region
        $region65: #{conditional_discriminator.1} parent=59 // pred_check
          %p555 = pneg %p82
        $region66: #{conditional_discriminator.1} parent=59 // pred_check_branch
          %557 = sbr.rel (%p555) target = $region68
        $region67: #{conditional_discriminator.1} parent=59 // pred_region
          %559 = dma.done %s551, 4096
        $region68: #{conditional_discriminator.1} parent=59 // pred_fallthru
          _
        // Predicated region
        $region69: #{conditional_discriminator.1} parent=59 // pred_check
          %p560 = pneg %p103
        $region70: #{conditional_discriminator.1} parent=59 // pred_check_branch
          %562 = sbr.rel (%p560) target = $region72
        $region71: #{conditional_discriminator.1} parent=59 // pred_region
          %564 = dma.done [#allocation10], 3072
        $region72: #{conditional_discriminator.1} parent=59 // pred_fallthru
          _
        // Predicated region
        $region73: #{conditional_discriminator.1} parent=59 // pred_check
          %p565 = pneg %p124
        $region74: #{conditional_discriminator.1} parent=59 // pred_check_branch
          %567 = sbr.rel (%p565) target = $region76
        $region75: #{conditional_discriminator.1} parent=59 // pred_region
          %569 = dma.done [#allocation13], 3072
        $region76: #{conditional_discriminator.1} parent=59 // pred_fallthru
          _
        // Predicated region
        $region77: #{conditional_discriminator.1} parent=59 // pred_check
          %p570 = pneg %p145
        $region78: #{conditional_discriminator.1} parent=59 // pred_check_branch
          %572 = sbr.rel (%p570) target = $region80
        $region79: #{conditional_discriminator.1} parent=59 // pred_region
          %574 = dma.done [#allocation13], 3072
        $region80: #{conditional_discriminator.1} parent=59 // pred_fallthru
          _
        // Predicated region
        $region81: #{conditional_discriminator.1} parent=59 // pred_check
          %p575 = pneg %p166
        $region82: #{conditional_discriminator.1} parent=59 // pred_check_branch
          %577 = sbr.rel (%p575) target = $region84
        $region83: #{conditional_discriminator.1} parent=59 // pred_region
          %579 = dma.done [#allocation16], 3072
        $region84: #{conditional_discriminator.1} parent=59 // pred_fallthru
          _
        // Predicated region
        $region85: #{conditional_discriminator.1} parent=59 // pred_check
          %p580 = pneg %p187
        $region86: #{conditional_discriminator.1} parent=59 // pred_check_branch
          %582 = sbr.rel (%p580) target = $region88
        $region87: #{conditional_discriminator.1} parent=59 // pred_region
          %584 = dma.done [#allocation16], 3072
        $region88: #{conditional_discriminator.1} parent=59 // pred_fallthru
          _
        // Predicated region
        $region89: #{conditional_discriminator.1} parent=59 // pred_check
          %p585 = pneg %p250
        $region90: #{conditional_discriminator.1} parent=59 // pred_check_branch
          %587 = sbr.rel (%p585) target = $region92
        $region91: #{conditional_discriminator.1} parent=59 // pred_region
          %589 = dma.done [#allocation19], 16
        $region92: #{conditional_discriminator.1} parent=59 // pred_fallthru
          _
        %s590 = sand.u32 %s43, 1
        %s591 = scalar_lea.sflag [#allocation8], %s590
        %s592 = sand.u32 %s43, 1
        %s593 = smul.addr %s592, 256
        %s594 = scalar_lea.vmem [#allocation7], %s593
        %p595 = pneg %p56
        %p596 = pneg %p53
        %s597 = sand.u32 %s35, 1
        %s598 = scalar_lea.sflag [#allocation10], %s597
        %s599 = sand.u32 %s69, 1
        %s600 = smul.addr %s599, 256
        %s601 = scalar_lea.vmem [#allocation9], %s600
        %p602 = pneg %p82
        %p603 = pneg %p79
        %p604 = pneg %p103
        %p605 = pneg %p100
        %p606 = pneg %p124
        %p607 = pneg %p121
        %p608 = pneg %p145
        %p609 = pneg %p142
        %p610 = pneg %p166
        %p611 = pneg %p163
        %p612 = pneg %p187
        %p613 = pneg %p184
        %p614 = pneg %p208
        %p615 = pneg %p205
        %p616 = pneg %p229
        %p617 = pneg %p226
        %p618 = pneg %p250
        %p619 = pneg %p247
        %p620 = pneg %p276
        %p621 = pneg %p273
        %s622 = smul.u32 4, %s35
        %p623 = scmp.lt.s32.totalorder %s622, 7
        %s624 = scalar_select %p623, %s622, 7
        %s625 = smul.addr %s624, 2
        %s626 = smul.addr %s625, 8
        %s627 = scalar_lea.vmem %s10, %s626
        %p628 = pneg %p302
        %p629 = pneg %p299
        %s630 = smul.u32 4, %s35
        %p631 = scmp.lt.s32.totalorder %s630, 7
        %s632 = scalar_select %p631, %s630, 7
        %s633 = smul.addr %s632, 8
        %s634 = scalar_lea.vmem %s11, %s633
        %p635 = pneg %p328
        %p636 = pneg %p325
        %s637 = smul.u32 4, %s35
        %p638 = scmp.lt.s32.totalorder %s637, 7
        %s639 = scalar_select %p638, %s637, 7
        %s640 = smul.addr %s639, 4
        %s641 = scalar_lea.vmem %s12, %s640
        %p642 = pneg %p354
        %p643 = pneg %p351
        %s644 = smul.u32 4, %s35
        %p645 = scmp.lt.s32.totalorder %s644, 7
        %s646 = scalar_select %p645, %s644, 7
        %s647 = smul.addr %s646, 2
        %s648 = scalar_lea.vmem %s13, %s647
        %p649 = pneg %p380
        %p650 = pneg %p377
        %s651 = smul.u32 4, %s35
        %p652 = scmp.lt.s32.totalorder %s651, 7
        %s653 = scalar_select %p652, %s651, 7
        %s654 = smul.addr %s653, 2
        %s655 = scalar_lea.vmem %s14, %s654
        %s656 = smul.u32 4, %s35
        %s657 = smul.u32 4, %s35
        %s658 = smul.u32 4, %s35
        %p659 = scmp.lt.s32.totalorder %s658, 7
        %s660 = scalar_select %p659, %s658, 7
        %s661 = smul.addr %s660, 2
        %s662 = smul.addr %s661, 8
        %s663 = scalar_lea.vmem %s10, %s662
        %s664 = smul.u32 4, %s35
        %s665 = smul.u32 4, %s35
        %p666 = scmp.lt.s32.totalorder %s665, 7
        %s667 = scalar_select %p666, %s665, 7
        %s668 = smul.addr %s667, 8
        %s669 = scalar_lea.vmem %s11, %s668
        %s670 = smul.u32 4, %s35
        %s671 = smul.u32 4, %s35
        %p672 = scmp.lt.s32.totalorder %s671, 7
        %s673 = scalar_select %p672, %s671, 7
        %s674 = smul.addr %s673, 4
        %s675 = scalar_lea.vmem %s12, %s674
        %s676 = smul.u32 4, %s35
        %s677 = smul.u32 4, %s35
        %p678 = scmp.lt.s32.totalorder %s677, 7
        %s679 = scalar_select %p678, %s677, 7
        %s680 = smul.addr %s679, 2
        %s681 = scalar_lea.vmem %s13, %s680
        %s682 = smul.u32 4, %s35
        %s683 = smul.u32 4, %s35
        %p684 = scmp.lt.s32.totalorder %s683, 7
        %s685 = scalar_select %p684, %s683, 7
        %s686 = smul.addr %s685, 2
        %s687 = scalar_lea.vmem %s14, %s686
        %s688 = smul.u32 4, %s35
        %689 = vst [vmem:[#allocation2] sm:$0xff] 0.0
        %690 = vst [vmem:[#allocation2 + $0x8] sm:$0xff] 0.0
        %691 = vst [vmem:[#allocation2 + $0x10] sm:$0xff] 0.0
        %692 = vst [vmem:[#allocation2 + $0x18] sm:$0xff] 0.0
        %693 = vst [vmem:[#allocation2 + $0x20] sm:$0xff] 0.0
        %694 = vst [vmem:[#allocation2 + $0x28] sm:$0xff] 0.0
        %695 = vst [vmem:[#allocation2 + $0x30] sm:$0xff] 0.0
        %696 = vst [vmem:[#allocation2 + $0x38] sm:$0xff] 0.0
        %697 = vst [vmem:[#allocation2 + $0x40] sm:$0xff] 0.0
        %698 = vst [vmem:[#allocation2 + $0x48] sm:$0xff] 0.0
        %699 = vst [vmem:[#allocation2 + $0x50] sm:$0xff] 0.0
        %700 = vst [vmem:[#allocation2 + $0x58] sm:$0xff] 0.0
        %701 = vst [vmem:[#allocation2 + $0x60] sm:$0xff] 0.0
        %702 = vst [vmem:[#allocation2 + $0x68] sm:$0xff] 0.0
        %703 = vst [vmem:[#allocation2 + $0x70] sm:$0xff] 0.0
        %704 = vst [vmem:[#allocation2 + $0x78] sm:$0xff] 0.0
        %705 = vst [vmem:[#allocation2 + $0x80] sm:$0xff] 0.0
        %706 = vst [vmem:[#allocation2 + $0x88] sm:$0x3] 0.0
        %707 = vst [vmem:[#allocation3] sm:$0xff] 0.0
        %708 = vst [vmem:[#allocation3 + $0x8] sm:$0xff] 0.0
        %709 = vst [vmem:[#allocation3 + $0x10] sm:$0xff] 0.0
        %710 = vst [vmem:[#allocation3 + $0x18] sm:$0xff] 0.0
        %711 = vst [vmem:[#allocation3 + $0x20] sm:$0xff] 0.0
        %712 = vst [vmem:[#allocation3 + $0x28] sm:$0xff] 0.0
        %713 = vst [vmem:[#allocation3 + $0x30] sm:$0xff] 0.0
        %714 = vst [vmem:[#allocation3 + $0x38] sm:$0xff] 0.0
        %715 = vst [vmem:[#allocation3 + $0x40] sm:$0xff] 0.0
        %716 = vst [vmem:[#allocation3 + $0x48] sm:$0x3] 0.0
        %717 = vst [vmem:[#allocation4] sm:$0xff] 0.0
        %718 = vst [vmem:[#allocation4 + $0x8] sm:$0xff] 0.0
        %719 = vst [vmem:[#allocation4 + $0x10] sm:$0xff] 0.0
        %720 = vst [vmem:[#allocation4 + $0x18] sm:$0xff] 0.0
        %721 = vst [vmem:[#allocation4 + $0x20] sm:$0xff] 0.0
        %722 = vst [vmem:[#allocation4 + $0x28] sm:$0x3] 0.0
        %723 = vst [vmem:[#allocation5] sm:$0xff] 0.0
        %724 = vst [vmem:[#allocation5 + $0x8] sm:$0xff] 0.0
        %725 = vst [vmem:[#allocation5 + $0x10] sm:$0xff] 0.0
        %726 = vst [vmem:[#allocation5 + $0x18] sm:$0x3] 0.0
        %727 = vst [vmem:[#allocation6] sm:$0xff] 0.0
        %728 = vst [vmem:[#allocation6 + $0x8] sm:$0xff] 0.0
        %729 = vst [vmem:[#allocation6 + $0x10] sm:$0x3] 0.0
        %v730 = vld [vmem:[%s544] sm:$0xff]
        %v731 = vld [vmem:[%s544 + $0x8] sm:$0xff]
        %v732 = vld [vmem:[%s544 + $0x10] sm:$0xff]
        %v733 = vld [vmem:[%s544 + $0x18] sm:$0xff]
        %vm734 = vcmask 261120
        %735 = vst.msk [vmem:[#allocation2 + $0x1] sm:$0xff] %vm734, %v730
        %736 = vst.msk [vmem:[#allocation2 + $0x9] sm:$0xff] %vm734, %v731
        %737 = vst.msk [vmem:[#allocation2 + $0x11] sm:$0xff] %vm734, %v732
        %738 = vst.msk [vmem:[#allocation2 + $0x19] sm:$0xff] %vm734, %v733
        %s739 = scalar_lea.vmem %s544, 32 [#allocation7]
        %v740 = vld [vmem:[%s739] sm:$0xff]
        %v741 = vld [vmem:[%s739 + $0x8] sm:$0xff]
        %v742 = vld [vmem:[%s739 + $0x10] sm:$0xff]
        %v743 = vld [vmem:[%s739 + $0x18] sm:$0xff]
        %748 = vrot.lane.b32.xlu0 %v740, 32
        %v749 = vpop.permute.xlu0 %748
        %750 = vrot.lane.b32.xlu0 %v741, 32
        %v751 = vpop.permute.xlu0 %750
        %752 = vrot.lane.b32.xlu0 %v742, 32
        %v753 = vpop.permute.xlu0 %752
        %754 = vrot.lane.b32.xlu0 %v743, 32
        %v755 = vpop.permute.xlu0 %754
        %vm760 = vcmask 523520
        %761 = vst.msk [vmem:[#allocation2 + $0x1] sm:$0xff] %vm760, %v749
        %762 = vst.msk [vmem:[#allocation2 + $0x9] sm:$0xff] %vm760, %v751
        %763 = vst.msk [vmem:[#allocation2 + $0x11] sm:$0xff] %vm760, %v753
        %764 = vst.msk [vmem:[#allocation2 + $0x19] sm:$0xff] %vm760, %v755
        %v765 = vld [vmem:[%s554] sm:$0xff]
        %v766 = vld [vmem:[%s554 + $0x8] sm:$0xff]
        %v767 = vld [vmem:[%s554 + $0x10] sm:$0xff]
        %v768 = vld [vmem:[%s554 + $0x18] sm:$0xff]
        %773 = vrot.lane.b32.xlu0 %v765, 64
        %v774 = vpop.permute.xlu0 %773
        %775 = vrot.lane.b32.xlu0 %v766, 64
        %v776 = vpop.permute.xlu0 %775
        %777 = vrot.lane.b32.xlu0 %v767, 64
        %v778 = vpop.permute.xlu0 %777
        %779 = vrot.lane.b32.xlu0 %v768, 64
        %v780 = vpop.permute.xlu0 %779
        %vm785 = vcmask 785920
        %786 = vst.msk [vmem:[#allocation2 + $0x1] sm:$0xff] %vm785, %v774
        %787 = vst.msk [vmem:[#allocation2 + $0x9] sm:$0xff] %vm785, %v776
        %788 = vst.msk [vmem:[#allocation2 + $0x11] sm:$0xff] %vm785, %v778
        %789 = vst.msk [vmem:[#allocation2 + $0x19] sm:$0xff] %vm785, %v780
        %s790 = scalar_lea.vmem %s554, 32 [#allocation9]
        %v791 = vld [vmem:[%s790] sm:$0xff]
        %v792 = vld [vmem:[%s790 + $0x8] sm:$0xff]
        %v793 = vld [vmem:[%s790 + $0x10] sm:$0xff]
        %v794 = vld [vmem:[%s790 + $0x18] sm:$0xff]
        %799 = vrot.lane.b32.xlu0 %v791, 96
        %v800 = vpop.permute.xlu0 %799
        %801 = vrot.lane.b32.xlu0 %v792, 96
        %v802 = vpop.permute.xlu0 %801
        %803 = vrot.lane.b32.xlu0 %v793, 96
        %v804 = vpop.permute.xlu0 %803
        %805 = vrot.lane.b32.xlu0 %v794, 96
        %v806 = vpop.permute.xlu0 %805
        %vm811 = vcmask 1048320
        %812 = vst.msk [vmem:[#allocation2 + $0x1] sm:$0xff] %vm811, %v800
        %813 = vst.msk [vmem:[#allocation2 + $0x9] sm:$0xff] %vm811, %v802
        %814 = vst.msk [vmem:[#allocation2 + $0x11] sm:$0xff] %vm811, %v804
        %815 = vst.msk [vmem:[#allocation2 + $0x19] sm:$0xff] %vm811, %v806
        %s816 = scalar_lea.vmem %s544, 64 [#allocation7]
        %v817 = vld [vmem:[%s816] sm:$0xff]
        %v818 = vld [vmem:[%s816 + $0x8] sm:$0xff]
        %v819 = vld [vmem:[%s816 + $0x10] sm:$0xff]
        %v820 = vld [vmem:[%s816 + $0x18] sm:$0xff]
        %821 = vst.msk [vmem:[#allocation2 + $0x23] sm:$0xff] %vm734, %v817
        %822 = vst.msk [vmem:[#allocation2 + $0x2b] sm:$0xff] %vm734, %v818
        %823 = vst.msk [vmem:[#allocation2 + $0x33] sm:$0xff] %vm734, %v819
        %824 = vst.msk [vmem:[#allocation2 + $0x3b] sm:$0xff] %vm734, %v820
        %s825 = scalar_lea.vmem %s544, 96 [#allocation7]
        %v826 = vld [vmem:[%s825] sm:$0xff]
        %v827 = vld [vmem:[%s825 + $0x8] sm:$0xff]
        %v828 = vld [vmem:[%s825 + $0x10] sm:$0xff]
        %v829 = vld [vmem:[%s825 + $0x18] sm:$0xff]
        %834 = vrot.lane.b32.xlu0 %v826, 32
        %v835 = vpop.permute.xlu0 %834
        %836 = vrot.lane.b32.xlu0 %v827, 32
        %v837 = vpop.permute.xlu0 %836
        %838 = vrot.lane.b32.xlu0 %v828, 32
        %v839 = vpop.permute.xlu0 %838
        %840 = vrot.lane.b32.xlu0 %v829, 32
        %v841 = vpop.permute.xlu0 %840
        %846 = vst.msk [vmem:[#allocation2 + $0x23] sm:$0xff] %vm760, %v835
        %847 = vst.msk [vmem:[#allocation2 + $0x2b] sm:$0xff] %vm760, %v837
        %848 = vst.msk [vmem:[#allocation2 + $0x33] sm:$0xff] %vm760, %v839
        %849 = vst.msk [vmem:[#allocation2 + $0x3b] sm:$0xff] %vm760, %v841
        %s850 = scalar_lea.vmem %s554, 64 [#allocation9]
        %v851 = vld [vmem:[%s850] sm:$0xff]
        %v852 = vld [vmem:[%s850 + $0x8] sm:$0xff]
        %v853 = vld [vmem:[%s850 + $0x10] sm:$0xff]
        %v854 = vld [vmem:[%s850 + $0x18] sm:$0xff]
        %859 = vrot.lane.b32.xlu0 %v851, 64
        %v860 = vpop.permute.xlu0 %859
        %861 = vrot.lane.b32.xlu0 %v852, 64
        %v862 = vpop.permute.xlu0 %861
        %863 = vrot.lane.b32.xlu0 %v853, 64
        %v864 = vpop.permute.xlu0 %863
        %865 = vrot.lane.b32.xlu0 %v854, 64
        %v866 = vpop.permute.xlu0 %865
        %871 = vst.msk [vmem:[#allocation2 + $0x23] sm:$0xff] %vm785, %v860
        %872 = vst.msk [vmem:[#allocation2 + $0x2b] sm:$0xff] %vm785, %v862
        %873 = vst.msk [vmem:[#allocation2 + $0x33] sm:$0xff] %vm785, %v864
        %874 = vst.msk [vmem:[#allocation2 + $0x3b] sm:$0xff] %vm785, %v866
        %s875 = scalar_lea.vmem %s554, 96 [#allocation9]
        %v876 = vld [vmem:[%s875] sm:$0xff]
        %v877 = vld [vmem:[%s875 + $0x8] sm:$0xff]
        %v878 = vld [vmem:[%s875 + $0x10] sm:$0xff]
        %v879 = vld [vmem:[%s875 + $0x18] sm:$0xff]
        %884 = vrot.lane.b32.xlu0 %v876, 96
        %v885 = vpop.permute.xlu0 %884
        %886 = vrot.lane.b32.xlu0 %v877, 96
        %v887 = vpop.permute.xlu0 %886
        %888 = vrot.lane.b32.xlu0 %v878, 96
        %v889 = vpop.permute.xlu0 %888
        %890 = vrot.lane.b32.xlu0 %v879, 96
        %v891 = vpop.permute.xlu0 %890
        %896 = vst.msk [vmem:[#allocation2 + $0x23] sm:$0xff] %vm811, %v885
        %897 = vst.msk [vmem:[#allocation2 + $0x2b] sm:$0xff] %vm811, %v887
        %898 = vst.msk [vmem:[#allocation2 + $0x33] sm:$0xff] %vm811, %v889
        %899 = vst.msk [vmem:[#allocation2 + $0x3b] sm:$0xff] %vm811, %v891
        %s900 = scalar_lea.vmem %s544, 128 [#allocation7]
        %v901 = vld [vmem:[%s900] sm:$0xff]
        %v902 = vld [vmem:[%s900 + $0x8] sm:$0xff]
        %v903 = vld [vmem:[%s900 + $0x10] sm:$0xff]
        %v904 = vld [vmem:[%s900 + $0x18] sm:$0xff]
        %905 = vst.msk [vmem:[#allocation2 + $0x45] sm:$0xff] %vm734, %v901
        %906 = vst.msk [vmem:[#allocation2 + $0x4d] sm:$0xff] %vm734, %v902
        %907 = vst.msk [vmem:[#allocation2 + $0x55] sm:$0xff] %vm734, %v903
        %908 = vst.msk [vmem:[#allocation2 + $0x5d] sm:$0xff] %vm734, %v904
        %s909 = scalar_lea.vmem %s544, 160 [#allocation7]
        %v910 = vld [vmem:[%s909] sm:$0xff]
        %v911 = vld [vmem:[%s909 + $0x8] sm:$0xff]
        %v912 = vld [vmem:[%s909 + $0x10] sm:$0xff]
        %v913 = vld [vmem:[%s909 + $0x18] sm:$0xff]
        %918 = vrot.lane.b32.xlu0 %v910, 32
        %v919 = vpop.permute.xlu0 %918
        %920 = vrot.lane.b32.xlu0 %v911, 32
        %v921 = vpop.permute.xlu0 %920
        %922 = vrot.lane.b32.xlu0 %v912, 32
        %v923 = vpop.permute.xlu0 %922
        %924 = vrot.lane.b32.xlu0 %v913, 32
        %v925 = vpop.permute.xlu0 %924
        %930 = vst.msk [vmem:[#allocation2 + $0x45] sm:$0xff] %vm760, %v919
        %931 = vst.msk [vmem:[#allocation2 + $0x4d] sm:$0xff] %vm760, %v921
        %932 = vst.msk [vmem:[#allocation2 + $0x55] sm:$0xff] %vm760, %v923
        %933 = vst.msk [vmem:[#allocation2 + $0x5d] sm:$0xff] %vm760, %v925
        %s934 = scalar_lea.vmem %s554, 128 [#allocation9]
        %v935 = vld [vmem:[%s934] sm:$0xff]
        %v936 = vld [vmem:[%s934 + $0x8] sm:$0xff]
        %v937 = vld [vmem:[%s934 + $0x10] sm:$0xff]
        %v938 = vld [vmem:[%s934 + $0x18] sm:$0xff]
        %943 = vrot.lane.b32.xlu0 %v935, 64
        %v944 = vpop.permute.xlu0 %943
        %945 = vrot.lane.b32.xlu0 %v936, 64
        %v946 = vpop.permute.xlu0 %945
        %947 = vrot.lane.b32.xlu0 %v937, 64
        %v948 = vpop.permute.xlu0 %947
        %949 = vrot.lane.b32.xlu0 %v938, 64
        %v950 = vpop.permute.xlu0 %949
        %955 = vst.msk [vmem:[#allocation2 + $0x45] sm:$0xff] %vm785, %v944
        %956 = vst.msk [vmem:[#allocation2 + $0x4d] sm:$0xff] %vm785, %v946
        %957 = vst.msk [vmem:[#allocation2 + $0x55] sm:$0xff] %vm785, %v948
        %958 = vst.msk [vmem:[#allocation2 + $0x5d] sm:$0xff] %vm785, %v950
        %s959 = scalar_lea.vmem %s554, 160 [#allocation9]
        %v960 = vld [vmem:[%s959] sm:$0xff]
        %v961 = vld [vmem:[%s959 + $0x8] sm:$0xff]
        %v962 = vld [vmem:[%s959 + $0x10] sm:$0xff]
        %v963 = vld [vmem:[%s959 + $0x18] sm:$0xff]
        %968 = vrot.lane.b32.xlu0 %v960, 96
        %v969 = vpop.permute.xlu0 %968
        %970 = vrot.lane.b32.xlu0 %v961, 96
        %v971 = vpop.permute.xlu0 %970
        %972 = vrot.lane.b32.xlu0 %v962, 96
        %v973 = vpop.permute.xlu0 %972
        %974 = vrot.lane.b32.xlu0 %v963, 96
        %v975 = vpop.permute.xlu0 %974
        %980 = vst.msk [vmem:[#allocation2 + $0x45] sm:$0xff] %vm811, %v969
        %981 = vst.msk [vmem:[#allocation2 + $0x4d] sm:$0xff] %vm811, %v971
        %982 = vst.msk [vmem:[#allocation2 + $0x55] sm:$0xff] %vm811, %v973
        %983 = vst.msk [vmem:[#allocation2 + $0x5d] sm:$0xff] %vm811, %v975
        %s984 = scalar_lea.vmem %s544, 192 [#allocation7]
        %v985 = vld [vmem:[%s984] sm:$0xff]
        %v986 = vld [vmem:[%s984 + $0x8] sm:$0xff]
        %v987 = vld [vmem:[%s984 + $0x10] sm:$0xff]
        %v988 = vld [vmem:[%s984 + $0x18] sm:$0xff]
        %989 = vst.msk [vmem:[#allocation2 + $0x67] sm:$0xff] %vm734, %v985
        %990 = vst.msk [vmem:[#allocation2 + $0x6f] sm:$0xff] %vm734, %v986
        %991 = vst.msk [vmem:[#allocation2 + $0x77] sm:$0xff] %vm734, %v987
        %992 = vst.msk [vmem:[#allocation2 + $0x7f] sm:$0xff] %vm734, %v988
        %s993 = scalar_lea.vmem %s544, 224 [#allocation7]
        %v994 = vld [vmem:[%s993] sm:$0xff]
        %v995 = vld [vmem:[%s993 + $0x8] sm:$0xff]
        %v996 = vld [vmem:[%s993 + $0x10] sm:$0xff]
        %v997 = vld [vmem:[%s993 + $0x18] sm:$0xff]
        %1002 = vrot.lane.b32.xlu0 %v994, 32
        %v1003 = vpop.permute.xlu0 %1002
        %1004 = vrot.lane.b32.xlu0 %v995, 32
        %v1005 = vpop.permute.xlu0 %1004
        %1006 = vrot.lane.b32.xlu0 %v996, 32
        %v1007 = vpop.permute.xlu0 %1006
        %1008 = vrot.lane.b32.xlu0 %v997, 32
        %v1009 = vpop.permute.xlu0 %1008
        %1014 = vst.msk [vmem:[#allocation2 + $0x67] sm:$0xff] %vm760, %v1003
        %1015 = vst.msk [vmem:[#allocation2 + $0x6f] sm:$0xff] %vm760, %v1005
        %1016 = vst.msk [vmem:[#allocation2 + $0x77] sm:$0xff] %vm760, %v1007
        %1017 = vst.msk [vmem:[#allocation2 + $0x7f] sm:$0xff] %vm760, %v1009
        %s1018 = scalar_lea.vmem %s554, 192 [#allocation9]
        %v1019 = vld [vmem:[%s1018] sm:$0xff]
        %v1020 = vld [vmem:[%s1018 + $0x8] sm:$0xff]
        %v1021 = vld [vmem:[%s1018 + $0x10] sm:$0xff]
        %v1022 = vld [vmem:[%s1018 + $0x18] sm:$0xff]
        %1027 = vrot.lane.b32.xlu0 %v1019, 64
        %v1028 = vpop.permute.xlu0 %1027
        %1029 = vrot.lane.b32.xlu0 %v1020, 64
        %v1030 = vpop.permute.xlu0 %1029
        %1031 = vrot.lane.b32.xlu0 %v1021, 64
        %v1032 = vpop.permute.xlu0 %1031
        %1033 = vrot.lane.b32.xlu0 %v1022, 64
        %v1034 = vpop.permute.xlu0 %1033
        %1039 = vst.msk [vmem:[#allocation2 + $0x67] sm:$0xff] %vm785, %v1028
        %1040 = vst.msk [vmem:[#allocation2 + $0x6f] sm:$0xff] %vm785, %v1030
        %1041 = vst.msk [vmem:[#allocation2 + $0x77] sm:$0xff] %vm785, %v1032
        %1042 = vst.msk [vmem:[#allocation2 + $0x7f] sm:$0xff] %vm785, %v1034
        %s1043 = scalar_lea.vmem %s554, 224 [#allocation9]
        %v1044 = vld [vmem:[%s1043] sm:$0xff]
        %v1045 = vld [vmem:[%s1043 + $0x8] sm:$0xff]
        %v1046 = vld [vmem:[%s1043 + $0x10] sm:$0xff]
        %v1047 = vld [vmem:[%s1043 + $0x18] sm:$0xff]
        %1052 = vrot.lane.b32.xlu0 %v1044, 96
        %v1053 = vpop.permute.xlu0 %1052
        %1054 = vrot.lane.b32.xlu0 %v1045, 96
        %v1055 = vpop.permute.xlu0 %1054
        %1056 = vrot.lane.b32.xlu0 %v1046, 96
        %v1057 = vpop.permute.xlu0 %1056
        %1058 = vrot.lane.b32.xlu0 %v1047, 96
        %v1059 = vpop.permute.xlu0 %1058
        %1064 = vst.msk [vmem:[#allocation2 + $0x67] sm:$0xff] %vm811, %v1053
        %1065 = vst.msk [vmem:[#allocation2 + $0x6f] sm:$0xff] %vm811, %v1055
        %1066 = vst.msk [vmem:[#allocation2 + $0x77] sm:$0xff] %vm811, %v1057
        %1067 = vst.msk [vmem:[#allocation2 + $0x7f] sm:$0xff] %vm811, %v1059
        %v1068 = vld [vmem:[#allocation2] ss:$2 sm:$0xff]
        %s1069 = scalar_lea.vmem [#allocation2], 16
        %v1070 = vld [vmem:[%s1069] ss:$2 sm:$0xff]
        %s1071 = scalar_lea.vmem [#allocation2], 32
        %v1072 = vld [vmem:[%s1071] ss:$2 sm:$0xff]
        %s1073 = scalar_lea.vmem [#allocation2], 48
        %v1074 = vld [vmem:[%s1073] ss:$2 sm:$0xff]
        %s1075 = scalar_lea.vmem [#allocation2], 64
        %v1076 = vld [vmem:[%s1075] ss:$2 sm:$0xff]
        %s1077 = scalar_lea.vmem [#allocation2], 80
        %v1078 = vld [vmem:[%s1077] ss:$2 sm:$0xff]
        %s1079 = scalar_lea.vmem [#allocation2], 96
        %v1080 = vld [vmem:[%s1079] ss:$2 sm:$0xff]
        %s1081 = scalar_lea.vmem [#allocation2], 112
        %v1082 = vld [vmem:[%s1081] ss:$2 sm:$0xff]
        %s1083 = scalar_lea.vmem [#allocation2], 128
        %v1084 = vld [vmem:[%s1083] ss:$2 sm:$0xf]
        %v1085 = vpack.c.bf16 %v1070, %v1068
        %v1086 = vpack.c.bf16 %v1074, %v1072
        %v1087 = vpack.c.bf16 %v1078, %v1076
        %v1088 = vpack.c.bf16 %v1082, %v1080
        %v1089 = vpack.c.bf16 %v1084, %v1084
        %v1090 = vld [vmem:[#allocation11] sm:$0xf]
        %v1091 = vld [vmem:[#allocation11 + $0x4] sm:$0xf]
        %v1092 = vld [vmem:[#allocation11 + $0x8] sm:$0xf]
        %v1093 = vld [vmem:[#allocation11 + $0xc] sm:$0xf]
        %v1094 = vld [vmem:[#allocation11 + $0x10] sm:$0xf]
        %v1095 = vld [vmem:[#allocation11 + $0x14] sm:$0xf]
        %v1096 = vld [vmem:[#allocation11 + $0x18] sm:$0xf]
        %v1097 = vld [vmem:[#allocation11 + $0x1c] sm:$0xf]
        %v1098 = vld [vmem:[#allocation11 + $0x20] sm:$0xf]
        %v1099 = vld [vmem:[#allocation11 + $0x24] sm:$0xf]
        %v1100 = vld [vmem:[#allocation11 + $0x28] sm:$0xf]
        %v1101 = vld [vmem:[#allocation11 + $0x2c] sm:$0xf]
        %v1102 = vld [vmem:[#allocation11 + $0x30] sm:$0xf]
        %v1103 = vld [vmem:[#allocation11 + $0x34] sm:$0xf]
        %v1104 = vld [vmem:[#allocation11 + $0x38] sm:$0xf]
        %v1105 = vld [vmem:[#allocation11 + $0x3c] sm:$0xf]
        %s1106 = scalar_lea.vmem [#allocation2], 1
        %v1107 = vld [vmem:[%s1106] ss:$2 sm:$0xff]
        %s1108 = scalar_lea.vmem [#allocation2], 17
        %v1109 = vld [vmem:[%s1108] ss:$2 sm:$0xff]
        %s1110 = scalar_lea.vmem [#allocation2], 33
        %v1111 = vld [vmem:[%s1110] ss:$2 sm:$0xff]
        %s1112 = scalar_lea.vmem [#allocation2], 49
        %v1113 = vld [vmem:[%s1112] ss:$2 sm:$0xff]
        %s1114 = scalar_lea.vmem [#allocation2], 65
        %v1115 = vld [vmem:[%s1114] ss:$2 sm:$0xff]
        %s1116 = scalar_lea.vmem [#allocation2], 81
        %v1117 = vld [vmem:[%s1116] ss:$2 sm:$0xff]
        %s1118 = scalar_lea.vmem [#allocation2], 97
        %v1119 = vld [vmem:[%s1118] ss:$2 sm:$0xff]
        %s1120 = scalar_lea.vmem [#allocation2], 113
        %v1121 = vld [vmem:[%s1120] ss:$2 sm:$0xff]
        %s1122 = scalar_lea.vmem [#allocation2], 129
        %v1123 = vld [vmem:[%s1122] ss:$2 sm:$0xf]
        %v1124 = vpack.c.bf16 %v1109, %v1107
        %v1125 = vpack.c.bf16 %v1113, %v1111
        %v1126 = vpack.c.bf16 %v1117, %v1115
        %v1127 = vpack.c.bf16 %v1121, %v1119
        %v1128 = vpack.c.bf16 %v1123, %v1123
        %s1129 = scalar_lea.vmem [#allocation11], 64
        %v1130 = vld [vmem:[%s1129] sm:$0xf]
        %v1131 = vld [vmem:[%s1129 + $0x4] sm:$0xf]
        %v1132 = vld [vmem:[%s1129 + $0x8] sm:$0xf]
        %v1133 = vld [vmem:[%s1129 + $0xc] sm:$0xf]
        %v1134 = vld [vmem:[%s1129 + $0x10] sm:$0xf]
        %v1135 = vld [vmem:[%s1129 + $0x14] sm:$0xf]
        %v1136 = vld [vmem:[%s1129 + $0x18] sm:$0xf]
        %v1137 = vld [vmem:[%s1129 + $0x1c] sm:$0xf]
        %v1138 = vld [vmem:[%s1129 + $0x20] sm:$0xf]
        %v1139 = vld [vmem:[%s1129 + $0x24] sm:$0xf]
        %v1140 = vld [vmem:[%s1129 + $0x28] sm:$0xf]
        %v1141 = vld [vmem:[%s1129 + $0x2c] sm:$0xf]
        %v1142 = vld [vmem:[%s1129 + $0x30] sm:$0xf]
        %v1143 = vld [vmem:[%s1129 + $0x34] sm:$0xf]
        %v1144 = vld [vmem:[%s1129 + $0x38] sm:$0xf]
        %v1145 = vld [vmem:[%s1129 + $0x3c] sm:$0xf]
        %v1162 = vunpack.c.l.b16 %v1130
        %v1163 = vunpack.c.l.b16 %v1131
        %v1164 = vunpack.c.l.b16 %v1132
        %v1165 = vunpack.c.l.b16 %v1133
        %v1166 = vunpack.c.l.b16 %v1134
        %v1167 = vunpack.c.l.b16 %v1135
        %v1168 = vunpack.c.l.b16 %v1136
        %v1169 = vunpack.c.l.b16 %v1137
        %v1170 = vunpack.c.l.b16 %v1138
        %v1171 = vunpack.c.l.b16 %v1139
        %v1172 = vunpack.c.l.b16 %v1140
        %v1173 = vunpack.c.l.b16 %v1141
        %v1174 = vunpack.c.l.b16 %v1142
        %v1175 = vunpack.c.l.b16 %v1143
        %v1176 = vunpack.c.l.b16 %v1144
        %v1177 = vunpack.c.l.b16 %v1145
        %v1178 = vpack.c.b16 %v1163, %v1162
        %v1179 = vpack.c.b16 %v1165, %v1164
        %v1180 = vpack.c.b16 %v1167, %v1166
        %v1181 = vpack.c.b16 %v1169, %v1168
        %v1182 = vpack.c.b16 %v1171, %v1170
        %v1183 = vpack.c.b16 %v1173, %v1172
        %v1184 = vpack.c.b16 %v1175, %v1174
        %v1185 = vpack.c.b16 %v1177, %v1176
        %1194 = vmatpush.bf16.msra.mxu0 %v1185
        %1195 = vmatpush.bf16.msra.mxu0 %v1184
        %1196 = vmatpush.bf16.msra.mxu0 %v1183
        %1197 = vmatpush.bf16.msra.mxu0 %v1182
        %1198 = vmatpush.bf16.msra.mxu0 %v1181
        %1199 = vmatpush.bf16.msra.mxu0 %v1180
        %1200 = vmatpush.bf16.msra.mxu0 %v1179
        %1201 = vmatpush.bf16.msra.mxu0 %v1178
        %1202 = vmatmul.bf16.gmra.mxu0 %v1124
        %v1203 = vpop.f32.mrf.mxu0
        %v1204 = vadd.f32 0.0, %v1203
        %v1205 = vpop.f32.mrf.mxu0
        %v1206 = vadd.f32 0.0, %v1205
        %1207 = vmatmul.bf16.gmra.mxu0 %v1125
        %v1208 = vpop.f32.mrf.mxu0
        %v1209 = vadd.f32 0.0, %v1208
        %v1210 = vpop.f32.mrf.mxu0
        %v1211 = vadd.f32 0.0, %v1210
        %1212 = vmatmul.bf16.gmra.mxu0 %v1126
        %v1213 = vpop.f32.mrf.mxu0
        %v1214 = vadd.f32 0.0, %v1213
        %v1215 = vpop.f32.mrf.mxu0
        %v1216 = vadd.f32 0.0, %v1215
        %1217 = vmatmul.bf16.gmra.mxu0 %v1127
        %v1218 = vpop.f32.mrf.mxu0
        %v1219 = vadd.f32 0.0, %v1218
        %v1220 = vpop.f32.mrf.mxu0
        %v1221 = vadd.f32 0.0, %v1220
        %1222 = vmatmul.bf16.gmra.mxu0 %v1128
        %v1223 = vpop.f32.mrf.mxu0
        %v1224 = vadd.f32 0.0, %v1223
        %v1225 = vpop.f32.mrf.mxu0
        %1226 = vdwg.mxu0
        %v1243 = vunpack.c.l.b16 %v1090
        %v1244 = vunpack.c.l.b16 %v1091
        %v1245 = vunpack.c.l.b16 %v1092
        %v1246 = vunpack.c.l.b16 %v1093
        %v1247 = vunpack.c.l.b16 %v1094
        %v1248 = vunpack.c.l.b16 %v1095
        %v1249 = vunpack.c.l.b16 %v1096
        %v1250 = vunpack.c.l.b16 %v1097
        %v1251 = vunpack.c.l.b16 %v1098
        %v1252 = vunpack.c.l.b16 %v1099
        %v1253 = vunpack.c.l.b16 %v1100
        %v1254 = vunpack.c.l.b16 %v1101
        %v1255 = vunpack.c.l.b16 %v1102
        %v1256 = vunpack.c.l.b16 %v1103
        %v1257 = vunpack.c.l.b16 %v1104
        %v1258 = vunpack.c.l.b16 %v1105
        %v1259 = vpack.c.b16 %v1244, %v1243
        %v1260 = vpack.c.b16 %v1246, %v1245
        %v1261 = vpack.c.b16 %v1248, %v1247
        %v1262 = vpack.c.b16 %v1250, %v1249
        %v1263 = vpack.c.b16 %v1252, %v1251
        %v1264 = vpack.c.b16 %v1254, %v1253
        %v1265 = vpack.c.b16 %v1256, %v1255
        %v1266 = vpack.c.b16 %v1258, %v1257
        %1275 = vmatpush.bf16.msra.mxu0 %v1266
        %1276 = vmatpush.bf16.msra.mxu0 %v1265
        %1277 = vmatpush.bf16.msra.mxu0 %v1264
        %1278 = vmatpush.bf16.msra.mxu0 %v1263
        %1279 = vmatpush.bf16.msra.mxu0 %v1262
        %1280 = vmatpush.bf16.msra.mxu0 %v1261
        %1281 = vmatpush.bf16.msra.mxu0 %v1260
        %1282 = vmatpush.bf16.msra.mxu0 %v1259
        %1283 = vmatmul.bf16.gmra.mxu0 %v1085
        %v1284 = vpop.f32.mrf.mxu0
        %v1285 = vadd.f32 %v1204, %v1284
        %v1286 = vpop.f32.mrf.mxu0
        %v1287 = vadd.f32 %v1206, %v1286
        %1288 = vmatmul.bf16.gmra.mxu0 %v1086
        %v1289 = vpop.f32.mrf.mxu0
        %v1290 = vadd.f32 %v1209, %v1289
        %v1291 = vpop.f32.mrf.mxu0
        %v1292 = vadd.f32 %v1211, %v1291
        %1293 = vmatmul.bf16.gmra.mxu0 %v1087
        %v1294 = vpop.f32.mrf.mxu0
        %v1295 = vadd.f32 %v1214, %v1294
        %v1296 = vpop.f32.mrf.mxu0
        %v1297 = vadd.f32 %v1216, %v1296
        %1298 = vmatmul.bf16.gmra.mxu0 %v1088
        %v1299 = vpop.f32.mrf.mxu0
        %v1300 = vadd.f32 %v1219, %v1299
        %v1301 = vpop.f32.mrf.mxu0
        %v1302 = vadd.f32 %v1221, %v1301
        %1303 = vmatmul.bf16.gmra.mxu0 %v1089
        %v1304 = vpop.f32.mrf.mxu0
        %v1305 = vadd.f32 %v1224, %v1304
        %v1306 = vpop.f32.mrf.mxu0
        %1307 = vdwg.mxu0
        %s1308 = scalar_lea.vmem [#allocation2], 2
        %v1309 = vld [vmem:[%s1308] ss:$2 sm:$0xff]
        %s1310 = scalar_lea.vmem [#allocation2], 18
        %v1311 = vld [vmem:[%s1310] ss:$2 sm:$0xff]
        %s1312 = scalar_lea.vmem [#allocation2], 34
        %v1313 = vld [vmem:[%s1312] ss:$2 sm:$0xff]
        %s1314 = scalar_lea.vmem [#allocation2], 50
        %v1315 = vld [vmem:[%s1314] ss:$2 sm:$0xff]
        %s1316 = scalar_lea.vmem [#allocation2], 66
        %v1317 = vld [vmem:[%s1316] ss:$2 sm:$0xff]
        %s1318 = scalar_lea.vmem [#allocation2], 82
        %v1319 = vld [vmem:[%s1318] ss:$2 sm:$0xff]
        %s1320 = scalar_lea.vmem [#allocation2], 98
        %v1321 = vld [vmem:[%s1320] ss:$2 sm:$0xff]
        %s1322 = scalar_lea.vmem [#allocation2], 114
        %v1323 = vld [vmem:[%s1322] ss:$2 sm:$0xff]
        %s1324 = scalar_lea.vmem [#allocation2], 130
        %v1325 = vld [vmem:[%s1324] ss:$2 sm:$0xf]
        %v1326 = vpack.c.bf16 %v1311, %v1309
        %v1327 = vpack.c.bf16 %v1315, %v1313
        %v1328 = vpack.c.bf16 %v1319, %v1317
        %v1329 = vpack.c.bf16 %v1323, %v1321
        %v1330 = vpack.c.bf16 %v1325, %v1325
        %s1331 = scalar_lea.vmem [#allocation11], 128
        %v1332 = vld [vmem:[%s1331] sm:$0xf]
        %v1333 = vld [vmem:[%s1331 + $0x4] sm:$0xf]
        %v1334 = vld [vmem:[%s1331 + $0x8] sm:$0xf]
        %v1335 = vld [vmem:[%s1331 + $0xc] sm:$0xf]
        %v1336 = vld [vmem:[%s1331 + $0x10] sm:$0xf]
        %v1337 = vld [vmem:[%s1331 + $0x14] sm:$0xf]
        %v1338 = vld [vmem:[%s1331 + $0x18] sm:$0xf]
        %v1339 = vld [vmem:[%s1331 + $0x1c] sm:$0xf]
        %v1340 = vld [vmem:[%s1331 + $0x20] sm:$0xf]
        %v1341 = vld [vmem:[%s1331 + $0x24] sm:$0xf]
        %v1342 = vld [vmem:[%s1331 + $0x28] sm:$0xf]
        %v1343 = vld [vmem:[%s1331 + $0x2c] sm:$0xf]
        %v1344 = vld [vmem:[%s1331 + $0x30] sm:$0xf]
        %v1345 = vld [vmem:[%s1331 + $0x34] sm:$0xf]
        %v1346 = vld [vmem:[%s1331 + $0x38] sm:$0xf]
        %v1347 = vld [vmem:[%s1331 + $0x3c] sm:$0xf]
        %v1364 = vunpack.c.l.b16 %v1332
        %v1365 = vunpack.c.l.b16 %v1333
        %v1366 = vunpack.c.l.b16 %v1334
        %v1367 = vunpack.c.l.b16 %v1335
        %v1368 = vunpack.c.l.b16 %v1336
        %v1369 = vunpack.c.l.b16 %v1337
        %v1370 = vunpack.c.l.b16 %v1338
        %v1371 = vunpack.c.l.b16 %v1339
        %v1372 = vunpack.c.l.b16 %v1340
        %v1373 = vunpack.c.l.b16 %v1341
        %v1374 = vunpack.c.l.b16 %v1342
        %v1375 = vunpack.c.l.b16 %v1343
        %v1376 = vunpack.c.l.b16 %v1344
        %v1377 = vunpack.c.l.b16 %v1345
        %v1378 = vunpack.c.l.b16 %v1346
        %v1379 = vunpack.c.l.b16 %v1347
        %v1380 = vpack.c.b16 %v1365, %v1364
        %v1381 = vpack.c.b16 %v1367, %v1366
        %v1382 = vpack.c.b16 %v1369, %v1368
        %v1383 = vpack.c.b16 %v1371, %v1370
        %v1384 = vpack.c.b16 %v1373, %v1372
        %v1385 = vpack.c.b16 %v1375, %v1374
        %v1386 = vpack.c.b16 %v1377, %v1376
        %v1387 = vpack.c.b16 %v1379, %v1378
        %1396 = vmatpush.bf16.msra.mxu0 %v1387
        %1397 = vmatpush.bf16.msra.mxu0 %v1386
        %1398 = vmatpush.bf16.msra.mxu0 %v1385
        %1399 = vmatpush.bf16.msra.mxu0 %v1384
        %1400 = vmatpush.bf16.msra.mxu0 %v1383
        %1401 = vmatpush.bf16.msra.mxu0 %v1382
        %1402 = vmatpush.bf16.msra.mxu0 %v1381
        %1403 = vmatpush.bf16.msra.mxu0 %v1380
        %1404 = vmatmul.bf16.gmra.mxu0 %v1326
        %v1405 = vpop.f32.mrf.mxu0
        %v1406 = vadd.f32 0.0, %v1405
        %v1407 = vpop.f32.mrf.mxu0
        %v1408 = vadd.f32 0.0, %v1407
        %1409 = vmatmul.bf16.gmra.mxu0 %v1327
        %v1410 = vpop.f32.mrf.mxu0
        %v1411 = vadd.f32 0.0, %v1410
        %v1412 = vpop.f32.mrf.mxu0
        %v1413 = vadd.f32 0.0, %v1412
        %1414 = vmatmul.bf16.gmra.mxu0 %v1328
        %v1415 = vpop.f32.mrf.mxu0
        %v1416 = vadd.f32 0.0, %v1415
        %v1417 = vpop.f32.mrf.mxu0
        %v1418 = vadd.f32 0.0, %v1417
        %1419 = vmatmul.bf16.gmra.mxu0 %v1329
        %v1420 = vpop.f32.mrf.mxu0
        %v1421 = vadd.f32 0.0, %v1420
        %v1422 = vpop.f32.mrf.mxu0
        %v1423 = vadd.f32 0.0, %v1422
        %1424 = vmatmul.bf16.gmra.mxu0 %v1330
        %v1425 = vpop.f32.mrf.mxu0
        %v1426 = vadd.f32 0.0, %v1425
        %v1427 = vpop.f32.mrf.mxu0
        %1428 = vdwg.mxu0
        %v1429 = vadd.f32 %v1285, %v1406
        %v1430 = vadd.f32 %v1287, %v1408
        %v1431 = vadd.f32 %v1290, %v1411
        %v1432 = vadd.f32 %v1292, %v1413
        %v1433 = vadd.f32 %v1295, %v1416
        %v1434 = vadd.f32 %v1297, %v1418
        %v1435 = vadd.f32 %v1300, %v1421
        %v1436 = vadd.f32 %v1302, %v1423
        %v1437 = vadd.f32 %v1305, %v1426
        %vm1438 = vcmp.gt.f32.partialorder %v1429, 0.0
        %vm1439 = vcmp.gt.f32.partialorder %v1430, 0.0
        %vm1440 = vcmp.gt.f32.partialorder %v1431, 0.0
        %vm1441 = vcmp.gt.f32.partialorder %v1432, 0.0
        %vm1442 = vcmp.gt.f32.partialorder %v1433, 0.0
        %vm1443 = vcmp.gt.f32.partialorder %v1434, 0.0
        %vm1444 = vcmp.gt.f32.partialorder %v1435, 0.0
        %vm1445 = vcmp.gt.f32.partialorder %v1436, 0.0
        %vm1446 = vcmp.gt.f32.partialorder %v1437, 0.0
        %v1447 = vmul.f32 %v1429, 0.2
        %v1448 = vmul.f32 %v1430, 0.2
        %v1449 = vmul.f32 %v1431, 0.2
        %v1450 = vmul.f32 %v1432, 0.2
        %v1451 = vmul.f32 %v1433, 0.2
        %v1452 = vmul.f32 %v1434, 0.2
        %v1453 = vmul.f32 %v1435, 0.2
        %v1454 = vmul.f32 %v1436, 0.2
        %v1455 = vmul.f32 %v1437, 0.2
        %v1456 = vsel %vm1438, %v1429, %v1447
        %v1457 = vsel %vm1439, %v1430, %v1448
        %v1458 = vsel %vm1440, %v1431, %v1449
        %v1459 = vsel %vm1441, %v1432, %v1450
        %v1460 = vsel %vm1442, %v1433, %v1451
        %v1461 = vsel %vm1443, %v1434, %v1452
        %v1462 = vsel %vm1444, %v1435, %v1453
        %v1463 = vsel %vm1445, %v1436, %v1454
        %v1464 = vsel %vm1446, %v1437, %v1455
        %1465 = vst [vmem:[%s663] sm:$0xff] %v1456
        %1466 = vst [vmem:[%s663 + $0x8] sm:$0xff] %v1457
        %1467 = vst [vmem:[#allocation3 + $0x1] sm:$0xff] %v1456
        %1468 = vst [vmem:[#allocation3 + $0x9] sm:$0xff] %v1457
        %s1469 = scalar_lea.vmem %s663, 16
        %1470 = vst [vmem:[%s1469 - $0x1] sm:$0xfe] %v1458
        %1471 = vst [vmem:[%s1469 + $0x7] sm:$0xff] %v1459
        %1472 = vst [vmem:[%s1469 + $0xf] sm:$0x1] %v1460
        %1473 = vst [vmem:[#allocation3 + $0x12] sm:$0xfe] %v1458
        %1474 = vst [vmem:[#allocation3 + $0x1a] sm:$0xff] %v1459
        %1475 = vst [vmem:[#allocation3 + $0x22] sm:$0x1] %v1460
        %s1476 = scalar_lea.vmem %s663, 32
        %1477 = vst [vmem:[%s1476 - $0x2] sm:$0xfc] %v1460
        %1478 = vst [vmem:[%s1476 + $0x6] sm:$0xff] %v1461
        %1479 = vst [vmem:[%s1476 + $0xe] sm:$0x3] %v1462
        %1480 = vst [vmem:[#allocation3 + $0x23] sm:$0xfc] %v1460
        %1481 = vst [vmem:[#allocation3 + $0x2b] sm:$0xff] %v1461
        %1482 = vst [vmem:[#allocation3 + $0x33] sm:$0x3] %v1462
        %s1483 = scalar_lea.vmem %s663, 48
        %1484 = vst [vmem:[%s1483 - $0x3] sm:$0xf8] %v1462
        %1485 = vst [vmem:[%s1483 + $0x5] sm:$0xff] %v1463
        %1486 = vst [vmem:[%s1483 + $0xd] sm:$0x7] %v1464
        %1487 = vst [vmem:[#allocation3 + $0x34] sm:$0xf8] %v1462
        %1488 = vst [vmem:[#allocation3 + $0x3c] sm:$0xff] %v1463
        %1489 = vst [vmem:[#allocation3 + $0x44] sm:$0x7] %v1464
        %v1490 = vld [vmem:[#allocation3] ss:$2 sm:$0xff]
        %s1491 = scalar_lea.vmem [#allocation3], 16
        %v1492 = vld [vmem:[%s1491] ss:$2 sm:$0xff]
        %s1493 = scalar_lea.vmem [#allocation3], 32
        %v1494 = vld [vmem:[%s1493] ss:$2 sm:$0xff]
        %s1495 = scalar_lea.vmem [#allocation3], 48
        %v1496 = vld [vmem:[%s1495] ss:$2 sm:$0xff]
        %s1497 = scalar_lea.vmem [#allocation3], 64
        %v1498 = vld [vmem:[%s1497] ss:$2 sm:$0xf]
        %v1499 = vpack.c.bf16 %v1492, %v1490
        %v1500 = vpack.c.bf16 %v1496, %v1494
        %v1501 = vpack.c.bf16 %v1498, %v1498
        %v1502 = vld [vmem:[#allocation12] sm:$0xf]
        %v1503 = vld [vmem:[#allocation12 + $0x4] sm:$0xf]
        %v1504 = vld [vmem:[#allocation12 + $0x8] sm:$0xf]
        %v1505 = vld [vmem:[#allocation12 + $0xc] sm:$0xf]
        %v1506 = vld [vmem:[#allocation12 + $0x10] sm:$0xf]
        %v1507 = vld [vmem:[#allocation12 + $0x14] sm:$0xf]
        %v1508 = vld [vmem:[#allocation12 + $0x18] sm:$0xf]
        %v1509 = vld [vmem:[#allocation12 + $0x1c] sm:$0xf]
        %v1510 = vld [vmem:[#allocation12 + $0x20] sm:$0xf]
        %v1511 = vld [vmem:[#allocation12 + $0x24] sm:$0xf]
        %v1512 = vld [vmem:[#allocation12 + $0x28] sm:$0xf]
        %v1513 = vld [vmem:[#allocation12 + $0x2c] sm:$0xf]
        %v1514 = vld [vmem:[#allocation12 + $0x30] sm:$0xf]
        %v1515 = vld [vmem:[#allocation12 + $0x34] sm:$0xf]
        %v1516 = vld [vmem:[#allocation12 + $0x38] sm:$0xf]
        %v1517 = vld [vmem:[#allocation12 + $0x3c] sm:$0xf]
        %s1518 = scalar_lea.vmem [#allocation3], 1
        %v1519 = vld [vmem:[%s1518] ss:$2 sm:$0xff]
        %s1520 = scalar_lea.vmem [#allocation3], 17
        %v1521 = vld [vmem:[%s1520] ss:$2 sm:$0xff]
        %s1522 = scalar_lea.vmem [#allocation3], 33
        %v1523 = vld [vmem:[%s1522] ss:$2 sm:$0xff]
        %s1524 = scalar_lea.vmem [#allocation3], 49
        %v1525 = vld [vmem:[%s1524] ss:$2 sm:$0xff]
        %s1526 = scalar_lea.vmem [#allocation3], 65
        %v1527 = vld [vmem:[%s1526] ss:$2 sm:$0xf]
        %v1528 = vpack.c.bf16 %v1521, %v1519
        %v1529 = vpack.c.bf16 %v1525, %v1523
        %v1530 = vpack.c.bf16 %v1527, %v1527
        %s1531 = scalar_lea.vmem [#allocation12], 64
        %v1532 = vld [vmem:[%s1531] sm:$0xf]
        %v1533 = vld [vmem:[%s1531 + $0x4] sm:$0xf]
        %v1534 = vld [vmem:[%s1531 + $0x8] sm:$0xf]
        %v1535 = vld [vmem:[%s1531 + $0xc] sm:$0xf]
        %v1536 = vld [vmem:[%s1531 + $0x10] sm:$0xf]
        %v1537 = vld [vmem:[%s1531 + $0x14] sm:$0xf]
        %v1538 = vld [vmem:[%s1531 + $0x18] sm:$0xf]
        %v1539 = vld [vmem:[%s1531 + $0x1c] sm:$0xf]
        %v1540 = vld [vmem:[%s1531 + $0x20] sm:$0xf]
        %v1541 = vld [vmem:[%s1531 + $0x24] sm:$0xf]
        %v1542 = vld [vmem:[%s1531 + $0x28] sm:$0xf]
        %v1543 = vld [vmem:[%s1531 + $0x2c] sm:$0xf]
        %v1544 = vld [vmem:[%s1531 + $0x30] sm:$0xf]
        %v1545 = vld [vmem:[%s1531 + $0x34] sm:$0xf]
        %v1546 = vld [vmem:[%s1531 + $0x38] sm:$0xf]
        %v1547 = vld [vmem:[%s1531 + $0x3c] sm:$0xf]
        %v1564 = vunpack.c.l.b16 %v1532
        %v1565 = vunpack.c.l.b16 %v1533
        %v1566 = vunpack.c.l.b16 %v1534
        %v1567 = vunpack.c.l.b16 %v1535
        %v1568 = vunpack.c.l.b16 %v1536
        %v1569 = vunpack.c.l.b16 %v1537
        %v1570 = vunpack.c.l.b16 %v1538
        %v1571 = vunpack.c.l.b16 %v1539
        %v1572 = vunpack.c.l.b16 %v1540
        %v1573 = vunpack.c.l.b16 %v1541
        %v1574 = vunpack.c.l.b16 %v1542
        %v1575 = vunpack.c.l.b16 %v1543
        %v1576 = vunpack.c.l.b16 %v1544
        %v1577 = vunpack.c.l.b16 %v1545
        %v1578 = vunpack.c.l.b16 %v1546
        %v1579 = vunpack.c.l.b16 %v1547
        %v1580 = vpack.c.b16 %v1565, %v1564
        %v1581 = vpack.c.b16 %v1567, %v1566
        %v1582 = vpack.c.b16 %v1569, %v1568
        %v1583 = vpack.c.b16 %v1571, %v1570
        %v1584 = vpack.c.b16 %v1573, %v1572
        %v1585 = vpack.c.b16 %v1575, %v1574
        %v1586 = vpack.c.b16 %v1577, %v1576
        %v1587 = vpack.c.b16 %v1579, %v1578
        %1596 = vmatpush.bf16.msra.mxu0 %v1587
        %1597 = vmatpush.bf16.msra.mxu0 %v1586
        %1598 = vmatpush.bf16.msra.mxu0 %v1585
        %1599 = vmatpush.bf16.msra.mxu0 %v1584
        %1600 = vmatpush.bf16.msra.mxu0 %v1583
        %1601 = vmatpush.bf16.msra.mxu0 %v1582
        %1602 = vmatpush.bf16.msra.mxu0 %v1581
        %1603 = vmatpush.bf16.msra.mxu0 %v1580
        %1604 = vmatmul.bf16.gmra.mxu0 %v1528
        %v1605 = vpop.f32.mrf.mxu0
        %v1606 = vadd.f32 0.0, %v1605
        %v1607 = vpop.f32.mrf.mxu0
        %v1608 = vadd.f32 0.0, %v1607
        %1609 = vmatmul.bf16.gmra.mxu0 %v1529
        %v1610 = vpop.f32.mrf.mxu0
        %v1611 = vadd.f32 0.0, %v1610
        %v1612 = vpop.f32.mrf.mxu0
        %v1613 = vadd.f32 0.0, %v1612
        %1614 = vmatmul.bf16.gmra.mxu0 %v1530
        %v1615 = vpop.f32.mrf.mxu0
        %v1616 = vadd.f32 0.0, %v1615
        %v1617 = vpop.f32.mrf.mxu0
        %1618 = vdwg.mxu0
        %v1635 = vunpack.c.l.b16 %v1502
        %v1636 = vunpack.c.l.b16 %v1503
        %v1637 = vunpack.c.l.b16 %v1504
        %v1638 = vunpack.c.l.b16 %v1505
        %v1639 = vunpack.c.l.b16 %v1506
        %v1640 = vunpack.c.l.b16 %v1507
        %v1641 = vunpack.c.l.b16 %v1508
        %v1642 = vunpack.c.l.b16 %v1509
        %v1643 = vunpack.c.l.b16 %v1510
        %v1644 = vunpack.c.l.b16 %v1511
        %v1645 = vunpack.c.l.b16 %v1512
        %v1646 = vunpack.c.l.b16 %v1513
        %v1647 = vunpack.c.l.b16 %v1514
        %v1648 = vunpack.c.l.b16 %v1515
        %v1649 = vunpack.c.l.b16 %v1516
        %v1650 = vunpack.c.l.b16 %v1517
        %v1651 = vpack.c.b16 %v1636, %v1635
        %v1652 = vpack.c.b16 %v1638, %v1637
        %v1653 = vpack.c.b16 %v1640, %v1639
        %v1654 = vpack.c.b16 %v1642, %v1641
        %v1655 = vpack.c.b16 %v1644, %v1643
        %v1656 = vpack.c.b16 %v1646, %v1645
        %v1657 = vpack.c.b16 %v1648, %v1647
        %v1658 = vpack.c.b16 %v1650, %v1649
        %1667 = vmatpush.bf16.msra.mxu0 %v1658
        %1668 = vmatpush.bf16.msra.mxu0 %v1657
        %1669 = vmatpush.bf16.msra.mxu0 %v1656
        %1670 = vmatpush.bf16.msra.mxu0 %v1655
        %1671 = vmatpush.bf16.msra.mxu0 %v1654
        %1672 = vmatpush.bf16.msra.mxu0 %v1653
        %1673 = vmatpush.bf16.msra.mxu0 %v1652
        %1674 = vmatpush.bf16.msra.mxu0 %v1651
        %1675 = vmatmul.bf16.gmra.mxu0 %v1499
        %v1676 = vpop.f32.mrf.mxu0
        %v1677 = vadd.f32 %v1606, %v1676
        %v1678 = vpop.f32.mrf.mxu0
        %v1679 = vadd.f32 %v1608, %v1678
        %1680 = vmatmul.bf16.gmra.mxu0 %v1500
        %v1681 = vpop.f32.mrf.mxu0
        %v1682 = vadd.f32 %v1611, %v1681
        %v1683 = vpop.f32.mrf.mxu0
        %v1684 = vadd.f32 %v1613, %v1683
        %1685 = vmatmul.bf16.gmra.mxu0 %v1501
        %v1686 = vpop.f32.mrf.mxu0
        %v1687 = vadd.f32 %v1616, %v1686
        %v1688 = vpop.f32.mrf.mxu0
        %1689 = vdwg.mxu0
        %s1690 = scalar_lea.vmem [#allocation3], 2
        %v1691 = vld [vmem:[%s1690] ss:$2 sm:$0xff]
        %s1692 = scalar_lea.vmem [#allocation3], 18
        %v1693 = vld [vmem:[%s1692] ss:$2 sm:$0xff]
        %s1694 = scalar_lea.vmem [#allocation3], 34
        %v1695 = vld [vmem:[%s1694] ss:$2 sm:$0xff]
        %s1696 = scalar_lea.vmem [#allocation3], 50
        %v1697 = vld [vmem:[%s1696] ss:$2 sm:$0xff]
        %s1698 = scalar_lea.vmem [#allocation3], 66
        %v1699 = vld [vmem:[%s1698] ss:$2 sm:$0xf]
        %v1700 = vpack.c.bf16 %v1693, %v1691
        %v1701 = vpack.c.bf16 %v1697, %v1695
        %v1702 = vpack.c.bf16 %v1699, %v1699
        %s1703 = scalar_lea.vmem [#allocation12], 128
        %v1704 = vld [vmem:[%s1703] sm:$0xf]
        %v1705 = vld [vmem:[%s1703 + $0x4] sm:$0xf]
        %v1706 = vld [vmem:[%s1703 + $0x8] sm:$0xf]
        %v1707 = vld [vmem:[%s1703 + $0xc] sm:$0xf]
        %v1708 = vld [vmem:[%s1703 + $0x10] sm:$0xf]
        %v1709 = vld [vmem:[%s1703 + $0x14] sm:$0xf]
        %v1710 = vld [vmem:[%s1703 + $0x18] sm:$0xf]
        %v1711 = vld [vmem:[%s1703 + $0x1c] sm:$0xf]
        %v1712 = vld [vmem:[%s1703 + $0x20] sm:$0xf]
        %v1713 = vld [vmem:[%s1703 + $0x24] sm:$0xf]
        %v1714 = vld [vmem:[%s1703 + $0x28] sm:$0xf]
        %v1715 = vld [vmem:[%s1703 + $0x2c] sm:$0xf]
        %v1716 = vld [vmem:[%s1703 + $0x30] sm:$0xf]
        %v1717 = vld [vmem:[%s1703 + $0x34] sm:$0xf]
        %v1718 = vld [vmem:[%s1703 + $0x38] sm:$0xf]
        %v1719 = vld [vmem:[%s1703 + $0x3c] sm:$0xf]
        %v1736 = vunpack.c.l.b16 %v1704
        %v1737 = vunpack.c.l.b16 %v1705
        %v1738 = vunpack.c.l.b16 %v1706
        %v1739 = vunpack.c.l.b16 %v1707
        %v1740 = vunpack.c.l.b16 %v1708
        %v1741 = vunpack.c.l.b16 %v1709
        %v1742 = vunpack.c.l.b16 %v1710
        %v1743 = vunpack.c.l.b16 %v1711
        %v1744 = vunpack.c.l.b16 %v1712
        %v1745 = vunpack.c.l.b16 %v1713
        %v1746 = vunpack.c.l.b16 %v1714
        %v1747 = vunpack.c.l.b16 %v1715
        %v1748 = vunpack.c.l.b16 %v1716
        %v1749 = vunpack.c.l.b16 %v1717
        %v1750 = vunpack.c.l.b16 %v1718
        %v1751 = vunpack.c.l.b16 %v1719
        %v1752 = vpack.c.b16 %v1737, %v1736
        %v1753 = vpack.c.b16 %v1739, %v1738
        %v1754 = vpack.c.b16 %v1741, %v1740
        %v1755 = vpack.c.b16 %v1743, %v1742
        %v1756 = vpack.c.b16 %v1745, %v1744
        %v1757 = vpack.c.b16 %v1747, %v1746
        %v1758 = vpack.c.b16 %v1749, %v1748
        %v1759 = vpack.c.b16 %v1751, %v1750
        %1768 = vmatpush.bf16.msra.mxu0 %v1759
        %1769 = vmatpush.bf16.msra.mxu0 %v1758
        %1770 = vmatpush.bf16.msra.mxu0 %v1757
        %1771 = vmatpush.bf16.msra.mxu0 %v1756
        %1772 = vmatpush.bf16.msra.mxu0 %v1755
        %1773 = vmatpush.bf16.msra.mxu0 %v1754
        %1774 = vmatpush.bf16.msra.mxu0 %v1753
        %1775 = vmatpush.bf16.msra.mxu0 %v1752
        %1776 = vmatmul.bf16.gmra.mxu0 %v1700
        %v1777 = vpop.f32.mrf.mxu0
        %v1778 = vadd.f32 0.0, %v1777
        %v1779 = vpop.f32.mrf.mxu0
        %v1780 = vadd.f32 0.0, %v1779
        %1781 = vmatmul.bf16.gmra.mxu0 %v1701
        %v1782 = vpop.f32.mrf.mxu0
        %v1783 = vadd.f32 0.0, %v1782
        %v1784 = vpop.f32.mrf.mxu0
        %v1785 = vadd.f32 0.0, %v1784
        %1786 = vmatmul.bf16.gmra.mxu0 %v1702
        %v1787 = vpop.f32.mrf.mxu0
        %v1788 = vadd.f32 0.0, %v1787
        %v1789 = vpop.f32.mrf.mxu0
        %1790 = vdwg.mxu0
        %v1791 = vadd.f32 %v1677, %v1778
        %v1792 = vadd.f32 %v1679, %v1780
        %v1793 = vadd.f32 %v1682, %v1783
        %v1794 = vadd.f32 %v1684, %v1785
        %v1795 = vadd.f32 %v1687, %v1788
        %v1796 = vld [vmem:[%s7] sm:$0x1]
        %v1798 = vperm.slane %v1796, 0
        %v1800 = vadd.f32 %v1791, %v1798
        %v1801 = vadd.f32 %v1792, %v1798
        %v1802 = vadd.f32 %v1793, %v1798
        %v1803 = vadd.f32 %v1794, %v1798
        %v1804 = vadd.f32 %v1795, %v1798
        %vm1805 = vcmp.gt.f32.partialorder %v1800, 0.0
        %vm1806 = vcmp.gt.f32.partialorder %v1801, 0.0
        %vm1807 = vcmp.gt.f32.partialorder %v1802, 0.0
        %vm1808 = vcmp.gt.f32.partialorder %v1803, 0.0
        %vm1809 = vcmp.gt.f32.partialorder %v1804, 0.0
        %v1810 = vmul.f32 %v1800, 0.2
        %v1811 = vmul.f32 %v1801, 0.2
        %v1812 = vmul.f32 %v1802, 0.2
        %v1813 = vmul.f32 %v1803, 0.2
        %v1814 = vmul.f32 %v1804, 0.2
        %v1815 = vsel %vm1805, %v1800, %v1810
        %v1816 = vsel %vm1806, %v1801, %v1811
        %v1817 = vsel %vm1807, %v1802, %v1812
        %v1818 = vsel %vm1808, %v1803, %v1813
        %v1819 = vsel %vm1809, %v1804, %v1814
        %1820 = vst [vmem:[%s669] sm:$0xff] %v1815
        %1821 = vst [vmem:[#allocation4 + $0x1] sm:$0xff] %v1815
        %s1822 = scalar_lea.vmem %s669, 8
        %1823 = vst [vmem:[%s1822 - $0x1] sm:$0xfe] %v1816
        %1824 = vst [vmem:[%s1822 + $0x7] sm:$0x1] %v1817
        %1825 = vst [vmem:[#allocation4 + $0xa] sm:$0xfe] %v1816
        %1826 = vst [vmem:[#allocation4 + $0x12] sm:$0x1] %v1817
        %s1827 = scalar_lea.vmem %s669, 16
        %1828 = vst [vmem:[%s1827 - $0x2] sm:$0xfc] %v1817
        %1829 = vst [vmem:[%s1827 + $0x6] sm:$0x3] %v1818
        %1830 = vst [vmem:[#allocation4 + $0x13] sm:$0xfc] %v1817
        %1831 = vst [vmem:[#allocation4 + $0x1b] sm:$0x3] %v1818
        %s1832 = scalar_lea.vmem %s669, 24
        %1833 = vst [vmem:[%s1832 - $0x3] sm:$0xf8] %v1818
        %1834 = vst [vmem:[%s1832 + $0x5] sm:$0x7] %v1819
        %1835 = vst [vmem:[#allocation4 + $0x1c] sm:$0xf8] %v1818
        %1836 = vst [vmem:[#allocation4 + $0x24] sm:$0x7] %v1819
        %v1837 = vld [vmem:[#allocation4] ss:$2 sm:$0xff]
        %s1838 = scalar_lea.vmem [#allocation4], 16
        %v1839 = vld [vmem:[%s1838] ss:$2 sm:$0xff]
        %s1840 = scalar_lea.vmem [#allocation4], 32
        %v1841 = vld [vmem:[%s1840] ss:$2 sm:$0xf]
        %v1842 = vpack.c.bf16 %v1839, %v1837
        %v1843 = vpack.c.bf16 %v1841, %v1841
        %v1844 = vld [vmem:[#allocation14] sm:$0xf]
        %v1845 = vld [vmem:[#allocation14 + $0x4] sm:$0xf]
        %v1846 = vld [vmem:[#allocation14 + $0x8] sm:$0xf]
        %v1847 = vld [vmem:[#allocation14 + $0xc] sm:$0xf]
        %v1848 = vld [vmem:[#allocation14 + $0x10] sm:$0xf]
        %v1849 = vld [vmem:[#allocation14 + $0x14] sm:$0xf]
        %v1850 = vld [vmem:[#allocation14 + $0x18] sm:$0xf]
        %v1851 = vld [vmem:[#allocation14 + $0x1c] sm:$0xf]
        %v1852 = vld [vmem:[#allocation14 + $0x20] sm:$0xf]
        %v1853 = vld [vmem:[#allocation14 + $0x24] sm:$0xf]
        %v1854 = vld [vmem:[#allocation14 + $0x28] sm:$0xf]
        %v1855 = vld [vmem:[#allocation14 + $0x2c] sm:$0xf]
        %v1856 = vld [vmem:[#allocation14 + $0x30] sm:$0xf]
        %v1857 = vld [vmem:[#allocation14 + $0x34] sm:$0xf]
        %v1858 = vld [vmem:[#allocation14 + $0x38] sm:$0xf]
        %v1859 = vld [vmem:[#allocation14 + $0x3c] sm:$0xf]
        %s1860 = scalar_lea.vmem [#allocation4], 1
        %v1861 = vld [vmem:[%s1860] ss:$2 sm:$0xff]
        %s1862 = scalar_lea.vmem [#allocation4], 17
        %v1863 = vld [vmem:[%s1862] ss:$2 sm:$0xff]
        %s1864 = scalar_lea.vmem [#allocation4], 33
        %v1865 = vld [vmem:[%s1864] ss:$2 sm:$0xf]
        %v1866 = vpack.c.bf16 %v1863, %v1861
        %v1867 = vpack.c.bf16 %v1865, %v1865
        %s1868 = scalar_lea.vmem [#allocation14], 64
        %v1869 = vld [vmem:[%s1868] sm:$0xf]
        %v1870 = vld [vmem:[%s1868 + $0x4] sm:$0xf]
        %v1871 = vld [vmem:[%s1868 + $0x8] sm:$0xf]
        %v1872 = vld [vmem:[%s1868 + $0xc] sm:$0xf]
        %v1873 = vld [vmem:[%s1868 + $0x10] sm:$0xf]
        %v1874 = vld [vmem:[%s1868 + $0x14] sm:$0xf]
        %v1875 = vld [vmem:[%s1868 + $0x18] sm:$0xf]
        %v1876 = vld [vmem:[%s1868 + $0x1c] sm:$0xf]
        %v1877 = vld [vmem:[%s1868 + $0x20] sm:$0xf]
        %v1878 = vld [vmem:[%s1868 + $0x24] sm:$0xf]
        %v1879 = vld [vmem:[%s1868 + $0x28] sm:$0xf]
        %v1880 = vld [vmem:[%s1868 + $0x2c] sm:$0xf]
        %v1881 = vld [vmem:[%s1868 + $0x30] sm:$0xf]
        %v1882 = vld [vmem:[%s1868 + $0x34] sm:$0xf]
        %v1883 = vld [vmem:[%s1868 + $0x38] sm:$0xf]
        %v1884 = vld [vmem:[%s1868 + $0x3c] sm:$0xf]
        %v1901 = vunpack.c.l.b16 %v1869
        %v1902 = vunpack.c.l.b16 %v1870
        %v1903 = vunpack.c.l.b16 %v1871
        %v1904 = vunpack.c.l.b16 %v1872
        %v1905 = vunpack.c.l.b16 %v1873
        %v1906 = vunpack.c.l.b16 %v1874
        %v1907 = vunpack.c.l.b16 %v1875
        %v1908 = vunpack.c.l.b16 %v1876
        %v1909 = vunpack.c.l.b16 %v1877
        %v1910 = vunpack.c.l.b16 %v1878
        %v1911 = vunpack.c.l.b16 %v1879
        %v1912 = vunpack.c.l.b16 %v1880
        %v1913 = vunpack.c.l.b16 %v1881
        %v1914 = vunpack.c.l.b16 %v1882
        %v1915 = vunpack.c.l.b16 %v1883
        %v1916 = vunpack.c.l.b16 %v1884
        %v1917 = vpack.c.b16 %v1902, %v1901
        %v1918 = vpack.c.b16 %v1904, %v1903
        %v1919 = vpack.c.b16 %v1906, %v1905
        %v1920 = vpack.c.b16 %v1908, %v1907
        %v1921 = vpack.c.b16 %v1910, %v1909
        %v1922 = vpack.c.b16 %v1912, %v1911
        %v1923 = vpack.c.b16 %v1914, %v1913
        %v1924 = vpack.c.b16 %v1916, %v1915
        %1933 = vmatpush.bf16.msra.mxu0 %v1924
        %1934 = vmatpush.bf16.msra.mxu0 %v1923
        %1935 = vmatpush.bf16.msra.mxu0 %v1922
        %1936 = vmatpush.bf16.msra.mxu0 %v1921
        %1937 = vmatpush.bf16.msra.mxu0 %v1920
        %1938 = vmatpush.bf16.msra.mxu0 %v1919
        %1939 = vmatpush.bf16.msra.mxu0 %v1918
        %1940 = vmatpush.bf16.msra.mxu0 %v1917
        %1941 = vmatmul.bf16.gmra.mxu0 %v1866
        %v1942 = vpop.f32.mrf.mxu0
        %v1943 = vadd.f32 0.0, %v1942
        %v1944 = vpop.f32.mrf.mxu0
        %v1945 = vadd.f32 0.0, %v1944
        %1946 = vmatmul.bf16.gmra.mxu0 %v1867
        %v1947 = vpop.f32.mrf.mxu0
        %v1948 = vadd.f32 0.0, %v1947
        %v1949 = vpop.f32.mrf.mxu0
        %1950 = vdwg.mxu0
        %v1967 = vunpack.c.l.b16 %v1844
        %v1968 = vunpack.c.l.b16 %v1845
        %v1969 = vunpack.c.l.b16 %v1846
        %v1970 = vunpack.c.l.b16 %v1847
        %v1971 = vunpack.c.l.b16 %v1848
        %v1972 = vunpack.c.l.b16 %v1849
        %v1973 = vunpack.c.l.b16 %v1850
        %v1974 = vunpack.c.l.b16 %v1851
        %v1975 = vunpack.c.l.b16 %v1852
        %v1976 = vunpack.c.l.b16 %v1853
        %v1977 = vunpack.c.l.b16 %v1854
        %v1978 = vunpack.c.l.b16 %v1855
        %v1979 = vunpack.c.l.b16 %v1856
        %v1980 = vunpack.c.l.b16 %v1857
        %v1981 = vunpack.c.l.b16 %v1858
        %v1982 = vunpack.c.l.b16 %v1859
        %v1983 = vpack.c.b16 %v1968, %v1967
        %v1984 = vpack.c.b16 %v1970, %v1969
        %v1985 = vpack.c.b16 %v1972, %v1971
        %v1986 = vpack.c.b16 %v1974, %v1973
        %v1987 = vpack.c.b16 %v1976, %v1975
        %v1988 = vpack.c.b16 %v1978, %v1977
        %v1989 = vpack.c.b16 %v1980, %v1979
        %v1990 = vpack.c.b16 %v1982, %v1981
        %1999 = vmatpush.bf16.msra.mxu0 %v1990
        %2000 = vmatpush.bf16.msra.mxu0 %v1989
        %2001 = vmatpush.bf16.msra.mxu0 %v1988
        %2002 = vmatpush.bf16.msra.mxu0 %v1987
        %2003 = vmatpush.bf16.msra.mxu0 %v1986
        %2004 = vmatpush.bf16.msra.mxu0 %v1985
        %2005 = vmatpush.bf16.msra.mxu0 %v1984
        %2006 = vmatpush.bf16.msra.mxu0 %v1983
        %2007 = vmatmul.bf16.gmra.mxu0 %v1842
        %v2008 = vpop.f32.mrf.mxu0
        %v2009 = vadd.f32 %v1943, %v2008
        %v2010 = vpop.f32.mrf.mxu0
        %v2011 = vadd.f32 %v1945, %v2010
        %2012 = vmatmul.bf16.gmra.mxu0 %v1843
        %v2013 = vpop.f32.mrf.mxu0
        %v2014 = vadd.f32 %v1948, %v2013
        %v2015 = vpop.f32.mrf.mxu0
        %2016 = vdwg.mxu0
        %s2017 = scalar_lea.vmem [#allocation4], 2
        %v2018 = vld [vmem:[%s2017] ss:$2 sm:$0xff]
        %s2019 = scalar_lea.vmem [#allocation4], 18
        %v2020 = vld [vmem:[%s2019] ss:$2 sm:$0xff]
        %s2021 = scalar_lea.vmem [#allocation4], 34
        %v2022 = vld [vmem:[%s2021] ss:$2 sm:$0xf]
        %v2023 = vpack.c.bf16 %v2020, %v2018
        %v2024 = vpack.c.bf16 %v2022, %v2022
        %s2025 = scalar_lea.vmem [#allocation14], 128
        %v2026 = vld [vmem:[%s2025] sm:$0xf]
        %v2027 = vld [vmem:[%s2025 + $0x4] sm:$0xf]
        %v2028 = vld [vmem:[%s2025 + $0x8] sm:$0xf]
        %v2029 = vld [vmem:[%s2025 + $0xc] sm:$0xf]
        %v2030 = vld [vmem:[%s2025 + $0x10] sm:$0xf]
        %v2031 = vld [vmem:[%s2025 + $0x14] sm:$0xf]
        %v2032 = vld [vmem:[%s2025 + $0x18] sm:$0xf]
        %v2033 = vld [vmem:[%s2025 + $0x1c] sm:$0xf]
        %v2034 = vld [vmem:[%s2025 + $0x20] sm:$0xf]
        %v2035 = vld [vmem:[%s2025 + $0x24] sm:$0xf]
        %v2036 = vld [vmem:[%s2025 + $0x28] sm:$0xf]
        %v2037 = vld [vmem:[%s2025 + $0x2c] sm:$0xf]
        %v2038 = vld [vmem:[%s2025 + $0x30] sm:$0xf]
        %v2039 = vld [vmem:[%s2025 + $0x34] sm:$0xf]
        %v2040 = vld [vmem:[%s2025 + $0x38] sm:$0xf]
        %v2041 = vld [vmem:[%s2025 + $0x3c] sm:$0xf]
        %v2058 = vunpack.c.l.b16 %v2026
        %v2059 = vunpack.c.l.b16 %v2027
        %v2060 = vunpack.c.l.b16 %v2028
        %v2061 = vunpack.c.l.b16 %v2029
        %v2062 = vunpack.c.l.b16 %v2030
        %v2063 = vunpack.c.l.b16 %v2031
        %v2064 = vunpack.c.l.b16 %v2032
        %v2065 = vunpack.c.l.b16 %v2033
        %v2066 = vunpack.c.l.b16 %v2034
        %v2067 = vunpack.c.l.b16 %v2035
        %v2068 = vunpack.c.l.b16 %v2036
        %v2069 = vunpack.c.l.b16 %v2037
        %v2070 = vunpack.c.l.b16 %v2038
        %v2071 = vunpack.c.l.b16 %v2039
        %v2072 = vunpack.c.l.b16 %v2040
        %v2073 = vunpack.c.l.b16 %v2041
        %v2074 = vpack.c.b16 %v2059, %v2058
        %v2075 = vpack.c.b16 %v2061, %v2060
        %v2076 = vpack.c.b16 %v2063, %v2062
        %v2077 = vpack.c.b16 %v2065, %v2064
        %v2078 = vpack.c.b16 %v2067, %v2066
        %v2079 = vpack.c.b16 %v2069, %v2068
        %v2080 = vpack.c.b16 %v2071, %v2070
        %v2081 = vpack.c.b16 %v2073, %v2072
        %2090 = vmatpush.bf16.msra.mxu0 %v2081
        %2091 = vmatpush.bf16.msra.mxu0 %v2080
        %2092 = vmatpush.bf16.msra.mxu0 %v2079
        %2093 = vmatpush.bf16.msra.mxu0 %v2078
        %2094 = vmatpush.bf16.msra.mxu0 %v2077
        %2095 = vmatpush.bf16.msra.mxu0 %v2076
        %2096 = vmatpush.bf16.msra.mxu0 %v2075
        %2097 = vmatpush.bf16.msra.mxu0 %v2074
        %2098 = vmatmul.bf16.gmra.mxu0 %v2023
        %v2099 = vpop.f32.mrf.mxu0
        %v2100 = vadd.f32 0.0, %v2099
        %v2101 = vpop.f32.mrf.mxu0
        %v2102 = vadd.f32 0.0, %v2101
        %2103 = vmatmul.bf16.gmra.mxu0 %v2024
        %v2104 = vpop.f32.mrf.mxu0
        %v2105 = vadd.f32 0.0, %v2104
        %v2106 = vpop.f32.mrf.mxu0
        %2107 = vdwg.mxu0
        %v2108 = vadd.f32 %v2009, %v2100
        %v2109 = vadd.f32 %v2011, %v2102
        %v2110 = vadd.f32 %v2014, %v2105
        %v2111 = vld [vmem:[%s8] sm:$0x1]
        %v2113 = vperm.slane %v2111, 0
        %v2115 = vadd.f32 %v2108, %v2113
        %v2116 = vadd.f32 %v2109, %v2113
        %v2117 = vadd.f32 %v2110, %v2113
        %vm2118 = vcmp.gt.f32.partialorder %v2115, 0.0
        %vm2119 = vcmp.gt.f32.partialorder %v2116, 0.0
        %vm2120 = vcmp.gt.f32.partialorder %v2117, 0.0
        %v2121 = vmul.f32 %v2115, 0.2
        %v2122 = vmul.f32 %v2116, 0.2
        %v2123 = vmul.f32 %v2117, 0.2
        %v2124 = vsel %vm2118, %v2115, %v2121
        %v2125 = vsel %vm2119, %v2116, %v2122
        %v2126 = vsel %vm2120, %v2117, %v2123
        %2127 = vst [vmem:[%s675] sm:$0xf] %v2124
        %2128 = vst [vmem:[#allocation5 + $0x1] sm:$0xf] %v2124
        %s2129 = scalar_lea.vmem %s675, 4
        %2130 = vst [vmem:[%s2129 - $0x5] sm:$0xe0] %v2124
        %2131 = vst [vmem:[%s2129 + $0x3] sm:$0x1] %v2125
        %2132 = vst [vmem:[#allocation5 + $0x2] sm:$0xe0] %v2124
        %2133 = vst [vmem:[#allocation5 + $0xa] sm:$0x1] %v2125
        %s2134 = scalar_lea.vmem %s675, 8
        %2135 = vst [vmem:[%s2134 - $0x2] sm:$0x3c] %v2125
        %2136 = vst [vmem:[#allocation5 + $0xb] sm:$0x3c] %v2125
        %s2137 = scalar_lea.vmem %s675, 12
        %2138 = vst [vmem:[%s2137 - $0x7] sm:$0x80] %v2125
        %2139 = vst [vmem:[%s2137 + $0x1] sm:$0x7] %v2126
        %2140 = vst [vmem:[#allocation5 + $0xc] sm:$0x80] %v2125
        %2141 = vst [vmem:[#allocation5 + $0x14] sm:$0x7] %v2126
        %v2142 = vld [vmem:[#allocation5] ss:$2 sm:$0xff]
        %s2143 = scalar_lea.vmem [#allocation5], 16
        %v2144 = vld [vmem:[%s2143] ss:$2 sm:$0xf]
        %v2145 = vpack.c.bf16 %v2144, %v2142
        %v2146 = vld [vmem:[#allocation15] sm:$0xf]
        %v2147 = vld [vmem:[#allocation15 + $0x4] sm:$0xf]
        %v2148 = vld [vmem:[#allocation15 + $0x8] sm:$0xf]
        %v2149 = vld [vmem:[#allocation15 + $0xc] sm:$0xf]
        %v2150 = vld [vmem:[#allocation15 + $0x10] sm:$0xf]
        %v2151 = vld [vmem:[#allocation15 + $0x14] sm:$0xf]
        %v2152 = vld [vmem:[#allocation15 + $0x18] sm:$0xf]
        %v2153 = vld [vmem:[#allocation15 + $0x1c] sm:$0xf]
        %v2154 = vld [vmem:[#allocation15 + $0x20] sm:$0xf]
        %v2155 = vld [vmem:[#allocation15 + $0x24] sm:$0xf]
        %v2156 = vld [vmem:[#allocation15 + $0x28] sm:$0xf]
        %v2157 = vld [vmem:[#allocation15 + $0x2c] sm:$0xf]
        %v2158 = vld [vmem:[#allocation15 + $0x30] sm:$0xf]
        %v2159 = vld [vmem:[#allocation15 + $0x34] sm:$0xf]
        %v2160 = vld [vmem:[#allocation15 + $0x38] sm:$0xf]
        %v2161 = vld [vmem:[#allocation15 + $0x3c] sm:$0xf]
        %s2162 = scalar_lea.vmem [#allocation5], 1
        %v2163 = vld [vmem:[%s2162] ss:$2 sm:$0xff]
        %s2164 = scalar_lea.vmem [#allocation5], 17
        %v2165 = vld [vmem:[%s2164] ss:$2 sm:$0xf]
        %v2166 = vpack.c.bf16 %v2165, %v2163
        %s2167 = scalar_lea.vmem [#allocation15], 64
        %v2168 = vld [vmem:[%s2167] sm:$0xf]
        %v2169 = vld [vmem:[%s2167 + $0x4] sm:$0xf]
        %v2170 = vld [vmem:[%s2167 + $0x8] sm:$0xf]
        %v2171 = vld [vmem:[%s2167 + $0xc] sm:$0xf]
        %v2172 = vld [vmem:[%s2167 + $0x10] sm:$0xf]
        %v2173 = vld [vmem:[%s2167 + $0x14] sm:$0xf]
        %v2174 = vld [vmem:[%s2167 + $0x18] sm:$0xf]
        %v2175 = vld [vmem:[%s2167 + $0x1c] sm:$0xf]
        %v2176 = vld [vmem:[%s2167 + $0x20] sm:$0xf]
        %v2177 = vld [vmem:[%s2167 + $0x24] sm:$0xf]
        %v2178 = vld [vmem:[%s2167 + $0x28] sm:$0xf]
        %v2179 = vld [vmem:[%s2167 + $0x2c] sm:$0xf]
        %v2180 = vld [vmem:[%s2167 + $0x30] sm:$0xf]
        %v2181 = vld [vmem:[%s2167 + $0x34] sm:$0xf]
        %v2182 = vld [vmem:[%s2167 + $0x38] sm:$0xf]
        %v2183 = vld [vmem:[%s2167 + $0x3c] sm:$0xf]
        %v2200 = vunpack.c.l.b16 %v2168
        %v2201 = vunpack.c.l.b16 %v2169
        %v2202 = vunpack.c.l.b16 %v2170
        %v2203 = vunpack.c.l.b16 %v2171
        %v2204 = vunpack.c.l.b16 %v2172
        %v2205 = vunpack.c.l.b16 %v2173
        %v2206 = vunpack.c.l.b16 %v2174
        %v2207 = vunpack.c.l.b16 %v2175
        %v2208 = vunpack.c.l.b16 %v2176
        %v2209 = vunpack.c.l.b16 %v2177
        %v2210 = vunpack.c.l.b16 %v2178
        %v2211 = vunpack.c.l.b16 %v2179
        %v2212 = vunpack.c.l.b16 %v2180
        %v2213 = vunpack.c.l.b16 %v2181
        %v2214 = vunpack.c.l.b16 %v2182
        %v2215 = vunpack.c.l.b16 %v2183
        %v2216 = vpack.c.b16 %v2201, %v2200
        %v2217 = vpack.c.b16 %v2203, %v2202
        %v2218 = vpack.c.b16 %v2205, %v2204
        %v2219 = vpack.c.b16 %v2207, %v2206
        %v2220 = vpack.c.b16 %v2209, %v2208
        %v2221 = vpack.c.b16 %v2211, %v2210
        %v2222 = vpack.c.b16 %v2213, %v2212
        %v2223 = vpack.c.b16 %v2215, %v2214
        %2232 = vmatpush.bf16.msra.mxu0 %v2223
        %2233 = vmatpush.bf16.msra.mxu0 %v2222
        %2234 = vmatpush.bf16.msra.mxu0 %v2221
        %2235 = vmatpush.bf16.msra.mxu0 %v2220
        %2236 = vmatpush.bf16.msra.mxu0 %v2219
        %2237 = vmatpush.bf16.msra.mxu0 %v2218
        %2238 = vmatpush.bf16.msra.mxu0 %v2217
        %2239 = vmatpush.bf16.msra.mxu0 %v2216
        %2240 = vmatmul.bf16.gmra.mxu0 %v2166
        %v2241 = vpop.f32.mrf.mxu0
        %v2242 = vadd.f32 0.0, %v2241
        %v2243 = vpop.f32.mrf.mxu0
        %v2244 = vadd.f32 0.0, %v2243
        %2245 = vdwg.mxu0
        %v2262 = vunpack.c.l.b16 %v2146
        %v2263 = vunpack.c.l.b16 %v2147
        %v2264 = vunpack.c.l.b16 %v2148
        %v2265 = vunpack.c.l.b16 %v2149
        %v2266 = vunpack.c.l.b16 %v2150
        %v2267 = vunpack.c.l.b16 %v2151
        %v2268 = vunpack.c.l.b16 %v2152
        %v2269 = vunpack.c.l.b16 %v2153
        %v2270 = vunpack.c.l.b16 %v2154
        %v2271 = vunpack.c.l.b16 %v2155
        %v2272 = vunpack.c.l.b16 %v2156
        %v2273 = vunpack.c.l.b16 %v2157
        %v2274 = vunpack.c.l.b16 %v2158
        %v2275 = vunpack.c.l.b16 %v2159
        %v2276 = vunpack.c.l.b16 %v2160
        %v2277 = vunpack.c.l.b16 %v2161
        %v2278 = vpack.c.b16 %v2263, %v2262
        %v2279 = vpack.c.b16 %v2265, %v2264
        %v2280 = vpack.c.b16 %v2267, %v2266
        %v2281 = vpack.c.b16 %v2269, %v2268
        %v2282 = vpack.c.b16 %v2271, %v2270
        %v2283 = vpack.c.b16 %v2273, %v2272
        %v2284 = vpack.c.b16 %v2275, %v2274
        %v2285 = vpack.c.b16 %v2277, %v2276
        %2294 = vmatpush.bf16.msra.mxu0 %v2285
        %2295 = vmatpush.bf16.msra.mxu0 %v2284
        %2296 = vmatpush.bf16.msra.mxu0 %v2283
        %2297 = vmatpush.bf16.msra.mxu0 %v2282
        %2298 = vmatpush.bf16.msra.mxu0 %v2281
        %2299 = vmatpush.bf16.msra.mxu0 %v2280
        %2300 = vmatpush.bf16.msra.mxu0 %v2279
        %2301 = vmatpush.bf16.msra.mxu0 %v2278
        %2302 = vmatmul.bf16.gmra.mxu0 %v2145
        %v2303 = vpop.f32.mrf.mxu0
        %v2304 = vadd.f32 %v2242, %v2303
        %v2305 = vpop.f32.mrf.mxu0
        %v2306 = vadd.f32 %v2244, %v2305
        %2307 = vdwg.mxu0
        %s2308 = scalar_lea.vmem [#allocation5], 2
        %v2309 = vld [vmem:[%s2308] ss:$2 sm:$0xff]
        %s2310 = scalar_lea.vmem [#allocation5], 18
        %v2311 = vld [vmem:[%s2310] ss:$2 sm:$0xf]
        %v2312 = vpack.c.bf16 %v2311, %v2309
        %s2313 = scalar_lea.vmem [#allocation15], 128
        %v2314 = vld [vmem:[%s2313] sm:$0xf]
        %v2315 = vld [vmem:[%s2313 + $0x4] sm:$0xf]
        %v2316 = vld [vmem:[%s2313 + $0x8] sm:$0xf]
        %v2317 = vld [vmem:[%s2313 + $0xc] sm:$0xf]
        %v2318 = vld [vmem:[%s2313 + $0x10] sm:$0xf]
        %v2319 = vld [vmem:[%s2313 + $0x14] sm:$0xf]
        %v2320 = vld [vmem:[%s2313 + $0x18] sm:$0xf]
        %v2321 = vld [vmem:[%s2313 + $0x1c] sm:$0xf]
        %v2322 = vld [vmem:[%s2313 + $0x20] sm:$0xf]
        %v2323 = vld [vmem:[%s2313 + $0x24] sm:$0xf]
        %v2324 = vld [vmem:[%s2313 + $0x28] sm:$0xf]
        %v2325 = vld [vmem:[%s2313 + $0x2c] sm:$0xf]
        %v2326 = vld [vmem:[%s2313 + $0x30] sm:$0xf]
        %v2327 = vld [vmem:[%s2313 + $0x34] sm:$0xf]
        %v2328 = vld [vmem:[%s2313 + $0x38] sm:$0xf]
        %v2329 = vld [vmem:[%s2313 + $0x3c] sm:$0xf]
        %v2346 = vunpack.c.l.b16 %v2314
        %v2347 = vunpack.c.l.b16 %v2315
        %v2348 = vunpack.c.l.b16 %v2316
        %v2349 = vunpack.c.l.b16 %v2317
        %v2350 = vunpack.c.l.b16 %v2318
        %v2351 = vunpack.c.l.b16 %v2319
        %v2352 = vunpack.c.l.b16 %v2320
        %v2353 = vunpack.c.l.b16 %v2321
        %v2354 = vunpack.c.l.b16 %v2322
        %v2355 = vunpack.c.l.b16 %v2323
        %v2356 = vunpack.c.l.b16 %v2324
        %v2357 = vunpack.c.l.b16 %v2325
        %v2358 = vunpack.c.l.b16 %v2326
        %v2359 = vunpack.c.l.b16 %v2327
        %v2360 = vunpack.c.l.b16 %v2328
        %v2361 = vunpack.c.l.b16 %v2329
        %v2362 = vpack.c.b16 %v2347, %v2346
        %v2363 = vpack.c.b16 %v2349, %v2348
        %v2364 = vpack.c.b16 %v2351, %v2350
        %v2365 = vpack.c.b16 %v2353, %v2352
        %v2366 = vpack.c.b16 %v2355, %v2354
        %v2367 = vpack.c.b16 %v2357, %v2356
        %v2368 = vpack.c.b16 %v2359, %v2358
        %v2369 = vpack.c.b16 %v2361, %v2360
        %2378 = vmatpush.bf16.msra.mxu0 %v2369
        %2379 = vmatpush.bf16.msra.mxu0 %v2368
        %2380 = vmatpush.bf16.msra.mxu0 %v2367
        %2381 = vmatpush.bf16.msra.mxu0 %v2366
        %2382 = vmatpush.bf16.msra.mxu0 %v2365
        %2383 = vmatpush.bf16.msra.mxu0 %v2364
        %2384 = vmatpush.bf16.msra.mxu0 %v2363
        %2385 = vmatpush.bf16.msra.mxu0 %v2362
        %2386 = vmatmul.bf16.gmra.mxu0 %v2312
        %v2387 = vpop.f32.mrf.mxu0
        %v2388 = vadd.f32 0.0, %v2387
        %v2389 = vpop.f32.mrf.mxu0
        %v2390 = vadd.f32 0.0, %v2389
        %2391 = vdwg.mxu0
        %v2392 = vadd.f32 %v2304, %v2388
        %v2393 = vadd.f32 %v2306, %v2390
        %v2394 = vld [vmem:[#allocation18] sm:$0x1]
        %v2396 = vperm.slane %v2394, 0
        %v2398 = vadd.f32 %v2392, %v2396
        %v2399 = vadd.f32 %v2393, %v2396
        %vm2400 = vcmp.gt.f32.partialorder %v2398, 0.0
        %vm2401 = vcmp.gt.f32.partialorder %v2399, 0.0
        %v2402 = vmul.f32 %v2398, 0.2
        %v2403 = vmul.f32 %v2399, 0.2
        %v2404 = vsel %vm2400, %v2398, %v2402
        %v2405 = vsel %vm2401, %v2399, %v2403
        %2406 = vst [vmem:[%s681] sm:$0x3] %v2404
        %2407 = vst [vmem:[#allocation6 + $0x1] sm:$0x3] %v2404
        %s2408 = scalar_lea.vmem %s681, 2
        %2409 = vst [vmem:[%s2408 - $0x3] sm:$0x18] %v2404
        %2410 = vst [vmem:[#allocation6 + $0x2] sm:$0x18] %v2404
        %s2411 = scalar_lea.vmem %s681, 4
        %2412 = vst [vmem:[%s2411 - $0x6] sm:$0xc0] %v2404
        %2413 = vst [vmem:[#allocation6 + $0x3] sm:$0xc0] %v2404
        %s2414 = scalar_lea.vmem %s681, 6
        %2415 = vst [vmem:[%s2414 - $0x1] sm:$0x6] %v2405
        %2416 = vst [vmem:[#allocation6 + $0xc] sm:$0x6] %v2405
        %v2417 = vld [vmem:[#allocation6] sm:$0xff]
        %v2418 = vld [vmem:[#allocation6 + $0x8] sm:$0xff]
        %v2419 = vpack.c.bf16 %v2418, %v2417
        %v2420 = vld [vmem:[#allocation17] sm:$0xf]
        %v2421 = vld [vmem:[#allocation17 + $0x4] sm:$0xf]
        %v2422 = vld [vmem:[#allocation17 + $0x8] sm:$0xf]
        %v2423 = vld [vmem:[#allocation17 + $0xc] sm:$0xf]
        %v2424 = vld [vmem:[#allocation17 + $0x10] sm:$0xf]
        %v2425 = vld [vmem:[#allocation17 + $0x14] sm:$0xf]
        %v2426 = vld [vmem:[#allocation17 + $0x18] sm:$0xf]
        %v2427 = vld [vmem:[#allocation17 + $0x1c] sm:$0xf]
        %v2428 = vld [vmem:[#allocation17 + $0x20] sm:$0xf]
        %v2429 = vld [vmem:[#allocation17 + $0x24] sm:$0xf]
        %v2430 = vld [vmem:[#allocation17 + $0x28] sm:$0xf]
        %v2431 = vld [vmem:[#allocation17 + $0x2c] sm:$0xf]
        %v2432 = vld [vmem:[#allocation17 + $0x30] sm:$0xf]
        %v2433 = vld [vmem:[#allocation17 + $0x34] sm:$0xf]
        %v2434 = vld [vmem:[#allocation17 + $0x38] sm:$0xf]
        %v2435 = vld [vmem:[#allocation17 + $0x3c] sm:$0xf]
        %v2436 = vld [vmem:[#allocation6 + $0x1] sm:$0xff]
        %v2437 = vld [vmem:[#allocation6 + $0x9] sm:$0xff]
        %v2438 = vpack.c.bf16 %v2437, %v2436
        %s2439 = scalar_lea.vmem [#allocation17], 64
        %v2440 = vld [vmem:[%s2439] sm:$0xf]
        %v2441 = vld [vmem:[%s2439 + $0x4] sm:$0xf]
        %v2442 = vld [vmem:[%s2439 + $0x8] sm:$0xf]
        %v2443 = vld [vmem:[%s2439 + $0xc] sm:$0xf]
        %v2444 = vld [vmem:[%s2439 + $0x10] sm:$0xf]
        %v2445 = vld [vmem:[%s2439 + $0x14] sm:$0xf]
        %v2446 = vld [vmem:[%s2439 + $0x18] sm:$0xf]
        %v2447 = vld [vmem:[%s2439 + $0x1c] sm:$0xf]
        %v2448 = vld [vmem:[%s2439 + $0x20] sm:$0xf]
        %v2449 = vld [vmem:[%s2439 + $0x24] sm:$0xf]
        %v2450 = vld [vmem:[%s2439 + $0x28] sm:$0xf]
        %v2451 = vld [vmem:[%s2439 + $0x2c] sm:$0xf]
        %v2452 = vld [vmem:[%s2439 + $0x30] sm:$0xf]
        %v2453 = vld [vmem:[%s2439 + $0x34] sm:$0xf]
        %v2454 = vld [vmem:[%s2439 + $0x38] sm:$0xf]
        %v2455 = vld [vmem:[%s2439 + $0x3c] sm:$0xf]
        %v2472 = vunpack.c.l.b16 %v2440
        %v2473 = vunpack.c.l.b16 %v2441
        %v2474 = vunpack.c.l.b16 %v2442
        %v2475 = vunpack.c.l.b16 %v2443
        %v2476 = vunpack.c.l.b16 %v2444
        %v2477 = vunpack.c.l.b16 %v2445
        %v2478 = vunpack.c.l.b16 %v2446
        %v2479 = vunpack.c.l.b16 %v2447
        %v2480 = vunpack.c.l.b16 %v2448
        %v2481 = vunpack.c.l.b16 %v2449
        %v2482 = vunpack.c.l.b16 %v2450
        %v2483 = vunpack.c.l.b16 %v2451
        %v2484 = vunpack.c.l.b16 %v2452
        %v2485 = vunpack.c.l.b16 %v2453
        %v2486 = vunpack.c.l.b16 %v2454
        %v2487 = vunpack.c.l.b16 %v2455
        %v2488 = vpack.c.b16 %v2473, %v2472
        %v2489 = vpack.c.b16 %v2475, %v2474
        %v2490 = vpack.c.b16 %v2477, %v2476
        %v2491 = vpack.c.b16 %v2479, %v2478
        %v2492 = vpack.c.b16 %v2481, %v2480
        %v2493 = vpack.c.b16 %v2483, %v2482
        %v2494 = vpack.c.b16 %v2485, %v2484
        %v2495 = vpack.c.b16 %v2487, %v2486
        %2504 = vmatpush.bf16.msra.mxu0 %v2495
        %2505 = vmatpush.bf16.msra.mxu0 %v2494
        %2506 = vmatpush.bf16.msra.mxu0 %v2493
        %2507 = vmatpush.bf16.msra.mxu0 %v2492
        %2508 = vmatpush.bf16.msra.mxu0 %v2491
        %2509 = vmatpush.bf16.msra.mxu0 %v2490
        %2510 = vmatpush.bf16.msra.mxu0 %v2489
        %2511 = vmatpush.bf16.msra.mxu0 %v2488
        %2512 = vmatmul.bf16.gmra.mxu0 %v2438
        %v2513 = vpop.f32.mrf.mxu0
        %v2514 = vadd.f32 0.0, %v2513
        %v2515 = vpop.f32.mrf.mxu0
        %v2516 = vadd.f32 0.0, %v2515
        %2517 = vdwg.mxu0
        %v2534 = vunpack.c.l.b16 %v2420
        %v2535 = vunpack.c.l.b16 %v2421
        %v2536 = vunpack.c.l.b16 %v2422
        %v2537 = vunpack.c.l.b16 %v2423
        %v2538 = vunpack.c.l.b16 %v2424
        %v2539 = vunpack.c.l.b16 %v2425
        %v2540 = vunpack.c.l.b16 %v2426
        %v2541 = vunpack.c.l.b16 %v2427
        %v2542 = vunpack.c.l.b16 %v2428
        %v2543 = vunpack.c.l.b16 %v2429
        %v2544 = vunpack.c.l.b16 %v2430
        %v2545 = vunpack.c.l.b16 %v2431
        %v2546 = vunpack.c.l.b16 %v2432
        %v2547 = vunpack.c.l.b16 %v2433
        %v2548 = vunpack.c.l.b16 %v2434
        %v2549 = vunpack.c.l.b16 %v2435
        %v2550 = vpack.c.b16 %v2535, %v2534
        %v2551 = vpack.c.b16 %v2537, %v2536
        %v2552 = vpack.c.b16 %v2539, %v2538
        %v2553 = vpack.c.b16 %v2541, %v2540
        %v2554 = vpack.c.b16 %v2543, %v2542
        %v2555 = vpack.c.b16 %v2545, %v2544
        %v2556 = vpack.c.b16 %v2547, %v2546
        %v2557 = vpack.c.b16 %v2549, %v2548
        %2566 = vmatpush.bf16.msra.mxu0 %v2557
        %2567 = vmatpush.bf16.msra.mxu0 %v2556
        %2568 = vmatpush.bf16.msra.mxu0 %v2555
        %2569 = vmatpush.bf16.msra.mxu0 %v2554
        %2570 = vmatpush.bf16.msra.mxu0 %v2553
        %2571 = vmatpush.bf16.msra.mxu0 %v2552
        %2572 = vmatpush.bf16.msra.mxu0 %v2551
        %2573 = vmatpush.bf16.msra.mxu0 %v2550
        %2574 = vmatmul.bf16.gmra.mxu0 %v2419
        %v2575 = vpop.f32.mrf.mxu0
        %v2576 = vadd.f32 %v2514, %v2575
        %v2577 = vpop.f32.mrf.mxu0
        %v2578 = vadd.f32 %v2516, %v2577
        %2579 = vdwg.mxu0
        %v2580 = vld [vmem:[#allocation6 + $0x2] sm:$0xff]
        %v2581 = vld [vmem:[#allocation6 + $0xa] sm:$0xff]
        %v2582 = vpack.c.bf16 %v2581, %v2580
        %s2583 = scalar_lea.vmem [#allocation17], 128
        %v2584 = vld [vmem:[%s2583] sm:$0xf]
        %v2585 = vld [vmem:[%s2583 + $0x4] sm:$0xf]
        %v2586 = vld [vmem:[%s2583 + $0x8] sm:$0xf]
        %v2587 = vld [vmem:[%s2583 + $0xc] sm:$0xf]
        %v2588 = vld [vmem:[%s2583 + $0x10] sm:$0xf]
        %v2589 = vld [vmem:[%s2583 + $0x14] sm:$0xf]
        %v2590 = vld [vmem:[%s2583 + $0x18] sm:$0xf]
        %v2591 = vld [vmem:[%s2583 + $0x1c] sm:$0xf]
        %v2592 = vld [vmem:[%s2583 + $0x20] sm:$0xf]
        %v2593 = vld [vmem:[%s2583 + $0x24] sm:$0xf]
        %v2594 = vld [vmem:[%s2583 + $0x28] sm:$0xf]
        %v2595 = vld [vmem:[%s2583 + $0x2c] sm:$0xf]
        %v2596 = vld [vmem:[%s2583 + $0x30] sm:$0xf]
        %v2597 = vld [vmem:[%s2583 + $0x34] sm:$0xf]
        %v2598 = vld [vmem:[%s2583 + $0x38] sm:$0xf]
        %v2599 = vld [vmem:[%s2583 + $0x3c] sm:$0xf]
        %v2616 = vunpack.c.l.b16 %v2584
        %v2617 = vunpack.c.l.b16 %v2585
        %v2618 = vunpack.c.l.b16 %v2586
        %v2619 = vunpack.c.l.b16 %v2587
        %v2620 = vunpack.c.l.b16 %v2588
        %v2621 = vunpack.c.l.b16 %v2589
        %v2622 = vunpack.c.l.b16 %v2590
        %v2623 = vunpack.c.l.b16 %v2591
        %v2624 = vunpack.c.l.b16 %v2592
        %v2625 = vunpack.c.l.b16 %v2593
        %v2626 = vunpack.c.l.b16 %v2594
        %v2627 = vunpack.c.l.b16 %v2595
        %v2628 = vunpack.c.l.b16 %v2596
        %v2629 = vunpack.c.l.b16 %v2597
        %v2630 = vunpack.c.l.b16 %v2598
        %v2631 = vunpack.c.l.b16 %v2599
        %v2632 = vpack.c.b16 %v2617, %v2616
        %v2633 = vpack.c.b16 %v2619, %v2618
        %v2634 = vpack.c.b16 %v2621, %v2620
        %v2635 = vpack.c.b16 %v2623, %v2622
        %v2636 = vpack.c.b16 %v2625, %v2624
        %v2637 = vpack.c.b16 %v2627, %v2626
        %v2638 = vpack.c.b16 %v2629, %v2628
        %v2639 = vpack.c.b16 %v2631, %v2630
        %2648 = vmatpush.bf16.msra.mxu0 %v2639
        %2649 = vmatpush.bf16.msra.mxu0 %v2638
        %2650 = vmatpush.bf16.msra.mxu0 %v2637
        %2651 = vmatpush.bf16.msra.mxu0 %v2636
        %2652 = vmatpush.bf16.msra.mxu0 %v2635
        %2653 = vmatpush.bf16.msra.mxu0 %v2634
        %2654 = vmatpush.bf16.msra.mxu0 %v2633
        %2655 = vmatpush.bf16.msra.mxu0 %v2632
        %2656 = vmatmul.bf16.gmra.mxu0 %v2582
        %v2657 = vpop.f32.mrf.mxu0
        %v2658 = vadd.f32 0.0, %v2657
        %v2659 = vpop.f32.mrf.mxu0
        %v2660 = vadd.f32 0.0, %v2659
        %2661 = vdwg.mxu0
        %v2662 = vadd.f32 %v2576, %v2658
        %v2663 = vadd.f32 %v2578, %v2660
        %v2664 = vsub.f32 0.0, %v2662
        %v2665 = vsub.f32 0.0, %v2663
        %v2666 = vmul.f32 %v2664, 1.442695
        %v2667 = vpow.pop %v2666
        %v2668 = vmul.f32 %v2665, 1.442695
        %v2669 = vpow.pop %v2668
        %v2670 = vadd.f32 %v2667, 1.0
        %v2671 = vadd.f32 %v2669, 1.0
        %v2672 = vrcp.pop %v2670
        %v2673 = vmul.f32 %v2670, %v2672
        %v2674 = vsub.f32 1.0, %v2673
        %v2675 = vmul.f32 %v2672, %v2674
        %v2676 = vadd.f32 %v2672, %v2675
        %vm2677 = vweird.f32 %v2670
        %vm2678 = vweird.f32 %v2672
        %vm2679 = vmor %vm2677, %vm2678
        %v2680 = vsel %vm2679, %v2672, %v2676
        %v2681 = vand.u32 2147483647, %v2670
        %vm2682 = vcmp.eq.f32.partialorder %v2681, 8.507059e+37
        %v2683 = vand.u32 %v2670, 2147483648
        %v2684 = vor.u32 1.1754944e-38, %v2683
        %v2685 = vsel %vm2682, %v2684, %v2680
        %v2686 = vmul.f32 1.0, %v2685
        %v2687 = vrcp.pop %v2671
        %v2688 = vmul.f32 %v2671, %v2687
        %v2689 = vsub.f32 1.0, %v2688
        %v2690 = vmul.f32 %v2687, %v2689
        %v2691 = vadd.f32 %v2687, %v2690
        %vm2692 = vweird.f32 %v2671
        %vm2693 = vweird.f32 %v2687
        %vm2694 = vmor %vm2692, %vm2693
        %v2695 = vsel %vm2694, %v2687, %v2691
        %v2696 = vand.u32 2147483647, %v2671
        %vm2697 = vcmp.eq.f32.partialorder %v2696, 8.507059e+37
        %v2698 = vand.u32 %v2671, 2147483648
        %v2699 = vor.u32 1.1754944e-38, %v2698
        %v2700 = vsel %vm2697, %v2699, %v2695
        %v2701 = vmul.f32 1.0, %v2700
        %2702 = vst [vmem:[%s687] sm:$0x3] %v2686
        %s2703 = scalar_lea.vmem %s687, 2
        %2704 = vst [vmem:[%s2703 - $0x4] sm:$0x30] %v2686
        %s2705 = scalar_lea.vmem %s687, 4
        %2706 = vst [vmem:[%s2705] sm:$0x3] %v2701
        %s2707 = scalar_lea.vmem %s687, 6
        %2708 = vst [vmem:[%s2707 - $0x4] sm:$0x30] %v2701
        %s2709 = smul.u32 4, %s35
        %p2710 = scmp.lt.s32.totalorder %s2709, 7
        %s2711 = scalar_select %p2710, %s2709, 7
        %s2712 = smul.addr %s2711, 2
        %s2713 = smul.addr %s2712, 8
        %s2714 = scalar_lea.vmem %s10, %s2713
        %s2715 = smul.u32 4, %s35
        %p2716 = scmp.lt.s32.totalorder %s2715, 7
        %s2717 = scalar_select %p2716, %s2715, 7
        %s2718 = smul.addr %s2717, 8
        %s2719 = scalar_lea.vmem %s11, %s2718
        %s2720 = smul.u32 4, %s35
        %p2721 = scmp.lt.s32.totalorder %s2720, 7
        %s2722 = scalar_select %p2721, %s2720, 7
        %s2723 = smul.addr %s2722, 4
        %s2724 = scalar_lea.vmem %s12, %s2723
        %s2725 = smul.u32 4, %s35
        %p2726 = scmp.lt.s32.totalorder %s2725, 7
        %s2727 = scalar_select %p2726, %s2725, 7
        %s2728 = smul.addr %s2727, 2
        %s2729 = scalar_lea.vmem %s13, %s2728
        %s2730 = smul.u32 4, %s35
        %p2731 = scmp.lt.s32.totalorder %s2730, 7
        %s2732 = scalar_select %p2731, %s2730, 7
        %s2733 = smul.addr %s2732, 2
        %s2734 = scalar_lea.vmem %s14, %s2733
        // Predicated region
        $region93: #{conditional_discriminator.1} parent=59 // pred_check
          %p2735 = pneg %p273
        $region94: #{conditional_discriminator.1} parent=59 // pred_check_branch
          %2737 = sbr.rel (%p2735) target = $region96
        $region95: #{conditional_discriminator.1} parent=59 // pred_region
          %s2738 = smul.u32 4, %s35
        $region96: #{conditional_discriminator.1} parent=59 // pred_fallthru
          _
        // Predicated region
        $region97: #{conditional_discriminator.1} parent=59 // pred_check
          %p2739 = pneg %p299
        $region98: #{conditional_discriminator.1} parent=59 // pred_check_branch
          %2741 = sbr.rel (%p2739) target = $region100
        $region99: #{conditional_discriminator.1} parent=59 // pred_region
          %s2742 = smul.u32 4, %s35
        $region100: #{conditional_discriminator.1} parent=59 // pred_fallthru
          _
        // Predicated region
        $region101: #{conditional_discriminator.1} parent=59 // pred_check
          %p2743 = pneg %p325
        $region102: #{conditional_discriminator.1} parent=59 // pred_check_branch
          %2745 = sbr.rel (%p2743) target = $region104
        $region103: #{conditional_discriminator.1} parent=59 // pred_region
          %s2746 = smul.u32 4, %s35
        $region104: #{conditional_discriminator.1} parent=59 // pred_fallthru
          _
        // Predicated region
        $region105: #{conditional_discriminator.1} parent=59 // pred_check
          %p2747 = pneg %p351
        $region106: #{conditional_discriminator.1} parent=59 // pred_check_branch
          %2749 = sbr.rel (%p2747) target = $region108
        $region107: #{conditional_discriminator.1} parent=59 // pred_region
          %s2750 = smul.u32 4, %s35
        $region108: #{conditional_discriminator.1} parent=59 // pred_fallthru
          _
        // Predicated region
        $region109: #{conditional_discriminator.1} parent=59 // pred_check
          %p2751 = pneg %p377
        $region110: #{conditional_discriminator.1} parent=59 // pred_check_branch
          %2753 = sbr.rel (%p2751) target = $region112
        $region111: #{conditional_discriminator.1} parent=59 // pred_region
          %s2754 = smul.u32 4, %s35
        $region112: #{conditional_discriminator.1} parent=59 // pred_fallthru
          _
      $region60: #{conditional_discriminator.1} parent=5 // pred_fallthru
        _
      %p2755 = scmp.le.s32.totalorder 2, %s30
      // Predicated region
      $region113: #{conditional_discriminator.1} parent=5 // pred_check
        %p2756 = pneg %p2755
      $region114: #{conditional_discriminator.1} parent=5 // pred_check_branch
        %2758 = sbr.rel (%p2756) target = $region116
      $region115: #{conditional_discriminator.1} parent=5 // pred_region
        %s2759 = ssub.s32 %s30, 2
        // Predicated region
        $region117: #{conditional_discriminator.1} parent=115 // pred_check
          %p2760 = pneg %p279
        $region118: #{conditional_discriminator.1} parent=115 // pred_check_branch
          %2762 = sbr.rel (%p2760) target = $region120
        $region119: #{conditional_discriminator.1} parent=115 // pred_region
          %s2763 = smul.u32 4, %s36
          %p2764 = scmp.lt.s32.totalorder %s2763, 7
          %s2765 = scalar_select %p2764, %s2763, 7
          %s2766 = smul.addr %s2765, 2
          %s2767 = smul.addr %s2766, 8
          %s2768 = scalar_lea.vmem %s10, %s2767
        $region120: #{conditional_discriminator.1} parent=115 // pred_fallthru
          _
        // Predicated region
        $region121: #{conditional_discriminator.1} parent=115 // pred_check
          %p2769 = pneg %p305
        $region122: #{conditional_discriminator.1} parent=115 // pred_check_branch
          %2771 = sbr.rel (%p2769) target = $region124
        $region123: #{conditional_discriminator.1} parent=115 // pred_region
          %s2772 = smul.u32 4, %s36
          %p2773 = scmp.lt.s32.totalorder %s2772, 7
          %s2774 = scalar_select %p2773, %s2772, 7
          %s2775 = smul.addr %s2774, 8
          %s2776 = scalar_lea.vmem %s11, %s2775
        $region124: #{conditional_discriminator.1} parent=115 // pred_fallthru
          _
        // Predicated region
        $region125: #{conditional_discriminator.1} parent=115 // pred_check
          %p2777 = pneg %p331
        $region126: #{conditional_discriminator.1} parent=115 // pred_check_branch
          %2779 = sbr.rel (%p2777) target = $region128
        $region127: #{conditional_discriminator.1} parent=115 // pred_region
          %s2780 = smul.u32 4, %s36
          %p2781 = scmp.lt.s32.totalorder %s2780, 7
          %s2782 = scalar_select %p2781, %s2780, 7
          %s2783 = smul.addr %s2782, 4
          %s2784 = scalar_lea.vmem %s12, %s2783
        $region128: #{conditional_discriminator.1} parent=115 // pred_fallthru
          _
        // Predicated region
        $region129: #{conditional_discriminator.1} parent=115 // pred_check
          %p2785 = pneg %p357
        $region130: #{conditional_discriminator.1} parent=115 // pred_check_branch
          %2787 = sbr.rel (%p2785) target = $region132
        $region131: #{conditional_discriminator.1} parent=115 // pred_region
          %s2788 = smul.u32 4, %s36
          %p2789 = scmp.lt.s32.totalorder %s2788, 7
          %s2790 = scalar_select %p2789, %s2788, 7
          %s2791 = smul.addr %s2790, 2
          %s2792 = scalar_lea.vmem %s13, %s2791
        $region132: #{conditional_discriminator.1} parent=115 // pred_fallthru
          _
        // Predicated region
        $region133: #{conditional_discriminator.1} parent=115 // pred_check
          %p2793 = pneg %p383
        $region134: #{conditional_discriminator.1} parent=115 // pred_check_branch
          %2795 = sbr.rel (%p2793) target = $region136
        $region135: #{conditional_discriminator.1} parent=115 // pred_region
          %s2796 = smul.u32 4, %s36
          %p2797 = scmp.lt.s32.totalorder %s2796, 7
          %s2798 = scalar_select %p2797, %s2796, 7
          %s2799 = smul.addr %s2798, 2
          %s2800 = scalar_lea.vmem %s14, %s2799
        $region136: #{conditional_discriminator.1} parent=115 // pred_fallthru
          _
      $region116: #{conditional_discriminator.1} parent=5 // pred_fallthru
        _
    $region6: #{conditional_discriminator.1} parent=1 // loop_footer
      %s34 = sadd.s32 1, %s30
    $region7: #{conditional_discriminator.1} parent=1 // loop_footer_branch
      %29 = sbr.rel target = $region3
    $region8: #{conditional_discriminator.1} parent=1 // loop_exit
      _
    %2801 = vsyncpa [#allocation8], 1
    %s2802 = scalar_lea.sflag [#allocation8], 1
    %2803 = vsyncpa %s2802, 1
    %2804 = vsyncpa [#allocation10], 1
    %s2805 = scalar_lea.sflag [#allocation10], 1
    %2806 = vsyncpa %s2805, 1
    %2807 = vsyncpa [#allocation13], 1
    %2808 = vsyncpa [#allocation16], 1
    %2809 = vsyncpa [#allocation19], 1

</llo_original>
